<compile_context>
chip_gen: v7x
topology: tpu7x:2x2x1
jax: 0.10.0
libtpu: 0.0.40
codegen_flags: <defaults>
</compile_context>

<pallas_src>
import numpy as np
import jax
import jax.numpy as jnp
from jax import lax
from jax.experimental import pallas as pl
from jax.experimental.pallas import tpu as pltpu

# ----------------------- static configuration -----------------------------
B = 2             # batch
S = 8             # sequence length (xi and xt)
D = 8             # input_dims[0] == input_dims[1] == output_dim
H = 32            # mm_dim == hidden_size
CHUNKS = 4        # Block fusion chunks
RANK = 2          # Block fusion rank
CHUNK = H // CHUNKS
HR = H * RANK     # per-chunk low-rank merge width (rank-major concat)
NUM_LAYERS = 2    # num_atten_layer (ModuleList([m] * 2) -> shared weights)
OUT_DIM = D       # output_dim
G = H // S        # groups in the transpose(1,2).view(n,-1,H) shuffle
BN_EPS = 1e-5

assert S == OUT_DIM           # residual + BatchNorm1d(channel=dim 1) constraint
assert H % S == 0 and H % CHUNKS == 0 and HR <= 128 and H + HR <= 128

# constant-slab column offsets (every slice stays inside one 128-lane tile)
C_WK = 0       # folded wk@w0@m0            (D, HR)     cols   0:64
C_WVQ = 128    # [wv(perm) | wq@w1@m1]      (D, H+HR)   cols 128:224
C_WMT = 256    # linear_merge weight^T      (OUT, H)    cols 256:288
C_BK = 384     # folded key-path bias       (1, HR)     cols 384:448
C_BM = 448     # linear_merge bias          (1, OUT)    cols 448:456
C_BOUT = 456   # block linear_out bias      (1, 1)
C_BNS = 464    # BN scale (per channel)     (S, 1) column
C_BNH = 472    # BN shift (per channel)     (S, 1) column
C_BVQ = 512    # [bv(perm) | folded q bias] (1, H+HR)   cols 512:608
C_WOUT = 608   # block linear_out weight    (1, H)      cols 608:640
CONST_COLS = 640


# ----------------------------- fused kernel --------------------------------
def _baf_fused_kernel(x_ref, c_ref, o_ref):
  """Whole BAF forward (both layers, both batch elements) in one invocation."""
  f32 = jnp.float32
  x = x_ref[...].astype(f32)              # (2*B*S, D): rows [xi ; xt]
  c = c_ref[...]                          # (8, CONST_COLS) packed constants

  w_kqm = c[:, C_WK:C_WK + HR]            # (D, HR)   folded key path weight
  w_vq = c[:, C_WVQ:C_WVQ + H + HR]       # (D, H+HR) [wv_perm | folded query]
  w_mT = c[:, C_WMT:C_WMT + H]            # (OUT, H)  linear_merge^T
  b_kqm = c[0:1, C_BK:C_BK + HR]          # (1, HR)
  b_vq = c[0:1, C_BVQ:C_BVQ + H + HR]     # (1, H+HR)
  wout3 = c[0:1, C_WOUT:C_WOUT + H][:, None, :]   # (1, 1, H) block linear_out
  bm = c[0:1, C_BM:C_BM + OUT_DIM]        # (1, OUT)
  bout = c[0:1, C_BOUT:C_BOUT + 1]        # (1, 1)
  bn_s = c[:, C_BNS:C_BNS + 1]            # (S, 1) BN scale, channel = dim 1
  bn_h = c[:, C_BNH:C_BNH + 1]            # (S, 1) BN shift

  xi_all = x[0:B * S, :]                  # (B*S, D) fixed "q" stream (xi)
  cur = x[B * S:2 * B * S, :]             # (B*S, D) evolving v/k stream (xt)

  # hoisted key path: xi and the shared weights never change across layers.
  # (one matmul total thanks to host-side folding of linear_k -> block.linear0
  #  -> block.merge0)
  mm0_all = jnp.dot(xi_all, w_kqm, preferred_element_type=f32) + b_kqm  # (B*S, HR)

  for layer in range(NUM_LAYERS):         # weight-shared layers, unrolled
    # one stacked projection per layer: [value (g-major cols) | query->merge1]
    proj = jnp.dot(cur, w_vq, preferred_element_type=f32) + b_vq        # (B*S, H+HR)

    for b in range(B):                    # only the pairwise block is per-batch
      rows = slice(b * S, (b + 1) * S)
      vhp = proj[rows, 0:H]               # (S, H)  value proj, columns permuted
      mm1 = proj[rows, H:H + HR]          # (S, HR) query-side merged features
      mm0 = mm0_all[rows, :]              # (S, HR) key-side merged features

      # batched pairwise Block fusion: row i = query, col j = key.
      # rank handled as 2-D slices before the outer product (rank off lanes).
      zp = None
      for r in range(RANK):
        mm1_r = mm1[:, r * H:(r + 1) * H]
        mm0_r = mm0[:, r * H:(r + 1) * H]
        t = mm1_r[:, None, :] * mm0_r[None, :, :]                       # (S, S, H)
        zp = t if zp is None else zp + t

      # signed sqrt with a single rsqrt; z^2 == |zp| so chunk norms reuse |zp|.
      az = jnp.abs(zp)
      z = zp * lax.rsqrt(jnp.maximum(az, 1e-24))                        # sign*sqrt
      # per-chunk L2 normalize (F.normalize, eps=1e-12) fused with linear_out.
      scores = None
      for ch in range(CHUNKS):
        sl = slice(ch * CHUNK, (ch + 1) * CHUNK)
        s_c = jnp.sum(z[..., sl] * wout3[..., sl], axis=-1)             # (S, S)
        n_c = jnp.sum(az[..., sl], axis=-1)                             # (S, S)
        t = s_c * lax.rsqrt(jnp.maximum(n_c, 1e-24))
        scores = t if scores is None else scores + t
      scores = scores + bout                                            # (S, S)

      # softmax over keys (dim=-1); nn.Dropout is identity at inference.
      e = jnp.exp(scores - jnp.max(scores, axis=-1, keepdims=True))
      att = e * pl.reciprocal(jnp.sum(e, axis=-1, keepdims=True), approx=True)
      atted_p = jnp.dot(att, vhp, preferred_element_type=f32)           # (S, H)

      # fused transpose(1,2).contiguous().view + linear_merge:
      #   merged^T[o, p] = sum_g sum_s wm[g*S+s, o] * atted[s, p*G+g]
      # with atted_p[s, g*S+p] = atted[s, p*G+g] (columns permuted host-side).
      mT = None
      for g in range(G):
        gsl = slice(g * S, (g + 1) * S)
        pg = jnp.dot(w_mT[:, gsl], atted_p[:, gsl],
                     preferred_element_type=f32)                        # (OUT, S)
        mT = pg if mT is None else mT + pg
      merged = mT.T + bm                                                # (S, OUT)

      # BatchNorm1d (eval, fresh stats, channel = dim 1) -> ReLU -> residual.
      u_b = jnp.maximum(merged * bn_s + bn_h, 0.0) + cur[rows, :]
      o_ref[rows, :] = u_b                # output buffer doubles as layer state

    cur = o_ref[...]                      # stacked (B*S, OUT) state for next layer


# --------------------------- pallas_call wrapper ----------------------------
@jax.jit
def baf_forward(xi, xt, consts):
  x = jnp.concatenate(
      [xi.astype(jnp.float32).reshape(B * S, D),
       xt.astype(jnp.float32).reshape(B * S, D)], axis=0)      # (2*B*S, D)
  out = pl.pallas_call(
      _baf_fused_kernel,
      out_shape=jax.ShapeDtypeStruct((B * S, OUT_DIM), jnp.float32),
      grid=(1,),
      in_specs=[
          pl.BlockSpec((2 * B * S, D), lambda i: (0, 0)),       # stacked xi|xt
          pl.BlockSpec((8, CONST_COLS), lambda i: (0, 0)),      # packed constants
      ],
      out_specs=pl.BlockSpec((B * S, OUT_DIM), lambda i: (0, 0)),
      compiler_params=pltpu.CompilerParams(dimension_semantics=("arbitrary",)),
  )(x, consts)
  return out.reshape(B, S, OUT_DIM)


# ----------------------------- parameter init -------------------------------
def init_consts(key):
  ks = jax.random.split(key, 20)

  def kaiming(k, fan_in, fan_out):
    # torch kaiming_normal_(mode='fan_out', relu) on an (out, in) weight
    # => std = sqrt(2 / out_features); stored transposed as (in, out).
    return (np.asarray(jax.random.normal(k, (fan_in, fan_out)), np.float32)
            * np.sqrt(2.0 / fan_out))

  def bias_vec(k, n):
    return np.asarray(jax.random.normal(k, (n,)), np.float32) * 0.01

  wv, bv = kaiming(ks[0], D, H), bias_vec(ks[1], H)
  wk, bk = kaiming(ks[2], D, H), bias_vec(ks[3], H)
  wq, bq = kaiming(ks[4], D, H), bias_vec(ks[5], H)
  w0, b0 = kaiming(ks[6], H, H), bias_vec(ks[7], H)
  w1, b1 = kaiming(ks[8], H, H), bias_vec(ks[9], H)

  # per-chunk merge linears (CHUNK -> CHUNK*RANK), block-diagonal, rank-major
  # columns so the rank-sum is RANK contiguous slices.
  def merge_mat(k):
    m = np.zeros((H, HR), np.float32)
    kc = jax.random.split(k, CHUNKS)
    for cch in range(CHUNKS):
      blk = (np.asarray(jax.random.normal(kc[cch], (CHUNK, CHUNK * RANK)),
                        np.float32) * np.sqrt(2.0 / (CHUNK * RANK)))
      for r in range(RANK):
        m[cch * CHUNK:(cch + 1) * CHUNK,
          r * H + cch * CHUNK:r * H + (cch + 1) * CHUNK] = \
            blk[:, r * CHUNK:(r + 1) * CHUNK]
    return m

  m0, m1 = merge_mat(ks[10]), merge_mat(ks[11])
  bm0, bm1 = bias_vec(ks[12], HR), bias_vec(ks[13], HR)
  wout = np.asarray(jax.random.normal(ks[14], (H,)), np.float32) * np.sqrt(2.0)
  wm, bm = kaiming(ks[15], H, OUT_DIM), bias_vec(ks[16], OUT_DIM)

  # ---- host-side folding (exact linear composition) ----
  w_kqm = wk @ w0 @ m0                          # (D, HR)  linear_k->linear0->merge0
  b_kqm = (bk @ w0 + b0) @ m0 + bm0             # (HR,)
  w_qm = wq @ w1 @ m1                           # (D, HR)  linear_q->linear1->merge1
  b_qm = (bq @ w1 + b1) @ m1 + bm1              # (HR,)

  # permute linear_v columns (g-major) so the transpose(1,2).view shuffle folds
  # into linear_merge: vh_perm[:, g*S+p] = vh[:, p*G+g].
  perm = np.empty(H, np.int64)
  for g in range(G):
    for p in range(S):
      perm[g * S + p] = p * G + g
  wv_p, bv_p = wv[:, perm], bv[perm]

  consts = np.zeros((8, CONST_COLS), np.float32)
  consts[:, C_WK:C_WK + HR] = w_kqm
  consts[:, C_WVQ:C_WVQ + H] = wv_p
  consts[:, C_WVQ + H:C_WVQ + H + HR] = w_qm
  consts[:OUT_DIM, C_WMT:C_WMT + H] = wm.T
  consts[0, C_BK:C_BK + HR] = b_kqm
  consts[0, C_BVQ:C_BVQ + H] = bv_p
  consts[0, C_BVQ + H:C_BVQ + H + HR] = b_qm
  consts[0, C_WOUT:C_WOUT + H] = wout
  consts[0, C_BM:C_BM + OUT_DIM] = bm
  consts[0, C_BOUT] = 0.0                        # block linear_out bias
  # BatchNorm1d(output_dim) eval with fresh stats: gamma=1, beta=0, mean=0, var=1
  consts[:S, C_BNS] = 1.0 / np.sqrt(1.0 + BN_EPS)
  consts[:S, C_BNH] = 0.0
  return jnp.asarray(consts)


# ---------------------------------- main ------------------------------------
if __name__ == "__main__":
  key = jax.random.PRNGKey(0)
  kxi, kxt, kp = jax.random.split(key, 3)
  xi = jax.random.normal(kxi, (B, S, D), jnp.float32)   # "image" stream
  xt = jax.random.normal(kxt, (B, S, D), jnp.float32)   # "text"  stream
  consts = init_consts(kp)

  u = baf_forward(xi, xt, consts)
  u = jax.block_until_ready(u)

  assert u.shape == (B, S, OUT_DIM), u.shape
  assert bool(jnp.all(jnp.isfinite(u)))
  print("KERNEL_OK")
</pallas_src>

<mosaic_0001>
module attributes {stable_mosaic.version = 11 : i64} {
  func.func @_baf_fused_kernel(%arg0: i32, %arg1: memref<32x8xf32, #tpu.memory_space<vmem>>, %arg2: memref<8x640xf32, #tpu.memory_space<vmem>>, %arg3: memref<16x8xf32, #tpu.memory_space<vmem>>) attributes {dimension_semantics = [#tpu.dimension_semantics<arbitrary>], iteration_bounds = array<i64: 1>, scalar_prefetch = 0 : i64, scratch_operands = 0 : i64, tpu.core_type = #tpu.core_type<tc>, window_params = [{pipeline_mode = #tpu.pipeline_mode<synchronous>, transform_indices = @transform_0, window_bounds = array<i64: 32, 8>}, {pipeline_mode = #tpu.pipeline_mode<synchronous>, transform_indices = @transform_1, window_bounds = array<i64: 8, 640>}, {pipeline_mode = #tpu.pipeline_mode<synchronous>, transform_indices = @transform_2, window_bounds = array<i64: 16, 8>}]} {
    %c0 = arith.constant 0 : index
    %c0_0 = arith.constant 0 : index
    %0 = vector.load %arg1[%c0, %c0_0] : memref<32x8xf32, #tpu.memory_space<vmem>>, vector<32x8xf32>
    %c0_1 = arith.constant 0 : index
    %c0_2 = arith.constant 0 : index
    %1 = vector.load %arg2[%c0_1, %c0_2] : memref<8x640xf32, #tpu.memory_space<vmem>>, vector<8x640xf32>
    %2 = vector.extract_strided_slice %1 {offsets = [0, 0], sizes = [8, 64], strides = [1, 1]} : vector<8x640xf32> to vector<8x64xf32>
    %3 = vector.extract_strided_slice %1 {offsets = [0, 128], sizes = [8, 96], strides = [1, 1]} : vector<8x640xf32> to vector<8x96xf32>
    %4 = vector.extract_strided_slice %1 {offsets = [0, 256], sizes = [8, 32], strides = [1, 1]} : vector<8x640xf32> to vector<8x32xf32>
    %5 = vector.extract_strided_slice %1 {offsets = [0, 384], sizes = [1, 64], strides = [1, 1]} : vector<8x640xf32> to vector<1x64xf32>
    %6 = vector.extract_strided_slice %1 {offsets = [0, 512], sizes = [1, 96], strides = [1, 1]} : vector<8x640xf32> to vector<1x96xf32>
    %7 = vector.extract_strided_slice %1 {offsets = [0, 608], sizes = [1, 32], strides = [1, 1]} : vector<8x640xf32> to vector<1x32xf32>
    %8 = vector.shape_cast %7 : vector<1x32xf32> to vector<1x1x32xf32>
    %9 = vector.extract_strided_slice %1 {offsets = [0, 448], sizes = [1, 8], strides = [1, 1]} : vector<8x640xf32> to vector<1x8xf32>
    %10 = vector.extract_strided_slice %1 {offsets = [0, 456], sizes = [1, 1], strides = [1, 1]} : vector<8x640xf32> to vector<1x1xf32>
    %11 = vector.extract_strided_slice %1 {offsets = [0, 464], sizes = [8, 1], strides = [1, 1]} : vector<8x640xf32> to vector<8x1xf32>
    %12 = vector.extract_strided_slice %1 {offsets = [0, 472], sizes = [8, 1], strides = [1, 1]} : vector<8x640xf32> to vector<8x1xf32>
    %13 = vector.extract_strided_slice %0 {offsets = [0, 0], sizes = [16, 8], strides = [1, 1]} : vector<32x8xf32> to vector<16x8xf32>
    %14 = vector.extract_strided_slice %0 {offsets = [16, 0], sizes = [16, 8], strides = [1, 1]} : vector<32x8xf32> to vector<16x8xf32>
    %cst = arith.constant dense<0.000000e+00> : vector<16x64xf32>
    %15 = tpu.matmul %13, %2, %cst {dimension_numbers = #tpu.dot_dimension_numbers<[1], [0], [0], [1], [0, 0, 1, 1], [], []>} : vector<16x8xf32>, vector<8x64xf32>, vector<16x64xf32> -> vector<16x64xf32>
    %16 = vector.broadcast %5 : vector<1x64xf32> to vector<16x64xf32>
    %17 = arith.addf %15, %16 : vector<16x64xf32>
    %cst_3 = arith.constant dense<0.000000e+00> : vector<16x96xf32>
    %18 = tpu.matmul %14, %3, %cst_3 {dimension_numbers = #tpu.dot_dimension_numbers<[1], [0], [0], [1], [0, 0, 1, 1], [], []>} : vector<16x8xf32>, vector<8x96xf32>, vector<16x96xf32> -> vector<16x96xf32>
    %19 = vector.broadcast %6 : vector<1x96xf32> to vector<16x96xf32>
    %20 = arith.addf %18, %19 : vector<16x96xf32>
    %21 = vector.extract_strided_slice %20 {offsets = [0, 0], sizes = [8, 32], strides = [1, 1]} : vector<16x96xf32> to vector<8x32xf32>
    %22 = vector.extract_strided_slice %20 {offsets = [0, 32], sizes = [8, 64], strides = [1, 1]} : vector<16x96xf32> to vector<8x64xf32>
    %23 = vector.extract_strided_slice %17 {offsets = [0, 0], sizes = [8, 64], strides = [1, 1]} : vector<16x64xf32> to vector<8x64xf32>
    %24 = vector.extract_strided_slice %22 {offsets = [0, 0], sizes = [8, 32], strides = [1, 1]} : vector<8x64xf32> to vector<8x32xf32>
    %25 = vector.extract_strided_slice %23 {offsets = [0, 0], sizes = [8, 32], strides = [1, 1]} : vector<8x64xf32> to vector<8x32xf32>
    %26 = vector.shape_cast %24 : vector<8x32xf32> to vector<8x1x32xf32>
    %27 = vector.shape_cast %25 : vector<8x32xf32> to vector<1x8x32xf32>
    %28 = vector.broadcast %26 : vector<8x1x32xf32> to vector<8x8x32xf32>
    %29 = vector.broadcast %27 : vector<1x8x32xf32> to vector<8x8x32xf32>
    %30 = arith.mulf %28, %29 : vector<8x8x32xf32>
    %31 = vector.extract_strided_slice %22 {offsets = [0, 32], sizes = [8, 32], strides = [1, 1]} : vector<8x64xf32> to vector<8x32xf32>
    %32 = vector.extract_strided_slice %23 {offsets = [0, 32], sizes = [8, 32], strides = [1, 1]} : vector<8x64xf32> to vector<8x32xf32>
    %33 = vector.shape_cast %31 : vector<8x32xf32> to vector<8x1x32xf32>
    %34 = vector.shape_cast %32 : vector<8x32xf32> to vector<1x8x32xf32>
    %35 = vector.broadcast %33 : vector<8x1x32xf32> to vector<8x8x32xf32>
    %36 = vector.broadcast %34 : vector<1x8x32xf32> to vector<8x8x32xf32>
    %37 = arith.mulf %35, %36 : vector<8x8x32xf32>
    %38 = arith.addf %30, %37 : vector<8x8x32xf32>
    %39 = math.absf %38 : vector<8x8x32xf32>
    %cst_4 = arith.constant 1.000000e-24 : f32
    %40 = vector.broadcast %cst_4 : f32 to vector<8x8x32xf32>
    %41 = arith.maximumf %39, %40 : vector<8x8x32xf32>
    %42 = math.rsqrt %41 : vector<8x8x32xf32>
    %43 = arith.mulf %38, %42 : vector<8x8x32xf32>
    %44 = vector.extract_strided_slice %43 {offsets = [0, 0, 0], sizes = [8, 8, 8], strides = [1, 1, 1]} : vector<8x8x32xf32> to vector<8x8x8xf32>
    %45 = vector.extract_strided_slice %8 {offsets = [0, 0, 0], sizes = [1, 1, 8], strides = [1, 1, 1]} : vector<1x1x32xf32> to vector<1x1x8xf32>
    %46 = vector.broadcast %45 : vector<1x1x8xf32> to vector<8x8x8xf32>
    %47 = arith.mulf %44, %46 : vector<8x8x8xf32>
    %cst_5 = arith.constant dense<0.000000e+00> : vector<8x8xf32>
    %48 = vector.multi_reduction <add>, %47, %cst_5 [2] : vector<8x8x8xf32> to vector<8x8xf32>
    %49 = vector.extract_strided_slice %39 {offsets = [0, 0, 0], sizes = [8, 8, 8], strides = [1, 1, 1]} : vector<8x8x32xf32> to vector<8x8x8xf32>
    %cst_6 = arith.constant dense<0.000000e+00> : vector<8x8xf32>
    %50 = vector.multi_reduction <add>, %49, %cst_6 [2] : vector<8x8x8xf32> to vector<8x8xf32>
    %cst_7 = arith.constant 1.000000e-24 : f32
    %51 = vector.broadcast %cst_7 : f32 to vector<8x8xf32>
    %52 = arith.maximumf %50, %51 : vector<8x8xf32>
    %53 = math.rsqrt %52 : vector<8x8xf32>
    %54 = arith.mulf %48, %53 : vector<8x8xf32>
    %55 = vector.extract_strided_slice %43 {offsets = [0, 0, 8], sizes = [8, 8, 8], strides = [1, 1, 1]} : vector<8x8x32xf32> to vector<8x8x8xf32>
    %56 = vector.extract_strided_slice %8 {offsets = [0, 0, 8], sizes = [1, 1, 8], strides = [1, 1, 1]} : vector<1x1x32xf32> to vector<1x1x8xf32>
    %57 = vector.broadcast %56 : vector<1x1x8xf32> to vector<8x8x8xf32>
    %58 = arith.mulf %55, %57 : vector<8x8x8xf32>
    %cst_8 = arith.constant dense<0.000000e+00> : vector<8x8xf32>
    %59 = vector.multi_reduction <add>, %58, %cst_8 [2] : vector<8x8x8xf32> to vector<8x8xf32>
    %60 = vector.extract_strided_slice %39 {offsets = [0, 0, 8], sizes = [8, 8, 8], strides = [1, 1, 1]} : vector<8x8x32xf32> to vector<8x8x8xf32>
    %cst_9 = arith.constant dense<0.000000e+00> : vector<8x8xf32>
    %61 = vector.multi_reduction <add>, %60, %cst_9 [2] : vector<8x8x8xf32> to vector<8x8xf32>
    %cst_10 = arith.constant 1.000000e-24 : f32
    %62 = vector.broadcast %cst_10 : f32 to vector<8x8xf32>
    %63 = arith.maximumf %61, %62 : vector<8x8xf32>
    %64 = math.rsqrt %63 : vector<8x8xf32>
    %65 = arith.mulf %59, %64 : vector<8x8xf32>
    %66 = arith.addf %54, %65 : vector<8x8xf32>
    %67 = vector.extract_strided_slice %43 {offsets = [0, 0, 16], sizes = [8, 8, 8], strides = [1, 1, 1]} : vector<8x8x32xf32> to vector<8x8x8xf32>
    %68 = vector.extract_strided_slice %8 {offsets = [0, 0, 16], sizes = [1, 1, 8], strides = [1, 1, 1]} : vector<1x1x32xf32> to vector<1x1x8xf32>
    %69 = vector.broadcast %68 : vector<1x1x8xf32> to vector<8x8x8xf32>
    %70 = arith.mulf %67, %69 : vector<8x8x8xf32>
    %cst_11 = arith.constant dense<0.000000e+00> : vector<8x8xf32>
    %71 = vector.multi_reduction <add>, %70, %cst_11 [2] : vector<8x8x8xf32> to vector<8x8xf32>
    %72 = vector.extract_strided_slice %39 {offsets = [0, 0, 16], sizes = [8, 8, 8], strides = [1, 1, 1]} : vector<8x8x32xf32> to vector<8x8x8xf32>
    %cst_12 = arith.constant dense<0.000000e+00> : vector<8x8xf32>
    %73 = vector.multi_reduction <add>, %72, %cst_12 [2] : vector<8x8x8xf32> to vector<8x8xf32>
    %cst_13 = arith.constant 1.000000e-24 : f32
    %74 = vector.broadcast %cst_13 : f32 to vector<8x8xf32>
    %75 = arith.maximumf %73, %74 : vector<8x8xf32>
    %76 = math.rsqrt %75 : vector<8x8xf32>
    %77 = arith.mulf %71, %76 : vector<8x8xf32>
    %78 = arith.addf %66, %77 : vector<8x8xf32>
    %79 = vector.extract_strided_slice %43 {offsets = [0, 0, 24], sizes = [8, 8, 8], strides = [1, 1, 1]} : vector<8x8x32xf32> to vector<8x8x8xf32>
    %80 = vector.extract_strided_slice %8 {offsets = [0, 0, 24], sizes = [1, 1, 8], strides = [1, 1, 1]} : vector<1x1x32xf32> to vector<1x1x8xf32>
    %81 = vector.broadcast %80 : vector<1x1x8xf32> to vector<8x8x8xf32>
    %82 = arith.mulf %79, %81 : vector<8x8x8xf32>
    %cst_14 = arith.constant dense<0.000000e+00> : vector<8x8xf32>
    %83 = vector.multi_reduction <add>, %82, %cst_14 [2] : vector<8x8x8xf32> to vector<8x8xf32>
    %84 = vector.extract_strided_slice %39 {offsets = [0, 0, 24], sizes = [8, 8, 8], strides = [1, 1, 1]} : vector<8x8x32xf32> to vector<8x8x8xf32>
    %cst_15 = arith.constant dense<0.000000e+00> : vector<8x8xf32>
    %85 = vector.multi_reduction <add>, %84, %cst_15 [2] : vector<8x8x8xf32> to vector<8x8xf32>
    %cst_16 = arith.constant 1.000000e-24 : f32
    %86 = vector.broadcast %cst_16 : f32 to vector<8x8xf32>
    %87 = arith.maximumf %85, %86 : vector<8x8xf32>
    %88 = math.rsqrt %87 : vector<8x8xf32>
    %89 = arith.mulf %83, %88 : vector<8x8xf32>
    %90 = arith.addf %78, %89 : vector<8x8xf32>
    %91 = vector.broadcast %10 : vector<1x1xf32> to vector<8x8xf32>
    %92 = arith.addf %90, %91 : vector<8x8xf32>
    %cst_17 = arith.constant dense<0xFF800000> : vector<8xf32>
    %93 = vector.multi_reduction <maximumf>, %92, %cst_17 [1] : vector<8x8xf32> to vector<8xf32>
    %94 = vector.shape_cast %93 : vector<8xf32> to vector<8x1xf32>
    %95 = vector.broadcast %94 : vector<8x1xf32> to vector<8x8xf32>
    %96 = arith.subf %92, %95 : vector<8x8xf32>
    %97 = math.exp %96 : vector<8x8xf32>
    %cst_18 = arith.constant dense<0.000000e+00> : vector<8xf32>
    %98 = vector.multi_reduction <add>, %97, %cst_18 [1] : vector<8x8xf32> to vector<8xf32>
    %99 = vector.shape_cast %98 : vector<8xf32> to vector<8x1xf32>
    %100 = tpu.reciprocal %99 {approx = true} : vector<8x1xf32> -> vector<8x1xf32>
    %101 = vector.broadcast %100 : vector<8x1xf32> to vector<8x8xf32>
    %102 = arith.mulf %97, %101 : vector<8x8xf32>
    %cst_19 = arith.constant dense<0.000000e+00> : vector<8x32xf32>
    %103 = tpu.matmul %102, %21, %cst_19 {dimension_numbers = #tpu.dot_dimension_numbers<[1], [0], [0], [1], [0, 0, 1, 1], [], []>} : vector<8x8xf32>, vector<8x32xf32>, vector<8x32xf32> -> vector<8x32xf32>
    %104 = vector.extract_strided_slice %4 {offsets = [0, 0], sizes = [8, 8], strides = [1, 1]} : vector<8x32xf32> to vector<8x8xf32>
    %105 = vector.extract_strided_slice %103 {offsets = [0, 0], sizes = [8, 8], strides = [1, 1]} : vector<8x32xf32> to vector<8x8xf32>
    %cst_20 = arith.constant dense<0.000000e+00> : vector<8x8xf32>
    %106 = tpu.matmul %104, %105, %cst_20 {dimension_numbers = #tpu.dot_dimension_numbers<[1], [0], [0], [1], [0, 0, 1, 1], [], []>} : vector<8x8xf32>, vector<8x8xf32>, vector<8x8xf32> -> vector<8x8xf32>
    %107 = vector.extract_strided_slice %4 {offsets = [0, 8], sizes = [8, 8], strides = [1, 1]} : vector<8x32xf32> to vector<8x8xf32>
    %108 = vector.extract_strided_slice %103 {offsets = [0, 8], sizes = [8, 8], strides = [1, 1]} : vector<8x32xf32> to vector<8x8xf32>
    %cst_21 = arith.constant dense<0.000000e+00> : vector<8x8xf32>
    %109 = tpu.matmul %107, %108, %cst_21 {dimension_numbers = #tpu.dot_dimension_numbers<[1], [0], [0], [1], [0, 0, 1, 1], [], []>} : vector<8x8xf32>, vector<8x8xf32>, vector<8x8xf32> -> vector<8x8xf32>
    %110 = arith.addf %106, %109 : vector<8x8xf32>
    %111 = vector.extract_strided_slice %4 {offsets = [0, 16], sizes = [8, 8], strides = [1, 1]} : vector<8x32xf32> to vector<8x8xf32>
    %112 = vector.extract_strided_slice %103 {offsets = [0, 16], sizes = [8, 8], strides = [1, 1]} : vector<8x32xf32> to vector<8x8xf32>
    %cst_22 = arith.constant dense<0.000000e+00> : vector<8x8xf32>
    %113 = tpu.matmul %111, %112, %cst_22 {dimension_numbers = #tpu.dot_dimension_numbers<[1], [0], [0], [1], [0, 0, 1, 1], [], []>} : vector<8x8xf32>, vector<8x8xf32>, vector<8x8xf32> -> vector<8x8xf32>
    %114 = arith.addf %110, %113 : vector<8x8xf32>
    %115 = vector.extract_strided_slice %4 {offsets = [0, 24], sizes = [8, 8], strides = [1, 1]} : vector<8x32xf32> to vector<8x8xf32>
    %116 = vector.extract_strided_slice %103 {offsets = [0, 24], sizes = [8, 8], strides = [1, 1]} : vector<8x32xf32> to vector<8x8xf32>
    %cst_23 = arith.constant dense<0.000000e+00> : vector<8x8xf32>
    %117 = tpu.matmul %115, %116, %cst_23 {dimension_numbers = #tpu.dot_dimension_numbers<[1], [0], [0], [1], [0, 0, 1, 1], [], []>} : vector<8x8xf32>, vector<8x8xf32>, vector<8x8xf32> -> vector<8x8xf32>
    %118 = arith.addf %114, %117 : vector<8x8xf32>
    %119 = tpu.transpose %118, [1, 0] : vector<8x8xf32> -> vector<8x8xf32>
    %120 = vector.broadcast %9 : vector<1x8xf32> to vector<8x8xf32>
    %121 = arith.addf %119, %120 : vector<8x8xf32>
    %122 = vector.broadcast %11 : vector<8x1xf32> to vector<8x8xf32>
    %123 = arith.mulf %121, %122 : vector<8x8xf32>
    %124 = vector.broadcast %12 : vector<8x1xf32> to vector<8x8xf32>
    %125 = arith.addf %123, %124 : vector<8x8xf32>
    %cst_24 = arith.constant 0.000000e+00 : f32
    %126 = vector.broadcast %cst_24 : f32 to vector<8x8xf32>
    %127 = arith.maximumf %125, %126 : vector<8x8xf32>
    %128 = vector.extract_strided_slice %14 {offsets = [0, 0], sizes = [8, 8], strides = [1, 1]} : vector<16x8xf32> to vector<8x8xf32>
    %129 = arith.addf %127, %128 : vector<8x8xf32>
    %c0_25 = arith.constant 0 : index
    %c0_26 = arith.constant 0 : index
    %130 = vector.load %arg3[%c0_25, %c0_26] : memref<16x8xf32, #tpu.memory_space<vmem>>, vector<8x8xf32>
    tpu.vector_store %arg3[%c0_25, %c0_26], %129 {strides = array<i32>} : memref<16x8xf32, #tpu.memory_space<vmem>>, vector<8x8xf32>,
    %131 = vector.extract_strided_slice %20 {offsets = [8, 0], sizes = [8, 32], strides = [1, 1]} : vector<16x96xf32> to vector<8x32xf32>
    %132 = vector.extract_strided_slice %20 {offsets = [8, 32], sizes = [8, 64], strides = [1, 1]} : vector<16x96xf32> to vector<8x64xf32>
    %133 = vector.extract_strided_slice %17 {offsets = [8, 0], sizes = [8, 64], strides = [1, 1]} : vector<16x64xf32> to vector<8x64xf32>
    %134 = vector.extract_strided_slice %132 {offsets = [0, 0], sizes = [8, 32], strides = [1, 1]} : vector<8x64xf32> to vector<8x32xf32>
    %135 = vector.extract_strided_slice %133 {offsets = [0, 0], sizes = [8, 32], strides = [1, 1]} : vector<8x64xf32> to vector<8x32xf32>
    %136 = vector.shape_cast %134 : vector<8x32xf32> to vector<8x1x32xf32>
    %137 = vector.shape_cast %135 : vector<8x32xf32> to vector<1x8x32xf32>
    %138 = vector.broadcast %136 : vector<8x1x32xf32> to vector<8x8x32xf32>
    %139 = vector.broadcast %137 : vector<1x8x32xf32> to vector<8x8x32xf32>
    %140 = arith.mulf %138, %139 : vector<8x8x32xf32>
    %141 = vector.extract_strided_slice %132 {offsets = [0, 32], sizes = [8, 32], strides = [1, 1]} : vector<8x64xf32> to vector<8x32xf32>
    %142 = vector.extract_strided_slice %133 {offsets = [0, 32], sizes = [8, 32], strides = [1, 1]} : vector<8x64xf32> to vector<8x32xf32>
    %143 = vector.shape_cast %141 : vector<8x32xf32> to vector<8x1x32xf32>
    %144 = vector.shape_cast %142 : vector<8x32xf32> to vector<1x8x32xf32>
    %145 = vector.broadcast %143 : vector<8x1x32xf32> to vector<8x8x32xf32>
    %146 = vector.broadcast %144 : vector<1x8x32xf32> to vector<8x8x32xf32>
    %147 = arith.mulf %145, %146 : vector<8x8x32xf32>
    %148 = arith.addf %140, %147 : vector<8x8x32xf32>
    %149 = math.absf %148 : vector<8x8x32xf32>
    %cst_27 = arith.constant 1.000000e-24 : f32
    %150 = vector.broadcast %cst_27 : f32 to vector<8x8x32xf32>
    %151 = arith.maximumf %149, %150 : vector<8x8x32xf32>
    %152 = math.rsqrt %151 : vector<8x8x32xf32>
    %153 = arith.mulf %148, %152 : vector<8x8x32xf32>
    %154 = vector.extract_strided_slice %153 {offsets = [0, 0, 0], sizes = [8, 8, 8], strides = [1, 1, 1]} : vector<8x8x32xf32> to vector<8x8x8xf32>
    %155 = vector.extract_strided_slice %8 {offsets = [0, 0, 0], sizes = [1, 1, 8], strides = [1, 1, 1]} : vector<1x1x32xf32> to vector<1x1x8xf32>
    %156 = vector.broadcast %155 : vector<1x1x8xf32> to vector<8x8x8xf32>
    %157 = arith.mulf %154, %156 : vector<8x8x8xf32>
    %cst_28 = arith.constant dense<0.000000e+00> : vector<8x8xf32>
    %158 = vector.multi_reduction <add>, %157, %cst_28 [2] : vector<8x8x8xf32> to vector<8x8xf32>
    %159 = vector.extract_strided_slice %149 {offsets = [0, 0, 0], sizes = [8, 8, 8], strides = [1, 1, 1]} : vector<8x8x32xf32> to vector<8x8x8xf32>
    %cst_29 = arith.constant dense<0.000000e+00> : vector<8x8xf32>
    %160 = vector.multi_reduction <add>, %159, %cst_29 [2] : vector<8x8x8xf32> to vector<8x8xf32>
    %cst_30 = arith.constant 1.000000e-24 : f32
    %161 = vector.broadcast %cst_30 : f32 to vector<8x8xf32>
    %162 = arith.maximumf %160, %161 : vector<8x8xf32>
    %163 = math.rsqrt %162 : vector<8x8xf32>
    %164 = arith.mulf %158, %163 : vector<8x8xf32>
    %165 = vector.extract_strided_slice %153 {offsets = [0, 0, 8], sizes = [8, 8, 8], strides = [1, 1, 1]} : vector<8x8x32xf32> to vector<8x8x8xf32>
    %166 = vector.extract_strided_slice %8 {offsets = [0, 0, 8], sizes = [1, 1, 8], strides = [1, 1, 1]} : vector<1x1x32xf32> to vector<1x1x8xf32>
    %167 = vector.broadcast %166 : vector<1x1x8xf32> to vector<8x8x8xf32>
    %168 = arith.mulf %165, %167 : vector<8x8x8xf32>
    %cst_31 = arith.constant dense<0.000000e+00> : vector<8x8xf32>
    %169 = vector.multi_reduction <add>, %168, %cst_31 [2] : vector<8x8x8xf32> to vector<8x8xf32>
    %170 = vector.extract_strided_slice %149 {offsets = [0, 0, 8], sizes = [8, 8, 8], strides = [1, 1, 1]} : vector<8x8x32xf32> to vector<8x8x8xf32>
    %cst_32 = arith.constant dense<0.000000e+00> : vector<8x8xf32>
    %171 = vector.multi_reduction <add>, %170, %cst_32 [2] : vector<8x8x8xf32> to vector<8x8xf32>
    %cst_33 = arith.constant 1.000000e-24 : f32
    %172 = vector.broadcast %cst_33 : f32 to vector<8x8xf32>
    %173 = arith.maximumf %171, %172 : vector<8x8xf32>
    %174 = math.rsqrt %173 : vector<8x8xf32>
    %175 = arith.mulf %169, %174 : vector<8x8xf32>
    %176 = arith.addf %164, %175 : vector<8x8xf32>
    %177 = vector.extract_strided_slice %153 {offsets = [0, 0, 16], sizes = [8, 8, 8], strides = [1, 1, 1]} : vector<8x8x32xf32> to vector<8x8x8xf32>
    %178 = vector.extract_strided_slice %8 {offsets = [0, 0, 16], sizes = [1, 1, 8], strides = [1, 1, 1]} : vector<1x1x32xf32> to vector<1x1x8xf32>
    %179 = vector.broadcast %178 : vector<1x1x8xf32> to vector<8x8x8xf32>
    %180 = arith.mulf %177, %179 : vector<8x8x8xf32>
    %cst_34 = arith.constant dense<0.000000e+00> : vector<8x8xf32>
    %181 = vector.multi_reduction <add>, %180, %cst_34 [2] : vector<8x8x8xf32> to vector<8x8xf32>
    %182 = vector.extract_strided_slice %149 {offsets = [0, 0, 16], sizes = [8, 8, 8], strides = [1, 1, 1]} : vector<8x8x32xf32> to vector<8x8x8xf32>
    %cst_35 = arith.constant dense<0.000000e+00> : vector<8x8xf32>
    %183 = vector.multi_reduction <add>, %182, %cst_35 [2] : vector<8x8x8xf32> to vector<8x8xf32>
    %cst_36 = arith.constant 1.000000e-24 : f32
    %184 = vector.broadcast %cst_36 : f32 to vector<8x8xf32>
    %185 = arith.maximumf %183, %184 : vector<8x8xf32>
    %186 = math.rsqrt %185 : vector<8x8xf32>
    %187 = arith.mulf %181, %186 : vector<8x8xf32>
    %188 = arith.addf %176, %187 : vector<8x8xf32>
    %189 = vector.extract_strided_slice %153 {offsets = [0, 0, 24], sizes = [8, 8, 8], strides = [1, 1, 1]} : vector<8x8x32xf32> to vector<8x8x8xf32>
    %190 = vector.extract_strided_slice %8 {offsets = [0, 0, 24], sizes = [1, 1, 8], strides = [1, 1, 1]} : vector<1x1x32xf32> to vector<1x1x8xf32>
    %191 = vector.broadcast %190 : vector<1x1x8xf32> to vector<8x8x8xf32>
    %192 = arith.mulf %189, %191 : vector<8x8x8xf32>
    %cst_37 = arith.constant dense<0.000000e+00> : vector<8x8xf32>
    %193 = vector.multi_reduction <add>, %192, %cst_37 [2] : vector<8x8x8xf32> to vector<8x8xf32>
    %194 = vector.extract_strided_slice %149 {offsets = [0, 0, 24], sizes = [8, 8, 8], strides = [1, 1, 1]} : vector<8x8x32xf32> to vector<8x8x8xf32>
    %cst_38 = arith.constant dense<0.000000e+00> : vector<8x8xf32>
    %195 = vector.multi_reduction <add>, %194, %cst_38 [2] : vector<8x8x8xf32> to vector<8x8xf32>
    %cst_39 = arith.constant 1.000000e-24 : f32
    %196 = vector.broadcast %cst_39 : f32 to vector<8x8xf32>
    %197 = arith.maximumf %195, %196 : vector<8x8xf32>
    %198 = math.rsqrt %197 : vector<8x8xf32>
    %199 = arith.mulf %193, %198 : vector<8x8xf32>
    %200 = arith.addf %188, %199 : vector<8x8xf32>
    %201 = vector.broadcast %10 : vector<1x1xf32> to vector<8x8xf32>
    %202 = arith.addf %200, %201 : vector<8x8xf32>
    %cst_40 = arith.constant dense<0xFF800000> : vector<8xf32>
    %203 = vector.multi_reduction <maximumf>, %202, %cst_40 [1] : vector<8x8xf32> to vector<8xf32>
    %204 = vector.shape_cast %203 : vector<8xf32> to vector<8x1xf32>
    %205 = vector.broadcast %204 : vector<8x1xf32> to vector<8x8xf32>
    %206 = arith.subf %202, %205 : vector<8x8xf32>
    %207 = math.exp %206 : vector<8x8xf32>
    %cst_41 = arith.constant dense<0.000000e+00> : vector<8xf32>
    %208 = vector.multi_reduction <add>, %207, %cst_41 [1] : vector<8x8xf32> to vector<8xf32>
    %209 = vector.shape_cast %208 : vector<8xf32> to vector<8x1xf32>
    %210 = tpu.reciprocal %209 {approx = true} : vector<8x1xf32> -> vector<8x1xf32>
    %211 = vector.broadcast %210 : vector<8x1xf32> to vector<8x8xf32>
    %212 = arith.mulf %207, %211 : vector<8x8xf32>
    %cst_42 = arith.constant dense<0.000000e+00> : vector<8x32xf32>
    %213 = tpu.matmul %212, %131, %cst_42 {dimension_numbers = #tpu.dot_dimension_numbers<[1], [0], [0], [1], [0, 0, 1, 1], [], []>} : vector<8x8xf32>, vector<8x32xf32>, vector<8x32xf32> -> vector<8x32xf32>
    %214 = vector.extract_strided_slice %4 {offsets = [0, 0], sizes = [8, 8], strides = [1, 1]} : vector<8x32xf32> to vector<8x8xf32>
    %215 = vector.extract_strided_slice %213 {offsets = [0, 0], sizes = [8, 8], strides = [1, 1]} : vector<8x32xf32> to vector<8x8xf32>
    %cst_43 = arith.constant dense<0.000000e+00> : vector<8x8xf32>
    %216 = tpu.matmul %214, %215, %cst_43 {dimension_numbers = #tpu.dot_dimension_numbers<[1], [0], [0], [1], [0, 0, 1, 1], [], []>} : vector<8x8xf32>, vector<8x8xf32>, vector<8x8xf32> -> vector<8x8xf32>
    %217 = vector.extract_strided_slice %4 {offsets = [0, 8], sizes = [8, 8], strides = [1, 1]} : vector<8x32xf32> to vector<8x8xf32>
    %218 = vector.extract_strided_slice %213 {offsets = [0, 8], sizes = [8, 8], strides = [1, 1]} : vector<8x32xf32> to vector<8x8xf32>
    %cst_44 = arith.constant dense<0.000000e+00> : vector<8x8xf32>
    %219 = tpu.matmul %217, %218, %cst_44 {dimension_numbers = #tpu.dot_dimension_numbers<[1], [0], [0], [1], [0, 0, 1, 1], [], []>} : vector<8x8xf32>, vector<8x8xf32>, vector<8x8xf32> -> vector<8x8xf32>
    %220 = arith.addf %216, %219 : vector<8x8xf32>
    %221 = vector.extract_strided_slice %4 {offsets = [0, 16], sizes = [8, 8], strides = [1, 1]} : vector<8x32xf32> to vector<8x8xf32>
    %222 = vector.extract_strided_slice %213 {offsets = [0, 16], sizes = [8, 8], strides = [1, 1]} : vector<8x32xf32> to vector<8x8xf32>
    %cst_45 = arith.constant dense<0.000000e+00> : vector<8x8xf32>
    %223 = tpu.matmul %221, %222, %cst_45 {dimension_numbers = #tpu.dot_dimension_numbers<[1], [0], [0], [1], [0, 0, 1, 1], [], []>} : vector<8x8xf32>, vector<8x8xf32>, vector<8x8xf32> -> vector<8x8xf32>
    %224 = arith.addf %220, %223 : vector<8x8xf32>
    %225 = vector.extract_strided_slice %4 {offsets = [0, 24], sizes = [8, 8], strides = [1, 1]} : vector<8x32xf32> to vector<8x8xf32>
    %226 = vector.extract_strided_slice %213 {offsets = [0, 24], sizes = [8, 8], strides = [1, 1]} : vector<8x32xf32> to vector<8x8xf32>
    %cst_46 = arith.constant dense<0.000000e+00> : vector<8x8xf32>
    %227 = tpu.matmul %225, %226, %cst_46 {dimension_numbers = #tpu.dot_dimension_numbers<[1], [0], [0], [1], [0, 0, 1, 1], [], []>} : vector<8x8xf32>, vector<8x8xf32>, vector<8x8xf32> -> vector<8x8xf32>
    %228 = arith.addf %224, %227 : vector<8x8xf32>
    %229 = tpu.transpose %228, [1, 0] : vector<8x8xf32> -> vector<8x8xf32>
    %230 = vector.broadcast %9 : vector<1x8xf32> to vector<8x8xf32>
    %231 = arith.addf %229, %230 : vector<8x8xf32>
    %232 = vector.broadcast %11 : vector<8x1xf32> to vector<8x8xf32>
    %233 = arith.mulf %231, %232 : vector<8x8xf32>
    %234 = vector.broadcast %12 : vector<8x1xf32> to vector<8x8xf32>
    %235 = arith.addf %233, %234 : vector<8x8xf32>
    %cst_47 = arith.constant 0.000000e+00 : f32
    %236 = vector.broadcast %cst_47 : f32 to vector<8x8xf32>
    %237 = arith.maximumf %235, %236 : vector<8x8xf32>
    %238 = vector.extract_strided_slice %14 {offsets = [8, 0], sizes = [8, 8], strides = [1, 1]} : vector<16x8xf32> to vector<8x8xf32>
    %239 = arith.addf %237, %238 : vector<8x8xf32>
    %c8 = arith.constant 8 : index
    %c0_48 = arith.constant 0 : index
    %240 = vector.load %arg3[%c8, %c0_48] : memref<16x8xf32, #tpu.memory_space<vmem>>, vector<8x8xf32>
    tpu.vector_store %arg3[%c8, %c0_48], %239 {strides = array<i32>} : memref<16x8xf32, #tpu.memory_space<vmem>>, vector<8x8xf32>,
    %c0_49 = arith.constant 0 : index
    %c0_50 = arith.constant 0 : index
    %241 = vector.load %arg3[%c0_49, %c0_50] : memref<16x8xf32, #tpu.memory_space<vmem>>, vector<16x8xf32>
    %cst_51 = arith.constant dense<0.000000e+00> : vector<16x96xf32>
    %242 = tpu.matmul %241, %3, %cst_51 {dimension_numbers = #tpu.dot_dimension_numbers<[1], [0], [0], [1], [0, 0, 1, 1], [], []>} : vector<16x8xf32>, vector<8x96xf32>, vector<16x96xf32> -> vector<16x96xf32>
    %243 = vector.broadcast %6 : vector<1x96xf32> to vector<16x96xf32>
    %244 = arith.addf %242, %243 : vector<16x96xf32>
    %245 = vector.extract_strided_slice %244 {offsets = [0, 0], sizes = [8, 32], strides = [1, 1]} : vector<16x96xf32> to vector<8x32xf32>
    %246 = vector.extract_strided_slice %244 {offsets = [0, 32], sizes = [8, 64], strides = [1, 1]} : vector<16x96xf32> to vector<8x64xf32>
    %247 = vector.extract_strided_slice %17 {offsets = [0, 0], sizes = [8, 64], strides = [1, 1]} : vector<16x64xf32> to vector<8x64xf32>
    %248 = vector.extract_strided_slice %246 {offsets = [0, 0], sizes = [8, 32], strides = [1, 1]} : vector<8x64xf32> to vector<8x32xf32>
    %249 = vector.extract_strided_slice %247 {offsets = [0, 0], sizes = [8, 32], strides = [1, 1]} : vector<8x64xf32> to vector<8x32xf32>
    %250 = vector.shape_cast %248 : vector<8x32xf32> to vector<8x1x32xf32>
    %251 = vector.shape_cast %249 : vector<8x32xf32> to vector<1x8x32xf32>
    %252 = vector.broadcast %250 : vector<8x1x32xf32> to vector<8x8x32xf32>
    %253 = vector.broadcast %251 : vector<1x8x32xf32> to vector<8x8x32xf32>
    %254 = arith.mulf %252, %253 : vector<8x8x32xf32>
    %255 = vector.extract_strided_slice %246 {offsets = [0, 32], sizes = [8, 32], strides = [1, 1]} : vector<8x64xf32> to vector<8x32xf32>
    %256 = vector.extract_strided_slice %247 {offsets = [0, 32], sizes = [8, 32], strides = [1, 1]} : vector<8x64xf32> to vector<8x32xf32>
    %257 = vector.shape_cast %255 : vector<8x32xf32> to vector<8x1x32xf32>
    %258 = vector.shape_cast %256 : vector<8x32xf32> to vector<1x8x32xf32>
    %259 = vector.broadcast %257 : vector<8x1x32xf32> to vector<8x8x32xf32>
    %260 = vector.broadcast %258 : vector<1x8x32xf32> to vector<8x8x32xf32>
    %261 = arith.mulf %259, %260 : vector<8x8x32xf32>
    %262 = arith.addf %254, %261 : vector<8x8x32xf32>
    %263 = math.absf %262 : vector<8x8x32xf32>
    %cst_52 = arith.constant 1.000000e-24 : f32
    %264 = vector.broadcast %cst_52 : f32 to vector<8x8x32xf32>
    %265 = arith.maximumf %263, %264 : vector<8x8x32xf32>
    %266 = math.rsqrt %265 : vector<8x8x32xf32>
    %267 = arith.mulf %262, %266 : vector<8x8x32xf32>
    %268 = vector.extract_strided_slice %267 {offsets = [0, 0, 0], sizes = [8, 8, 8], strides = [1, 1, 1]} : vector<8x8x32xf32> to vector<8x8x8xf32>
    %269 = vector.extract_strided_slice %8 {offsets = [0, 0, 0], sizes = [1, 1, 8], strides = [1, 1, 1]} : vector<1x1x32xf32> to vector<1x1x8xf32>
    %270 = vector.broadcast %269 : vector<1x1x8xf32> to vector<8x8x8xf32>
    %271 = arith.mulf %268, %270 : vector<8x8x8xf32>
    %cst_53 = arith.constant dense<0.000000e+00> : vector<8x8xf32>
    %272 = vector.multi_reduction <add>, %271, %cst_53 [2] : vector<8x8x8xf32> to vector<8x8xf32>
    %273 = vector.extract_strided_slice %263 {offsets = [0, 0, 0], sizes = [8, 8, 8], strides = [1, 1, 1]} : vector<8x8x32xf32> to vector<8x8x8xf32>
    %cst_54 = arith.constant dense<0.000000e+00> : vector<8x8xf32>
    %274 = vector.multi_reduction <add>, %273, %cst_54 [2] : vector<8x8x8xf32> to vector<8x8xf32>
    %cst_55 = arith.constant 1.000000e-24 : f32
    %275 = vector.broadcast %cst_55 : f32 to vector<8x8xf32>
    %276 = arith.maximumf %274, %275 : vector<8x8xf32>
    %277 = math.rsqrt %276 : vector<8x8xf32>
    %278 = arith.mulf %272, %277 : vector<8x8xf32>
    %279 = vector.extract_strided_slice %267 {offsets = [0, 0, 8], sizes = [8, 8, 8], strides = [1, 1, 1]} : vector<8x8x32xf32> to vector<8x8x8xf32>
    %280 = vector.extract_strided_slice %8 {offsets = [0, 0, 8], sizes = [1, 1, 8], strides = [1, 1, 1]} : vector<1x1x32xf32> to vector<1x1x8xf32>
    %281 = vector.broadcast %280 : vector<1x1x8xf32> to vector<8x8x8xf32>
    %282 = arith.mulf %279, %281 : vector<8x8x8xf32>
    %cst_56 = arith.constant dense<0.000000e+00> : vector<8x8xf32>
    %283 = vector.multi_reduction <add>, %282, %cst_56 [2] : vector<8x8x8xf32> to vector<8x8xf32>
    %284 = vector.extract_strided_slice %263 {offsets = [0, 0, 8], sizes = [8, 8, 8], strides = [1, 1, 1]} : vector<8x8x32xf32> to vector<8x8x8xf32>
    %cst_57 = arith.constant dense<0.000000e+00> : vector<8x8xf32>
    %285 = vector.multi_reduction <add>, %284, %cst_57 [2] : vector<8x8x8xf32> to vector<8x8xf32>
    %cst_58 = arith.constant 1.000000e-24 : f32
    %286 = vector.broadcast %cst_58 : f32 to vector<8x8xf32>
    %287 = arith.maximumf %285, %286 : vector<8x8xf32>
    %288 = math.rsqrt %287 : vector<8x8xf32>
    %289 = arith.mulf %283, %288 : vector<8x8xf32>
    %290 = arith.addf %278, %289 : vector<8x8xf32>
    %291 = vector.extract_strided_slice %267 {offsets = [0, 0, 16], sizes = [8, 8, 8], strides = [1, 1, 1]} : vector<8x8x32xf32> to vector<8x8x8xf32>
    %292 = vector.extract_strided_slice %8 {offsets = [0, 0, 16], sizes = [1, 1, 8], strides = [1, 1, 1]} : vector<1x1x32xf32> to vector<1x1x8xf32>
    %293 = vector.broadcast %292 : vector<1x1x8xf32> to vector<8x8x8xf32>
    %294 = arith.mulf %291, %293 : vector<8x8x8xf32>
    %cst_59 = arith.constant dense<0.000000e+00> : vector<8x8xf32>
    %295 = vector.multi_reduction <add>, %294, %cst_59 [2] : vector<8x8x8xf32> to vector<8x8xf32>
    %296 = vector.extract_strided_slice %263 {offsets = [0, 0, 16], sizes = [8, 8, 8], strides = [1, 1, 1]} : vector<8x8x32xf32> to vector<8x8x8xf32>
    %cst_60 = arith.constant dense<0.000000e+00> : vector<8x8xf32>
    %297 = vector.multi_reduction <add>, %296, %cst_60 [2] : vector<8x8x8xf32> to vector<8x8xf32>
    %cst_61 = arith.constant 1.000000e-24 : f32
    %298 = vector.broadcast %cst_61 : f32 to vector<8x8xf32>
    %299 = arith.maximumf %297, %298 : vector<8x8xf32>
    %300 = math.rsqrt %299 : vector<8x8xf32>
    %301 = arith.mulf %295, %300 : vector<8x8xf32>
    %302 = arith.addf %290, %301 : vector<8x8xf32>
    %303 = vector.extract_strided_slice %267 {offsets = [0, 0, 24], sizes = [8, 8, 8], strides = [1, 1, 1]} : vector<8x8x32xf32> to vector<8x8x8xf32>
    %304 = vector.extract_strided_slice %8 {offsets = [0, 0, 24], sizes = [1, 1, 8], strides = [1, 1, 1]} : vector<1x1x32xf32> to vector<1x1x8xf32>
    %305 = vector.broadcast %304 : vector<1x1x8xf32> to vector<8x8x8xf32>
    %306 = arith.mulf %303, %305 : vector<8x8x8xf32>
    %cst_62 = arith.constant dense<0.000000e+00> : vector<8x8xf32>
    %307 = vector.multi_reduction <add>, %306, %cst_62 [2] : vector<8x8x8xf32> to vector<8x8xf32>
    %308 = vector.extract_strided_slice %263 {offsets = [0, 0, 24], sizes = [8, 8, 8], strides = [1, 1, 1]} : vector<8x8x32xf32> to vector<8x8x8xf32>
    %cst_63 = arith.constant dense<0.000000e+00> : vector<8x8xf32>
    %309 = vector.multi_reduction <add>, %308, %cst_63 [2] : vector<8x8x8xf32> to vector<8x8xf32>
    %cst_64 = arith.constant 1.000000e-24 : f32
    %310 = vector.broadcast %cst_64 : f32 to vector<8x8xf32>
    %311 = arith.maximumf %309, %310 : vector<8x8xf32>
    %312 = math.rsqrt %311 : vector<8x8xf32>
    %313 = arith.mulf %307, %312 : vector<8x8xf32>
    %314 = arith.addf %302, %313 : vector<8x8xf32>
    %315 = vector.broadcast %10 : vector<1x1xf32> to vector<8x8xf32>
    %316 = arith.addf %314, %315 : vector<8x8xf32>
    %cst_65 = arith.constant dense<0xFF800000> : vector<8xf32>
    %317 = vector.multi_reduction <maximumf>, %316, %cst_65 [1] : vector<8x8xf32> to vector<8xf32>
    %318 = vector.shape_cast %317 : vector<8xf32> to vector<8x1xf32>
    %319 = vector.broadcast %318 : vector<8x1xf32> to vector<8x8xf32>
    %320 = arith.subf %316, %319 : vector<8x8xf32>
    %321 = math.exp %320 : vector<8x8xf32>
    %cst_66 = arith.constant dense<0.000000e+00> : vector<8xf32>
    %322 = vector.multi_reduction <add>, %321, %cst_66 [1] : vector<8x8xf32> to vector<8xf32>
    %323 = vector.shape_cast %322 : vector<8xf32> to vector<8x1xf32>
    %324 = tpu.reciprocal %323 {approx = true} : vector<8x1xf32> -> vector<8x1xf32>
    %325 = vector.broadcast %324 : vector<8x1xf32> to vector<8x8xf32>
    %326 = arith.mulf %321, %325 : vector<8x8xf32>
    %cst_67 = arith.constant dense<0.000000e+00> : vector<8x32xf32>
    %327 = tpu.matmul %326, %245, %cst_67 {dimension_numbers = #tpu.dot_dimension_numbers<[1], [0], [0], [1], [0, 0, 1, 1], [], []>} : vector<8x8xf32>, vector<8x32xf32>, vector<8x32xf32> -> vector<8x32xf32>
    %328 = vector.extract_strided_slice %4 {offsets = [0, 0], sizes = [8, 8], strides = [1, 1]} : vector<8x32xf32> to vector<8x8xf32>
    %329 = vector.extract_strided_slice %327 {offsets = [0, 0], sizes = [8, 8], strides = [1, 1]} : vector<8x32xf32> to vector<8x8xf32>
    %cst_68 = arith.constant dense<0.000000e+00> : vector<8x8xf32>
    %330 = tpu.matmul %328, %329, %cst_68 {dimension_numbers = #tpu.dot_dimension_numbers<[1], [0], [0], [1], [0, 0, 1, 1], [], []>} : vector<8x8xf32>, vector<8x8xf32>, vector<8x8xf32> -> vector<8x8xf32>
    %331 = vector.extract_strided_slice %4 {offsets = [0, 8], sizes = [8, 8], strides = [1, 1]} : vector<8x32xf32> to vector<8x8xf32>
    %332 = vector.extract_strided_slice %327 {offsets = [0, 8], sizes = [8, 8], strides = [1, 1]} : vector<8x32xf32> to vector<8x8xf32>
    %cst_69 = arith.constant dense<0.000000e+00> : vector<8x8xf32>
    %333 = tpu.matmul %331, %332, %cst_69 {dimension_numbers = #tpu.dot_dimension_numbers<[1], [0], [0], [1], [0, 0, 1, 1], [], []>} : vector<8x8xf32>, vector<8x8xf32>, vector<8x8xf32> -> vector<8x8xf32>
    %334 = arith.addf %330, %333 : vector<8x8xf32>
    %335 = vector.extract_strided_slice %4 {offsets = [0, 16], sizes = [8, 8], strides = [1, 1]} : vector<8x32xf32> to vector<8x8xf32>
    %336 = vector.extract_strided_slice %327 {offsets = [0, 16], sizes = [8, 8], strides = [1, 1]} : vector<8x32xf32> to vector<8x8xf32>
    %cst_70 = arith.constant dense<0.000000e+00> : vector<8x8xf32>
    %337 = tpu.matmul %335, %336, %cst_70 {dimension_numbers = #tpu.dot_dimension_numbers<[1], [0], [0], [1], [0, 0, 1, 1], [], []>} : vector<8x8xf32>, vector<8x8xf32>, vector<8x8xf32> -> vector<8x8xf32>
    %338 = arith.addf %334, %337 : vector<8x8xf32>
    %339 = vector.extract_strided_slice %4 {offsets = [0, 24], sizes = [8, 8], strides = [1, 1]} : vector<8x32xf32> to vector<8x8xf32>
    %340 = vector.extract_strided_slice %327 {offsets = [0, 24], sizes = [8, 8], strides = [1, 1]} : vector<8x32xf32> to vector<8x8xf32>
    %cst_71 = arith.constant dense<0.000000e+00> : vector<8x8xf32>
    %341 = tpu.matmul %339, %340, %cst_71 {dimension_numbers = #tpu.dot_dimension_numbers<[1], [0], [0], [1], [0, 0, 1, 1], [], []>} : vector<8x8xf32>, vector<8x8xf32>, vector<8x8xf32> -> vector<8x8xf32>
    %342 = arith.addf %338, %341 : vector<8x8xf32>
    %343 = tpu.transpose %342, [1, 0] : vector<8x8xf32> -> vector<8x8xf32>
    %344 = vector.broadcast %9 : vector<1x8xf32> to vector<8x8xf32>
    %345 = arith.addf %343, %344 : vector<8x8xf32>
    %346 = vector.broadcast %11 : vector<8x1xf32> to vector<8x8xf32>
    %347 = arith.mulf %345, %346 : vector<8x8xf32>
    %348 = vector.broadcast %12 : vector<8x1xf32> to vector<8x8xf32>
    %349 = arith.addf %347, %348 : vector<8x8xf32>
    %cst_72 = arith.constant 0.000000e+00 : f32
    %350 = vector.broadcast %cst_72 : f32 to vector<8x8xf32>
    %351 = arith.maximumf %349, %350 : vector<8x8xf32>
    %352 = vector.extract_strided_slice %241 {offsets = [0, 0], sizes = [8, 8], strides = [1, 1]} : vector<16x8xf32> to vector<8x8xf32>
    %353 = arith.addf %351, %352 : vector<8x8xf32>
    %c0_73 = arith.constant 0 : index
    %c0_74 = arith.constant 0 : index
    %354 = vector.load %arg3[%c0_73, %c0_74] : memref<16x8xf32, #tpu.memory_space<vmem>>, vector<8x8xf32>
    tpu.vector_store %arg3[%c0_73, %c0_74], %353 {strides = array<i32>} : memref<16x8xf32, #tpu.memory_space<vmem>>, vector<8x8xf32>,
    %355 = vector.extract_strided_slice %244 {offsets = [8, 0], sizes = [8, 32], strides = [1, 1]} : vector<16x96xf32> to vector<8x32xf32>
    %356 = vector.extract_strided_slice %244 {offsets = [8, 32], sizes = [8, 64], strides = [1, 1]} : vector<16x96xf32> to vector<8x64xf32>
    %357 = vector.extract_strided_slice %17 {offsets = [8, 0], sizes = [8, 64], strides = [1, 1]} : vector<16x64xf32> to vector<8x64xf32>
    %358 = vector.extract_strided_slice %356 {offsets = [0, 0], sizes = [8, 32], strides = [1, 1]} : vector<8x64xf32> to vector<8x32xf32>
    %359 = vector.extract_strided_slice %357 {offsets = [0, 0], sizes = [8, 32], strides = [1, 1]} : vector<8x64xf32> to vector<8x32xf32>
    %360 = vector.shape_cast %358 : vector<8x32xf32> to vector<8x1x32xf32>
    %361 = vector.shape_cast %359 : vector<8x32xf32> to vector<1x8x32xf32>
    %362 = vector.broadcast %360 : vector<8x1x32xf32> to vector<8x8x32xf32>
    %363 = vector.broadcast %361 : vector<1x8x32xf32> to vector<8x8x32xf32>
    %364 = arith.mulf %362, %363 : vector<8x8x32xf32>
    %365 = vector.extract_strided_slice %356 {offsets = [0, 32], sizes = [8, 32], strides = [1, 1]} : vector<8x64xf32> to vector<8x32xf32>
    %366 = vector.extract_strided_slice %357 {offsets = [0, 32], sizes = [8, 32], strides = [1, 1]} : vector<8x64xf32> to vector<8x32xf32>
    %367 = vector.shape_cast %365 : vector<8x32xf32> to vector<8x1x32xf32>
    %368 = vector.shape_cast %366 : vector<8x32xf32> to vector<1x8x32xf32>
    %369 = vector.broadcast %367 : vector<8x1x32xf32> to vector<8x8x32xf32>
    %370 = vector.broadcast %368 : vector<1x8x32xf32> to vector<8x8x32xf32>
    %371 = arith.mulf %369, %370 : vector<8x8x32xf32>
    %372 = arith.addf %364, %371 : vector<8x8x32xf32>
    %373 = math.absf %372 : vector<8x8x32xf32>
    %cst_75 = arith.constant 1.000000e-24 : f32
    %374 = vector.broadcast %cst_75 : f32 to vector<8x8x32xf32>
    %375 = arith.maximumf %373, %374 : vector<8x8x32xf32>
    %376 = math.rsqrt %375 : vector<8x8x32xf32>
    %377 = arith.mulf %372, %376 : vector<8x8x32xf32>
    %378 = vector.extract_strided_slice %377 {offsets = [0, 0, 0], sizes = [8, 8, 8], strides = [1, 1, 1]} : vector<8x8x32xf32> to vector<8x8x8xf32>
    %379 = vector.extract_strided_slice %8 {offsets = [0, 0, 0], sizes = [1, 1, 8], strides = [1, 1, 1]} : vector<1x1x32xf32> to vector<1x1x8xf32>
    %380 = vector.broadcast %379 : vector<1x1x8xf32> to vector<8x8x8xf32>
    %381 = arith.mulf %378, %380 : vector<8x8x8xf32>
    %cst_76 = arith.constant dense<0.000000e+00> : vector<8x8xf32>
    %382 = vector.multi_reduction <add>, %381, %cst_76 [2] : vector<8x8x8xf32> to vector<8x8xf32>
    %383 = vector.extract_strided_slice %373 {offsets = [0, 0, 0], sizes = [8, 8, 8], strides = [1, 1, 1]} : vector<8x8x32xf32> to vector<8x8x8xf32>
    %cst_77 = arith.constant dense<0.000000e+00> : vector<8x8xf32>
    %384 = vector.multi_reduction <add>, %383, %cst_77 [2] : vector<8x8x8xf32> to vector<8x8xf32>
    %cst_78 = arith.constant 1.000000e-24 : f32
    %385 = vector.broadcast %cst_78 : f32 to vector<8x8xf32>
    %386 = arith.maximumf %384, %385 : vector<8x8xf32>
    %387 = math.rsqrt %386 : vector<8x8xf32>
    %388 = arith.mulf %382, %387 : vector<8x8xf32>
    %389 = vector.extract_strided_slice %377 {offsets = [0, 0, 8], sizes = [8, 8, 8], strides = [1, 1, 1]} : vector<8x8x32xf32> to vector<8x8x8xf32>
    %390 = vector.extract_strided_slice %8 {offsets = [0, 0, 8], sizes = [1, 1, 8], strides = [1, 1, 1]} : vector<1x1x32xf32> to vector<1x1x8xf32>
    %391 = vector.broadcast %390 : vector<1x1x8xf32> to vector<8x8x8xf32>
    %392 = arith.mulf %389, %391 : vector<8x8x8xf32>
    %cst_79 = arith.constant dense<0.000000e+00> : vector<8x8xf32>
    %393 = vector.multi_reduction <add>, %392, %cst_79 [2] : vector<8x8x8xf32> to vector<8x8xf32>
    %394 = vector.extract_strided_slice %373 {offsets = [0, 0, 8], sizes = [8, 8, 8], strides = [1, 1, 1]} : vector<8x8x32xf32> to vector<8x8x8xf32>
    %cst_80 = arith.constant dense<0.000000e+00> : vector<8x8xf32>
    %395 = vector.multi_reduction <add>, %394, %cst_80 [2] : vector<8x8x8xf32> to vector<8x8xf32>
    %cst_81 = arith.constant 1.000000e-24 : f32
    %396 = vector.broadcast %cst_81 : f32 to vector<8x8xf32>
    %397 = arith.maximumf %395, %396 : vector<8x8xf32>
    %398 = math.rsqrt %397 : vector<8x8xf32>
    %399 = arith.mulf %393, %398 : vector<8x8xf32>
    %400 = arith.addf %388, %399 : vector<8x8xf32>
    %401 = vector.extract_strided_slice %377 {offsets = [0, 0, 16], sizes = [8, 8, 8], strides = [1, 1, 1]} : vector<8x8x32xf32> to vector<8x8x8xf32>
    %402 = vector.extract_strided_slice %8 {offsets = [0, 0, 16], sizes = [1, 1, 8], strides = [1, 1, 1]} : vector<1x1x32xf32> to vector<1x1x8xf32>
    %403 = vector.broadcast %402 : vector<1x1x8xf32> to vector<8x8x8xf32>
    %404 = arith.mulf %401, %403 : vector<8x8x8xf32>
    %cst_82 = arith.constant dense<0.000000e+00> : vector<8x8xf32>
    %405 = vector.multi_reduction <add>, %404, %cst_82 [2] : vector<8x8x8xf32> to vector<8x8xf32>
    %406 = vector.extract_strided_slice %373 {offsets = [0, 0, 16], sizes = [8, 8, 8], strides = [1, 1, 1]} : vector<8x8x32xf32> to vector<8x8x8xf32>
    %cst_83 = arith.constant dense<0.000000e+00> : vector<8x8xf32>
    %407 = vector.multi_reduction <add>, %406, %cst_83 [2] : vector<8x8x8xf32> to vector<8x8xf32>
    %cst_84 = arith.constant 1.000000e-24 : f32
    %408 = vector.broadcast %cst_84 : f32 to vector<8x8xf32>
    %409 = arith.maximumf %407, %408 : vector<8x8xf32>
    %410 = math.rsqrt %409 : vector<8x8xf32>
    %411 = arith.mulf %405, %410 : vector<8x8xf32>
    %412 = arith.addf %400, %411 : vector<8x8xf32>
    %413 = vector.extract_strided_slice %377 {offsets = [0, 0, 24], sizes = [8, 8, 8], strides = [1, 1, 1]} : vector<8x8x32xf32> to vector<8x8x8xf32>
    %414 = vector.extract_strided_slice %8 {offsets = [0, 0, 24], sizes = [1, 1, 8], strides = [1, 1, 1]} : vector<1x1x32xf32> to vector<1x1x8xf32>
    %415 = vector.broadcast %414 : vector<1x1x8xf32> to vector<8x8x8xf32>
    %416 = arith.mulf %413, %415 : vector<8x8x8xf32>
    %cst_85 = arith.constant dense<0.000000e+00> : vector<8x8xf32>
    %417 = vector.multi_reduction <add>, %416, %cst_85 [2] : vector<8x8x8xf32> to vector<8x8xf32>
    %418 = vector.extract_strided_slice %373 {offsets = [0, 0, 24], sizes = [8, 8, 8], strides = [1, 1, 1]} : vector<8x8x32xf32> to vector<8x8x8xf32>
    %cst_86 = arith.constant dense<0.000000e+00> : vector<8x8xf32>
    %419 = vector.multi_reduction <add>, %418, %cst_86 [2] : vector<8x8x8xf32> to vector<8x8xf32>
    %cst_87 = arith.constant 1.000000e-24 : f32
    %420 = vector.broadcast %cst_87 : f32 to vector<8x8xf32>
    %421 = arith.maximumf %419, %420 : vector<8x8xf32>
    %422 = math.rsqrt %421 : vector<8x8xf32>
    %423 = arith.mulf %417, %422 : vector<8x8xf32>
    %424 = arith.addf %412, %423 : vector<8x8xf32>
    %425 = vector.broadcast %10 : vector<1x1xf32> to vector<8x8xf32>
    %426 = arith.addf %424, %425 : vector<8x8xf32>
    %cst_88 = arith.constant dense<0xFF800000> : vector<8xf32>
    %427 = vector.multi_reduction <maximumf>, %426, %cst_88 [1] : vector<8x8xf32> to vector<8xf32>
    %428 = vector.shape_cast %427 : vector<8xf32> to vector<8x1xf32>
    %429 = vector.broadcast %428 : vector<8x1xf32> to vector<8x8xf32>
    %430 = arith.subf %426, %429 : vector<8x8xf32>
    %431 = math.exp %430 : vector<8x8xf32>
    %cst_89 = arith.constant dense<0.000000e+00> : vector<8xf32>
    %432 = vector.multi_reduction <add>, %431, %cst_89 [1] : vector<8x8xf32> to vector<8xf32>
    %433 = vector.shape_cast %432 : vector<8xf32> to vector<8x1xf32>
    %434 = tpu.reciprocal %433 {approx = true} : vector<8x1xf32> -> vector<8x1xf32>
    %435 = vector.broadcast %434 : vector<8x1xf32> to vector<8x8xf32>
    %436 = arith.mulf %431, %435 : vector<8x8xf32>
    %cst_90 = arith.constant dense<0.000000e+00> : vector<8x32xf32>
    %437 = tpu.matmul %436, %355, %cst_90 {dimension_numbers = #tpu.dot_dimension_numbers<[1], [0], [0], [1], [0, 0, 1, 1], [], []>} : vector<8x8xf32>, vector<8x32xf32>, vector<8x32xf32> -> vector<8x32xf32>
    %438 = vector.extract_strided_slice %4 {offsets = [0, 0], sizes = [8, 8], strides = [1, 1]} : vector<8x32xf32> to vector<8x8xf32>
    %439 = vector.extract_strided_slice %437 {offsets = [0, 0], sizes = [8, 8], strides = [1, 1]} : vector<8x32xf32> to vector<8x8xf32>
    %cst_91 = arith.constant dense<0.000000e+00> : vector<8x8xf32>
    %440 = tpu.matmul %438, %439, %cst_91 {dimension_numbers = #tpu.dot_dimension_numbers<[1], [0], [0], [1], [0, 0, 1, 1], [], []>} : vector<8x8xf32>, vector<8x8xf32>, vector<8x8xf32> -> vector<8x8xf32>
    %441 = vector.extract_strided_slice %4 {offsets = [0, 8], sizes = [8, 8], strides = [1, 1]} : vector<8x32xf32> to vector<8x8xf32>
    %442 = vector.extract_strided_slice %437 {offsets = [0, 8], sizes = [8, 8], strides = [1, 1]} : vector<8x32xf32> to vector<8x8xf32>
    %cst_92 = arith.constant dense<0.000000e+00> : vector<8x8xf32>
    %443 = tpu.matmul %441, %442, %cst_92 {dimension_numbers = #tpu.dot_dimension_numbers<[1], [0], [0], [1], [0, 0, 1, 1], [], []>} : vector<8x8xf32>, vector<8x8xf32>, vector<8x8xf32> -> vector<8x8xf32>
    %444 = arith.addf %440, %443 : vector<8x8xf32>
    %445 = vector.extract_strided_slice %4 {offsets = [0, 16], sizes = [8, 8], strides = [1, 1]} : vector<8x32xf32> to vector<8x8xf32>
    %446 = vector.extract_strided_slice %437 {offsets = [0, 16], sizes = [8, 8], strides = [1, 1]} : vector<8x32xf32> to vector<8x8xf32>
    %cst_93 = arith.constant dense<0.000000e+00> : vector<8x8xf32>
    %447 = tpu.matmul %445, %446, %cst_93 {dimension_numbers = #tpu.dot_dimension_numbers<[1], [0], [0], [1], [0, 0, 1, 1], [], []>} : vector<8x8xf32>, vector<8x8xf32>, vector<8x8xf32> -> vector<8x8xf32>
    %448 = arith.addf %444, %447 : vector<8x8xf32>
    %449 = vector.extract_strided_slice %4 {offsets = [0, 24], sizes = [8, 8], strides = [1, 1]} : vector<8x32xf32> to vector<8x8xf32>
    %450 = vector.extract_strided_slice %437 {offsets = [0, 24], sizes = [8, 8], strides = [1, 1]} : vector<8x32xf32> to vector<8x8xf32>
    %cst_94 = arith.constant dense<0.000000e+00> : vector<8x8xf32>
    %451 = tpu.matmul %449, %450, %cst_94 {dimension_numbers = #tpu.dot_dimension_numbers<[1], [0], [0], [1], [0, 0, 1, 1], [], []>} : vector<8x8xf32>, vector<8x8xf32>, vector<8x8xf32> -> vector<8x8xf32>
    %452 = arith.addf %448, %451 : vector<8x8xf32>
    %453 = tpu.transpose %452, [1, 0] : vector<8x8xf32> -> vector<8x8xf32>
    %454 = vector.broadcast %9 : vector<1x8xf32> to vector<8x8xf32>
    %455 = arith.addf %453, %454 : vector<8x8xf32>
    %456 = vector.broadcast %11 : vector<8x1xf32> to vector<8x8xf32>
    %457 = arith.mulf %455, %456 : vector<8x8xf32>
    %458 = vector.broadcast %12 : vector<8x1xf32> to vector<8x8xf32>
    %459 = arith.addf %457, %458 : vector<8x8xf32>
    %cst_95 = arith.constant 0.000000e+00 : f32
    %460 = vector.broadcast %cst_95 : f32 to vector<8x8xf32>
    %461 = arith.maximumf %459, %460 : vector<8x8xf32>
    %462 = vector.extract_strided_slice %241 {offsets = [8, 0], sizes = [8, 8], strides = [1, 1]} : vector<16x8xf32> to vector<8x8xf32>
    %463 = arith.addf %461, %462 : vector<8x8xf32>
    %c8_96 = arith.constant 8 : index
    %c0_97 = arith.constant 0 : index
    %464 = vector.load %arg3[%c8_96, %c0_97] : memref<16x8xf32, #tpu.memory_space<vmem>>, vector<8x8xf32>
    tpu.vector_store %arg3[%c8_96, %c0_97], %463 {strides = array<i32>} : memref<16x8xf32, #tpu.memory_space<vmem>>, vector<8x8xf32>,
    return
  }
  func.func @transform_0(%arg0: i32) -> (i32, i32) {
    %c0_i32 = arith.constant 0 : i32
    %c0_i32_0 = arith.constant 0 : i32
    %c0_i32_1 = arith.constant 0 : i32
    return %c0_i32, %c0_i32_0 : i32, i32
  }
  func.func @transform_1(%arg0: i32) -> (i32, i32) {
    %c0_i32 = arith.constant 0 : i32
    %c0_i32_0 = arith.constant 0 : i32
    %c0_i32_1 = arith.constant 0 : i32
    return %c0_i32, %c0_i32_0 : i32, i32
  }
  func.func @transform_2(%arg0: i32) -> (i32, i32) {
    %c0_i32 = arith.constant 0 : i32
    %c0_i32_0 = arith.constant 0 : i32
    %c0_i32_1 = arith.constant 0 : i32
    return %c0_i32, %c0_i32_0 : i32, i32
  }
}

</mosaic_0001>

<llo_original>
// kernel: baf_forward.1
$region0: #{baf_forward.1}
  #allocation0 [shape = 'u32[]', space=smem, size = 0x4, offset = 0x4, fixed_abs, tag = 'smem constant byte address 0x4 - core index']
  #allocation1 [shape = 'u32[144,128]{1,0:T(1,128)}', space=vmem, size = 0x12000, scoped, tag = 'internal scratch']
  %s0 = inlined_call_operand.vmem [shape: f32[32,8], index: 0, kind: input, shape index: {}]
  %s1 = inlined_call_operand.vmem [shape: f32[8,640], index: 1, kind: input, shape index: {}]
  %s2 = inlined_call_operand.hbm [shape: f32[16,8], index: 2, kind: output, shape index: {}]
  %s3 = sld [smem:[#allocation0]]
  $region18: #{baf_forward.1} parent=0
    _
  %s5 = ssub.s32 1, %s3
  %s6 = scalar_select 0, %s5, %s3
  $region1: #{baf_forward.1} parent=0
    #allocation2 [shape = 'u8[8192]{0}', space=vmem, size = 0x2000, scoped, tag = 'output window, operand 0, single buffered']
    #allocation3 [shape = 's32[1]{0}', space=sflag, size = 0x4, scoped, tag = 'scoped memory for baf_forward.1']
    %7 = vsyncpa [#allocation3], 0
    // Predicated region
    $region2: #{baf_forward.1} parent=1 // pred_check
      _
    $region3: #{baf_forward.1} parent=1 // pred_check_branch
      %9 = sbr.rel (0) target = $region5
    $region4: #{baf_forward.1} parent=1 // pred_region
      _
    $region5: #{baf_forward.1} parent=1 // pred_fallthru
      _
    // Predicated region
    $region6: #{baf_forward.1} parent=1 // pred_check
      _
    $region7: #{baf_forward.1} parent=1 // pred_check_branch
      %11 = sbr.rel (0) target = $region9
    $region8: #{baf_forward.1} parent=1 // pred_region
      _
    $region9: #{baf_forward.1} parent=1 // pred_fallthru
      _
    %v12 = vld [vmem:[%s0] sm:$0xff]
    %v13 = vld [vmem:[%s0 + $0x8] sm:$0xff]
    %v14 = vld [vmem:[%s0 + $0x10] sm:$0xff]
    %v15 = vld [vmem:[%s0 + $0x18] sm:$0xff]
    %v16 = vld [vmem:[%s1] sm:$0xff]
    %v17 = vld [vmem:[%s1 + $0x8] sm:$0xff]
    %v18 = vld [vmem:[%s1 + $0x10] sm:$0xff]
    %v19 = vld [vmem:[%s1 + $0x18] sm:$0xff]
    %v20 = vld [vmem:[%s1 + $0x20] sm:$0xff]
    %v21 = vlaneseq
    %v22 = vshrl.u32 %v21, 7
    %v23 = vsub.s32 0, %v22
    %v24 = vrot.slane %v19, %v23
    %vm25 = vcmask 64512
    %v27 = vsel %vm25, %v12, 0
    %v30 = vsel %vm25, %v13, 0
    %32 = vmatprep.subr.mxu0 0.0
    %33 = vmatpush1.msra.mxu0 %v16
    %34 = vmatprep.subr.mxu0 0.0
    %35 = vmatpush1.msra.mxu0 0.0
    %36 = vmatprep.subr.mxu0 0.0
    %37 = vmatpush1.msra.mxu0 0.0
    %38 = vmatprep.subr.mxu0 0.0
    %39 = vmatpush1.msra.mxu0 0.0
    %40 = vmatprep.subr.mxu0 0.0
    %41 = vmatpush1.msra.mxu0 0.0
    %42 = vmatprep.subr.mxu0 0.0
    %43 = vmatpush1.msra.mxu0 0.0
    %44 = vmatprep.subr.mxu0 0.0
    %45 = vmatpush1.msra.mxu0 0.0
    %46 = vmatprep.subr.mxu0 0.0
    %47 = vmatpush1.msra.mxu0 0.0
    %48 = vmatprep.subr.mxu0 0.0
    %49 = vmatpush1.msra.mxu0 0.0
    %50 = vmatprep.subr.mxu0 0.0
    %51 = vmatpush1.msra.mxu0 0.0
    %52 = vmatprep.subr.mxu0 0.0
    %53 = vmatpush1.msra.mxu0 0.0
    %54 = vmatprep.subr.mxu0 0.0
    %55 = vmatpush1.msra.mxu0 0.0
    %56 = vmatprep.subr.mxu0 0.0
    %57 = vmatpush1.msra.mxu0 0.0
    %58 = vmatprep.subr.mxu0 0.0
    %59 = vmatpush1.msra.mxu0 0.0
    %60 = vmatprep.subr.mxu0 0.0
    %61 = vmatpush1.msra.mxu0 0.0
    %62 = vmatprep.subr.mxu0 0.0
    %63 = vmatpush1.msra.mxu0 0.0
    %64 = vmatprep.subr.mxu0 0.0
    %65 = vmatpush1.msra.mxu0 0.0
    %66 = vmatprep.subr.mxu0 0.0
    %67 = vmatpush1.msra.mxu0 0.0
    %68 = vmatprep.subr.mxu0 0.0
    %69 = vmatpush1.msra.mxu0 0.0
    %70 = vmatprep.subr.mxu0 0.0
    %71 = vmatpush1.msra.mxu0 0.0
    %72 = vmatprep.subr.mxu0 0.0
    %73 = vmatpush1.msra.mxu0 0.0
    %74 = vmatprep.subr.mxu0 0.0
    %75 = vmatpush1.msra.mxu0 0.0
    %76 = vmatprep.subr.mxu0 0.0
    %77 = vmatpush1.msra.mxu0 0.0
    %78 = vmatprep.subr.mxu0 0.0
    %79 = vmatpush1.msra.mxu0 0.0
    %80 = vmatprep.subr.mxu0 0.0
    %81 = vmatpush1.msra.mxu0 0.0
    %82 = vmatprep.subr.mxu0 0.0
    %83 = vmatpush1.msra.mxu0 0.0
    %84 = vmatprep.subr.mxu0 0.0
    %85 = vmatpush1.msra.mxu0 0.0
    %86 = vmatprep.subr.mxu0 0.0
    %87 = vmatpush1.msra.mxu0 0.0
    %88 = vmatprep.subr.mxu0 0.0
    %89 = vmatpush1.msra.mxu0 0.0
    %90 = vmatprep.subr.mxu0 0.0
    %91 = vmatpush1.msra.mxu0 0.0
    %92 = vmatprep.subr.mxu0 0.0
    %93 = vmatpush1.msra.mxu0 0.0
    %94 = vmatprep.subr.mxu0 0.0
    %95 = vmatpush1.msra.mxu0 0.0
    %96 = vmatprep.mubr.f32.mxu0 0.0
    %97 = vmatmul.mubr.f32.gmra.mrb[0].mxu0 %v27
    %v98 = vpop.f32.mrb[0].mxu0
    %v99 = vadd.f32 %v24, %v98
    %v100 = vpop.f32.mrb[0].mxu0
    %101 = vmatprep.mubr.f32.mxu0 0.0
    %102 = vmatmul.mubr.f32.gmra.mrb[0].mxu0 %v30
    %v103 = vpop.f32.mrb[0].mxu0
    %v104 = vadd.f32 %v24, %v103
    %v105 = vpop.f32.mrb[0].mxu0
    %106 = vdwg.mxu0
    %v107 = vlaneseq
    %v108 = vshrl.u32 %v107, 7
    %v109 = vsub.s32 0, %v108
    %v110 = vrot.slane %v20, %v109
    %v112 = vsel %vm25, %v14, 0
    %v115 = vsel %vm25, %v15, 0
    %117 = vmatprep.subr.mxu0 0.0
    %118 = vmatpush1.msra.mxu0 %v17
    %119 = vmatprep.subr.mxu0 0.0
    %120 = vmatpush1.msra.mxu0 0.0
    %121 = vmatprep.subr.mxu0 0.0
    %122 = vmatpush1.msra.mxu0 0.0
    %123 = vmatprep.subr.mxu0 0.0
    %124 = vmatpush1.msra.mxu0 0.0
    %125 = vmatprep.subr.mxu0 0.0
    %126 = vmatpush1.msra.mxu0 0.0
    %127 = vmatprep.subr.mxu0 0.0
    %128 = vmatpush1.msra.mxu0 0.0
    %129 = vmatprep.subr.mxu0 0.0
    %130 = vmatpush1.msra.mxu0 0.0
    %131 = vmatprep.subr.mxu0 0.0
    %132 = vmatpush1.msra.mxu0 0.0
    %133 = vmatprep.subr.mxu0 0.0
    %134 = vmatpush1.msra.mxu0 0.0
    %135 = vmatprep.subr.mxu0 0.0
    %136 = vmatpush1.msra.mxu0 0.0
    %137 = vmatprep.subr.mxu0 0.0
    %138 = vmatpush1.msra.mxu0 0.0
    %139 = vmatprep.subr.mxu0 0.0
    %140 = vmatpush1.msra.mxu0 0.0
    %141 = vmatprep.subr.mxu0 0.0
    %142 = vmatpush1.msra.mxu0 0.0
    %143 = vmatprep.subr.mxu0 0.0
    %144 = vmatpush1.msra.mxu0 0.0
    %145 = vmatprep.subr.mxu0 0.0
    %146 = vmatpush1.msra.mxu0 0.0
    %147 = vmatprep.subr.mxu0 0.0
    %148 = vmatpush1.msra.mxu0 0.0
    %149 = vmatprep.subr.mxu0 0.0
    %150 = vmatpush1.msra.mxu0 0.0
    %151 = vmatprep.subr.mxu0 0.0
    %152 = vmatpush1.msra.mxu0 0.0
    %153 = vmatprep.subr.mxu0 0.0
    %154 = vmatpush1.msra.mxu0 0.0
    %155 = vmatprep.subr.mxu0 0.0
    %156 = vmatpush1.msra.mxu0 0.0
    %157 = vmatprep.subr.mxu0 0.0
    %158 = vmatpush1.msra.mxu0 0.0
    %159 = vmatprep.subr.mxu0 0.0
    %160 = vmatpush1.msra.mxu0 0.0
    %161 = vmatprep.subr.mxu0 0.0
    %162 = vmatpush1.msra.mxu0 0.0
    %163 = vmatprep.subr.mxu0 0.0
    %164 = vmatpush1.msra.mxu0 0.0
    %165 = vmatprep.subr.mxu0 0.0
    %166 = vmatpush1.msra.mxu0 0.0
    %167 = vmatprep.subr.mxu0 0.0
    %168 = vmatpush1.msra.mxu0 0.0
    %169 = vmatprep.subr.mxu0 0.0
    %170 = vmatpush1.msra.mxu0 0.0
    %171 = vmatprep.subr.mxu0 0.0
    %172 = vmatpush1.msra.mxu0 0.0
    %173 = vmatprep.subr.mxu0 0.0
    %174 = vmatpush1.msra.mxu0 0.0
    %175 = vmatprep.subr.mxu0 0.0
    %176 = vmatpush1.msra.mxu0 0.0
    %177 = vmatprep.subr.mxu0 0.0
    %178 = vmatpush1.msra.mxu0 0.0
    %179 = vmatprep.subr.mxu0 0.0
    %180 = vmatpush1.msra.mxu0 0.0
    %181 = vmatprep.mubr.f32.mxu0 0.0
    %182 = vmatmul.mubr.f32.gmra.mrb[0].mxu0 %v112
    %v183 = vpop.f32.mrb[0].mxu0
    %v184 = vadd.f32 %v110, %v183
    %v185 = vpop.f32.mrb[0].mxu0
    %186 = vmatprep.mubr.f32.mxu0 0.0
    %187 = vmatmul.mubr.f32.gmra.mrb[0].mxu0 %v115
    %v188 = vpop.f32.mrb[0].mxu0
    %v189 = vadd.f32 %v110, %v188
    %v190 = vpop.f32.mrb[0].mxu0
    %191 = vdwg.mxu0
    %v193 = vcombine.high %v184, %v184
    %v195 = vunpack.c.l.s4 1966171168
    %v196 = vunpack.c.0.s8 %v195
    %v197 = vlaneseq
    %v198 = vshrl.u32 %v197, 7
    %v199 = vsub.s32 %v196, %v198
    %v200 = vrot.slane %v184, %v199
    %v202 = vunpack.c.l.s4 1966171168
    %v203 = vunpack.c.0.s8 %v202
    %v204 = vlaneseq
    %v205 = vshrl.u32 %v204, 7
    %v206 = vsub.s32 %v203, %v205
    %v207 = vrot.slane %v193, %v206
    %v208 = vcombine.high %v200, %v200
    %v209 = vcombine.high %v207, %v207
    %v211 = vunpack.c.l.s4 1966171168
    %v212 = vunpack.c.0.s8 %v211
    %v213 = vlaneseq
    %v214 = vshrl.u32 %v213, 7
    %v215 = vsub.s32 %v212, %v214
    %v216 = vrot.slane %v200, %v215
    %v218 = vunpack.c.l.s4 1966171168
    %v219 = vunpack.c.0.s8 %v218
    %v220 = vlaneseq
    %v221 = vshrl.u32 %v220, 7
    %v222 = vsub.s32 %v219, %v221
    %v223 = vrot.slane %v207, %v222
    %v225 = vunpack.c.l.s4 1966171168
    %v226 = vunpack.c.0.s8 %v225
    %v227 = vlaneseq
    %v228 = vshrl.u32 %v227, 7
    %v229 = vsub.s32 %v226, %v228
    %v230 = vrot.slane %v208, %v229
    %v232 = vunpack.c.l.s4 1966171168
    %v233 = vunpack.c.0.s8 %v232
    %v234 = vlaneseq
    %v235 = vshrl.u32 %v234, 7
    %v236 = vsub.s32 %v233, %v235
    %v237 = vrot.slane %v209, %v236
    %v238 = vcombine.high %v216, %v216
    %v239 = vcombine.high %v223, %v223
    %v240 = vcombine.high %v230, %v230
    %v241 = vcombine.high %v237, %v237
    %v242 = vlaneseq
    %v243 = vshrl.u32 %v242, 7
    %v244 = vsub.s32 0, %v243
    %v245 = vrot.slane %v216, %v244
    %v246 = vlaneseq
    %v247 = vshrl.u32 %v246, 7
    %v248 = vsub.s32 0, %v247
    %v249 = vrot.slane %v230, %v248
    %v250 = vlaneseq
    %v251 = vshrl.u32 %v250, 7
    %v252 = vsub.s32 0, %v251
    %v253 = vrot.slane %v238, %v252
    %v254 = vlaneseq
    %v255 = vshrl.u32 %v254, 7
    %v256 = vsub.s32 0, %v255
    %v257 = vrot.slane %v240, %v256
    %v258 = vlaneseq
    %v259 = vshrl.u32 %v258, 7
    %v260 = vsub.s32 0, %v259
    %v261 = vrot.slane %v223, %v260
    %v262 = vlaneseq
    %v263 = vshrl.u32 %v262, 7
    %v264 = vsub.s32 0, %v263
    %v265 = vrot.slane %v237, %v264
    %v266 = vlaneseq
    %v267 = vshrl.u32 %v266, 7
    %v268 = vsub.s32 0, %v267
    %v269 = vrot.slane %v239, %v268
    %v270 = vlaneseq
    %v271 = vshrl.u32 %v270, 7
    %v272 = vsub.s32 0, %v271
    %v273 = vrot.slane %v241, %v272
    %283 = vrot.lane.b32.xlu0 %v99, 32
    %v284 = vpop.permute.xlu0 %283
    %v286 = vmul.f32 %v245, %v284
    %v287 = vmul.f32 %v249, %v284
    %v288 = vmul.f32 %v253, %v284
    %v289 = vmul.f32 %v257, %v284
    %v290 = vmul.f32 %v261, %v284
    %v291 = vmul.f32 %v265, %v284
    %v292 = vmul.f32 %v269, %v284
    %v293 = vmul.f32 %v273, %v284
    %302 = vrot.lane.b32.xlu0 %v286, 96
    %v303 = vpop.permute.xlu0 %302
    %304 = vrot.lane.b32.xlu0 %v287, 96
    %v305 = vpop.permute.xlu0 %304
    %306 = vrot.lane.b32.xlu0 %v288, 96
    %v307 = vpop.permute.xlu0 %306
    %308 = vrot.lane.b32.xlu0 %v289, 96
    %v309 = vpop.permute.xlu0 %308
    %310 = vrot.lane.b32.xlu0 %v290, 96
    %v311 = vpop.permute.xlu0 %310
    %312 = vrot.lane.b32.xlu0 %v291, 96
    %v313 = vpop.permute.xlu0 %312
    %314 = vrot.lane.b32.xlu0 %v292, 96
    %v315 = vpop.permute.xlu0 %314
    %316 = vrot.lane.b32.xlu0 %v293, 96
    %v317 = vpop.permute.xlu0 %316
    %v326 = vadd.f32 %v286, %v303
    %v327 = vadd.f32 %v287, %v305
    %v328 = vadd.f32 %v288, %v307
    %v329 = vadd.f32 %v289, %v309
    %v330 = vadd.f32 %v290, %v311
    %v331 = vadd.f32 %v291, %v313
    %v332 = vadd.f32 %v292, %v315
    %v333 = vadd.f32 %v293, %v317
    %v334 = vand.u32 2147483647, %v326
    %v335 = vand.u32 2147483647, %v327
    %v336 = vand.u32 2147483647, %v328
    %v337 = vand.u32 2147483647, %v329
    %v338 = vand.u32 2147483647, %v330
    %v339 = vand.u32 2147483647, %v331
    %v340 = vand.u32 2147483647, %v332
    %v341 = vand.u32 2147483647, %v333
    %v342 = vmax.f32 %v334, 1e-24
    %v343 = vmax.f32 %v335, 1e-24
    %v344 = vmax.f32 %v336, 1e-24
    %v345 = vmax.f32 %v337, 1e-24
    %v346 = vmax.f32 %v338, 1e-24
    %v347 = vmax.f32 %v339, 1e-24
    %v348 = vmax.f32 %v340, 1e-24
    %v349 = vmax.f32 %v341, 1e-24
    %v350 = vrsqrt.pop %v342
    %v351 = vrsqrt.pop %v343
    %v352 = vrsqrt.pop %v344
    %v353 = vrsqrt.pop %v345
    %v354 = vrsqrt.pop %v346
    %v355 = vrsqrt.pop %v347
    %v356 = vrsqrt.pop %v348
    %v357 = vrsqrt.pop %v349
    %v358 = vmul.f32 %v326, %v350
    %v359 = vmul.f32 %v327, %v351
    %v360 = vmul.f32 %v328, %v352
    %v361 = vmul.f32 %v329, %v353
    %v362 = vmul.f32 %v330, %v354
    %v363 = vmul.f32 %v331, %v355
    %v364 = vmul.f32 %v332, %v356
    %v365 = vmul.f32 %v333, %v357
    %367 = vrot.lane.b32.xlu0 %v110, 64
    %v368 = vpop.permute.xlu0 %367
    %v370 = vmul.f32 %v358, %v368
    %v371 = vmul.f32 %v359, %v368
    %v372 = vmul.f32 %v360, %v368
    %v373 = vmul.f32 %v361, %v368
    %v374 = vmul.f32 %v362, %v368
    %v375 = vmul.f32 %v363, %v368
    %v376 = vmul.f32 %v364, %v368
    %v377 = vmul.f32 %v365, %v368
    %386 = vrot.lane.b32.xlu0 %v370, 96
    %v387 = vpop.permute.xlu0 %386
    %388 = vrot.lane.b32.xlu0 %v371, 96
    %v389 = vpop.permute.xlu0 %388
    %390 = vrot.lane.b32.xlu0 %v372, 96
    %v391 = vpop.permute.xlu0 %390
    %392 = vrot.lane.b32.xlu0 %v373, 96
    %v393 = vpop.permute.xlu0 %392
    %394 = vrot.lane.b32.xlu0 %v374, 96
    %v395 = vpop.permute.xlu0 %394
    %396 = vrot.lane.b32.xlu0 %v375, 96
    %v397 = vpop.permute.xlu0 %396
    %398 = vrot.lane.b32.xlu0 %v376, 96
    %v399 = vpop.permute.xlu0 %398
    %400 = vrot.lane.b32.xlu0 %v377, 96
    %v401 = vpop.permute.xlu0 %400
    %v410 = vsel %vm25, %v387, 0.0
    %411 = vadd.xlane.f32.xlu0 %v410
    %v412 = vpop.xlane.xlu0 %411
    %v413 = vsel %vm25, %v389, 0.0
    %414 = vadd.xlane.f32.xlu0 %v413
    %v415 = vpop.xlane.xlu0 %414
    %v416 = vsel %vm25, %v391, 0.0
    %417 = vadd.xlane.f32.xlu0 %v416
    %v418 = vpop.xlane.xlu0 %417
    %v419 = vsel %vm25, %v393, 0.0
    %420 = vadd.xlane.f32.xlu0 %v419
    %v421 = vpop.xlane.xlu0 %420
    %v422 = vsel %vm25, %v395, 0.0
    %423 = vadd.xlane.f32.xlu0 %v422
    %v424 = vpop.xlane.xlu0 %423
    %v425 = vsel %vm25, %v397, 0.0
    %426 = vadd.xlane.f32.xlu0 %v425
    %v427 = vpop.xlane.xlu0 %426
    %v428 = vsel %vm25, %v399, 0.0
    %429 = vadd.xlane.f32.xlu0 %v428
    %v430 = vpop.xlane.xlu0 %429
    %v431 = vsel %vm25, %v401, 0.0
    %432 = vadd.xlane.f32.xlu0 %v431
    %v433 = vpop.xlane.xlu0 %432
    %442 = vrot.lane.b32.xlu0 %v334, 96
    %v443 = vpop.permute.xlu0 %442
    %444 = vrot.lane.b32.xlu0 %v335, 96
    %v445 = vpop.permute.xlu0 %444
    %446 = vrot.lane.b32.xlu0 %v336, 96
    %v447 = vpop.permute.xlu0 %446
    %448 = vrot.lane.b32.xlu0 %v337, 96
    %v449 = vpop.permute.xlu0 %448
    %450 = vrot.lane.b32.xlu0 %v338, 96
    %v451 = vpop.permute.xlu0 %450
    %452 = vrot.lane.b32.xlu0 %v339, 96
    %v453 = vpop.permute.xlu0 %452
    %454 = vrot.lane.b32.xlu0 %v340, 96
    %v455 = vpop.permute.xlu0 %454
    %456 = vrot.lane.b32.xlu0 %v341, 96
    %v457 = vpop.permute.xlu0 %456
    %v466 = vsel %vm25, %v443, 0.0
    %467 = vadd.xlane.f32.xlu0 %v466
    %v468 = vpop.xlane.xlu0 %467
    %v469 = vsel %vm25, %v445, 0.0
    %470 = vadd.xlane.f32.xlu0 %v469
    %v471 = vpop.xlane.xlu0 %470
    %v472 = vsel %vm25, %v447, 0.0
    %473 = vadd.xlane.f32.xlu0 %v472
    %v474 = vpop.xlane.xlu0 %473
    %v475 = vsel %vm25, %v449, 0.0
    %476 = vadd.xlane.f32.xlu0 %v475
    %v477 = vpop.xlane.xlu0 %476
    %v478 = vsel %vm25, %v451, 0.0
    %479 = vadd.xlane.f32.xlu0 %v478
    %v480 = vpop.xlane.xlu0 %479
    %v481 = vsel %vm25, %v453, 0.0
    %482 = vadd.xlane.f32.xlu0 %v481
    %v483 = vpop.xlane.xlu0 %482
    %v484 = vsel %vm25, %v455, 0.0
    %485 = vadd.xlane.f32.xlu0 %v484
    %v486 = vpop.xlane.xlu0 %485
    %v487 = vsel %vm25, %v457, 0.0
    %488 = vadd.xlane.f32.xlu0 %v487
    %v489 = vpop.xlane.xlu0 %488
    %v490 = vmax.f32 %v468, 1e-24
    %v491 = vmax.f32 %v471, 1e-24
    %v492 = vmax.f32 %v474, 1e-24
    %v493 = vmax.f32 %v477, 1e-24
    %v494 = vmax.f32 %v480, 1e-24
    %v495 = vmax.f32 %v483, 1e-24
    %v496 = vmax.f32 %v486, 1e-24
    %v497 = vmax.f32 %v489, 1e-24
    %v498 = vrsqrt.pop %v490
    %v499 = vrsqrt.pop %v491
    %v500 = vrsqrt.pop %v492
    %v501 = vrsqrt.pop %v493
    %v502 = vrsqrt.pop %v494
    %v503 = vrsqrt.pop %v495
    %v504 = vrsqrt.pop %v496
    %v505 = vrsqrt.pop %v497
    %v506 = vmul.f32 %v412, %v498
    %v507 = vmul.f32 %v415, %v499
    %v508 = vmul.f32 %v418, %v500
    %v509 = vmul.f32 %v421, %v501
    %v510 = vmul.f32 %v424, %v502
    %v511 = vmul.f32 %v427, %v503
    %v512 = vmul.f32 %v430, %v504
    %v513 = vmul.f32 %v433, %v505
    %514 = vrot.lane.b32.xlu0 %v370, 88
    %v515 = vpop.permute.xlu0 %514
    %516 = vrot.lane.b32.xlu0 %v371, 88
    %v517 = vpop.permute.xlu0 %516
    %518 = vrot.lane.b32.xlu0 %v372, 88
    %v519 = vpop.permute.xlu0 %518
    %520 = vrot.lane.b32.xlu0 %v373, 88
    %v521 = vpop.permute.xlu0 %520
    %522 = vrot.lane.b32.xlu0 %v374, 88
    %v523 = vpop.permute.xlu0 %522
    %524 = vrot.lane.b32.xlu0 %v375, 88
    %v525 = vpop.permute.xlu0 %524
    %526 = vrot.lane.b32.xlu0 %v376, 88
    %v527 = vpop.permute.xlu0 %526
    %528 = vrot.lane.b32.xlu0 %v377, 88
    %v529 = vpop.permute.xlu0 %528
    %v538 = vsel %vm25, %v515, 0.0
    %539 = vadd.xlane.f32.xlu0 %v538
    %v540 = vpop.xlane.xlu0 %539
    %v541 = vsel %vm25, %v517, 0.0
    %542 = vadd.xlane.f32.xlu0 %v541
    %v543 = vpop.xlane.xlu0 %542
    %v544 = vsel %vm25, %v519, 0.0
    %545 = vadd.xlane.f32.xlu0 %v544
    %v546 = vpop.xlane.xlu0 %545
    %v547 = vsel %vm25, %v521, 0.0
    %548 = vadd.xlane.f32.xlu0 %v547
    %v549 = vpop.xlane.xlu0 %548
    %v550 = vsel %vm25, %v523, 0.0
    %551 = vadd.xlane.f32.xlu0 %v550
    %v552 = vpop.xlane.xlu0 %551
    %v553 = vsel %vm25, %v525, 0.0
    %554 = vadd.xlane.f32.xlu0 %v553
    %v555 = vpop.xlane.xlu0 %554
    %v556 = vsel %vm25, %v527, 0.0
    %557 = vadd.xlane.f32.xlu0 %v556
    %v558 = vpop.xlane.xlu0 %557
    %v559 = vsel %vm25, %v529, 0.0
    %560 = vadd.xlane.f32.xlu0 %v559
    %v561 = vpop.xlane.xlu0 %560
    %562 = vrot.lane.b32.xlu0 %v334, 88
    %v563 = vpop.permute.xlu0 %562
    %564 = vrot.lane.b32.xlu0 %v335, 88
    %v565 = vpop.permute.xlu0 %564
    %566 = vrot.lane.b32.xlu0 %v336, 88
    %v567 = vpop.permute.xlu0 %566
    %568 = vrot.lane.b32.xlu0 %v337, 88
    %v569 = vpop.permute.xlu0 %568
    %570 = vrot.lane.b32.xlu0 %v338, 88
    %v571 = vpop.permute.xlu0 %570
    %572 = vrot.lane.b32.xlu0 %v339, 88
    %v573 = vpop.permute.xlu0 %572
    %574 = vrot.lane.b32.xlu0 %v340, 88
    %v575 = vpop.permute.xlu0 %574
    %576 = vrot.lane.b32.xlu0 %v341, 88
    %v577 = vpop.permute.xlu0 %576
    %v586 = vsel %vm25, %v563, 0.0
    %587 = vadd.xlane.f32.xlu0 %v586
    %v588 = vpop.xlane.xlu0 %587
    %v589 = vsel %vm25, %v565, 0.0
    %590 = vadd.xlane.f32.xlu0 %v589
    %v591 = vpop.xlane.xlu0 %590
    %v592 = vsel %vm25, %v567, 0.0
    %593 = vadd.xlane.f32.xlu0 %v592
    %v594 = vpop.xlane.xlu0 %593
    %v595 = vsel %vm25, %v569, 0.0
    %596 = vadd.xlane.f32.xlu0 %v595
    %v597 = vpop.xlane.xlu0 %596
    %v598 = vsel %vm25, %v571, 0.0
    %599 = vadd.xlane.f32.xlu0 %v598
    %v600 = vpop.xlane.xlu0 %599
    %v601 = vsel %vm25, %v573, 0.0
    %602 = vadd.xlane.f32.xlu0 %v601
    %v603 = vpop.xlane.xlu0 %602
    %v604 = vsel %vm25, %v575, 0.0
    %605 = vadd.xlane.f32.xlu0 %v604
    %v606 = vpop.xlane.xlu0 %605
    %v607 = vsel %vm25, %v577, 0.0
    %608 = vadd.xlane.f32.xlu0 %v607
    %v609 = vpop.xlane.xlu0 %608
    %v610 = vmax.f32 %v588, 1e-24
    %v611 = vmax.f32 %v591, 1e-24
    %v612 = vmax.f32 %v594, 1e-24
    %v613 = vmax.f32 %v597, 1e-24
    %v614 = vmax.f32 %v600, 1e-24
    %v615 = vmax.f32 %v603, 1e-24
    %v616 = vmax.f32 %v606, 1e-24
    %v617 = vmax.f32 %v609, 1e-24
    %v618 = vrsqrt.pop %v610
    %v619 = vrsqrt.pop %v611
    %v620 = vrsqrt.pop %v612
    %v621 = vrsqrt.pop %v613
    %v622 = vrsqrt.pop %v614
    %v623 = vrsqrt.pop %v615
    %v624 = vrsqrt.pop %v616
    %v625 = vrsqrt.pop %v617
    %v626 = vmul.f32 %v540, %v618
    %v627 = vmul.f32 %v543, %v619
    %v628 = vmul.f32 %v546, %v620
    %v629 = vmul.f32 %v549, %v621
    %v630 = vmul.f32 %v552, %v622
    %v631 = vmul.f32 %v555, %v623
    %v632 = vmul.f32 %v558, %v624
    %v633 = vmul.f32 %v561, %v625
    %v634 = vadd.f32 %v506, %v626
    %v635 = vadd.f32 %v507, %v627
    %v636 = vadd.f32 %v508, %v628
    %v637 = vadd.f32 %v509, %v629
    %v638 = vadd.f32 %v510, %v630
    %v639 = vadd.f32 %v511, %v631
    %v640 = vadd.f32 %v512, %v632
    %v641 = vadd.f32 %v513, %v633
    %642 = vrot.lane.b32.xlu0 %v370, 80
    %v643 = vpop.permute.xlu0 %642
    %644 = vrot.lane.b32.xlu0 %v371, 80
    %v645 = vpop.permute.xlu0 %644
    %646 = vrot.lane.b32.xlu0 %v372, 80
    %v647 = vpop.permute.xlu0 %646
    %648 = vrot.lane.b32.xlu0 %v373, 80
    %v649 = vpop.permute.xlu0 %648
    %650 = vrot.lane.b32.xlu0 %v374, 80
    %v651 = vpop.permute.xlu0 %650
    %652 = vrot.lane.b32.xlu0 %v375, 80
    %v653 = vpop.permute.xlu0 %652
    %654 = vrot.lane.b32.xlu0 %v376, 80
    %v655 = vpop.permute.xlu0 %654
    %656 = vrot.lane.b32.xlu0 %v377, 80
    %v657 = vpop.permute.xlu0 %656
    %v666 = vsel %vm25, %v643, 0.0
    %667 = vadd.xlane.f32.xlu0 %v666
    %v668 = vpop.xlane.xlu0 %667
    %v669 = vsel %vm25, %v645, 0.0
    %670 = vadd.xlane.f32.xlu0 %v669
    %v671 = vpop.xlane.xlu0 %670
    %v672 = vsel %vm25, %v647, 0.0
    %673 = vadd.xlane.f32.xlu0 %v672
    %v674 = vpop.xlane.xlu0 %673
    %v675 = vsel %vm25, %v649, 0.0
    %676 = vadd.xlane.f32.xlu0 %v675
    %v677 = vpop.xlane.xlu0 %676
    %v678 = vsel %vm25, %v651, 0.0
    %679 = vadd.xlane.f32.xlu0 %v678
    %v680 = vpop.xlane.xlu0 %679
    %v681 = vsel %vm25, %v653, 0.0
    %682 = vadd.xlane.f32.xlu0 %v681
    %v683 = vpop.xlane.xlu0 %682
    %v684 = vsel %vm25, %v655, 0.0
    %685 = vadd.xlane.f32.xlu0 %v684
    %v686 = vpop.xlane.xlu0 %685
    %v687 = vsel %vm25, %v657, 0.0
    %688 = vadd.xlane.f32.xlu0 %v687
    %v689 = vpop.xlane.xlu0 %688
    %690 = vrot.lane.b32.xlu0 %v334, 80
    %v691 = vpop.permute.xlu0 %690
    %692 = vrot.lane.b32.xlu0 %v335, 80
    %v693 = vpop.permute.xlu0 %692
    %694 = vrot.lane.b32.xlu0 %v336, 80
    %v695 = vpop.permute.xlu0 %694
    %696 = vrot.lane.b32.xlu0 %v337, 80
    %v697 = vpop.permute.xlu0 %696
    %698 = vrot.lane.b32.xlu0 %v338, 80
    %v699 = vpop.permute.xlu0 %698
    %700 = vrot.lane.b32.xlu0 %v339, 80
    %v701 = vpop.permute.xlu0 %700
    %702 = vrot.lane.b32.xlu0 %v340, 80
    %v703 = vpop.permute.xlu0 %702
    %704 = vrot.lane.b32.xlu0 %v341, 80
    %v705 = vpop.permute.xlu0 %704
    %v714 = vsel %vm25, %v691, 0.0
    %715 = vadd.xlane.f32.xlu0 %v714
    %v716 = vpop.xlane.xlu0 %715
    %v717 = vsel %vm25, %v693, 0.0
    %718 = vadd.xlane.f32.xlu0 %v717
    %v719 = vpop.xlane.xlu0 %718
    %v720 = vsel %vm25, %v695, 0.0
    %721 = vadd.xlane.f32.xlu0 %v720
    %v722 = vpop.xlane.xlu0 %721
    %v723 = vsel %vm25, %v697, 0.0
    %724 = vadd.xlane.f32.xlu0 %v723
    %v725 = vpop.xlane.xlu0 %724
    %v726 = vsel %vm25, %v699, 0.0
    %727 = vadd.xlane.f32.xlu0 %v726
    %v728 = vpop.xlane.xlu0 %727
    %v729 = vsel %vm25, %v701, 0.0
    %730 = vadd.xlane.f32.xlu0 %v729
    %v731 = vpop.xlane.xlu0 %730
    %v732 = vsel %vm25, %v703, 0.0
    %733 = vadd.xlane.f32.xlu0 %v732
    %v734 = vpop.xlane.xlu0 %733
    %v735 = vsel %vm25, %v705, 0.0
    %736 = vadd.xlane.f32.xlu0 %v735
    %v737 = vpop.xlane.xlu0 %736
    %v738 = vmax.f32 %v716, 1e-24
    %v739 = vmax.f32 %v719, 1e-24
    %v740 = vmax.f32 %v722, 1e-24
    %v741 = vmax.f32 %v725, 1e-24
    %v742 = vmax.f32 %v728, 1e-24
    %v743 = vmax.f32 %v731, 1e-24
    %v744 = vmax.f32 %v734, 1e-24
    %v745 = vmax.f32 %v737, 1e-24
    %v746 = vrsqrt.pop %v738
    %v747 = vrsqrt.pop %v739
    %v748 = vrsqrt.pop %v740
    %v749 = vrsqrt.pop %v741
    %v750 = vrsqrt.pop %v742
    %v751 = vrsqrt.pop %v743
    %v752 = vrsqrt.pop %v744
    %v753 = vrsqrt.pop %v745
    %v754 = vmul.f32 %v668, %v746
    %v755 = vmul.f32 %v671, %v747
    %v756 = vmul.f32 %v674, %v748
    %v757 = vmul.f32 %v677, %v749
    %v758 = vmul.f32 %v680, %v750
    %v759 = vmul.f32 %v683, %v751
    %v760 = vmul.f32 %v686, %v752
    %v761 = vmul.f32 %v689, %v753
    %v762 = vadd.f32 %v634, %v754
    %v763 = vadd.f32 %v635, %v755
    %v764 = vadd.f32 %v636, %v756
    %v765 = vadd.f32 %v637, %v757
    %v766 = vadd.f32 %v638, %v758
    %v767 = vadd.f32 %v639, %v759
    %v768 = vadd.f32 %v640, %v760
    %v769 = vadd.f32 %v641, %v761
    %770 = vrot.lane.b32.xlu0 %v370, 72
    %v771 = vpop.permute.xlu0 %770
    %772 = vrot.lane.b32.xlu0 %v371, 72
    %v773 = vpop.permute.xlu0 %772
    %774 = vrot.lane.b32.xlu0 %v372, 72
    %v775 = vpop.permute.xlu0 %774
    %776 = vrot.lane.b32.xlu0 %v373, 72
    %v777 = vpop.permute.xlu0 %776
    %778 = vrot.lane.b32.xlu0 %v374, 72
    %v779 = vpop.permute.xlu0 %778
    %780 = vrot.lane.b32.xlu0 %v375, 72
    %v781 = vpop.permute.xlu0 %780
    %782 = vrot.lane.b32.xlu0 %v376, 72
    %v783 = vpop.permute.xlu0 %782
    %784 = vrot.lane.b32.xlu0 %v377, 72
    %v785 = vpop.permute.xlu0 %784
    %v794 = vsel %vm25, %v771, 0.0
    %795 = vadd.xlane.f32.xlu0 %v794
    %v796 = vpop.xlane.xlu0 %795
    %v797 = vsel %vm25, %v773, 0.0
    %798 = vadd.xlane.f32.xlu0 %v797
    %v799 = vpop.xlane.xlu0 %798
    %v800 = vsel %vm25, %v775, 0.0
    %801 = vadd.xlane.f32.xlu0 %v800
    %v802 = vpop.xlane.xlu0 %801
    %v803 = vsel %vm25, %v777, 0.0
    %804 = vadd.xlane.f32.xlu0 %v803
    %v805 = vpop.xlane.xlu0 %804
    %v806 = vsel %vm25, %v779, 0.0
    %807 = vadd.xlane.f32.xlu0 %v806
    %v808 = vpop.xlane.xlu0 %807
    %v809 = vsel %vm25, %v781, 0.0
    %810 = vadd.xlane.f32.xlu0 %v809
    %v811 = vpop.xlane.xlu0 %810
    %v812 = vsel %vm25, %v783, 0.0
    %813 = vadd.xlane.f32.xlu0 %v812
    %v814 = vpop.xlane.xlu0 %813
    %v815 = vsel %vm25, %v785, 0.0
    %816 = vadd.xlane.f32.xlu0 %v815
    %v817 = vpop.xlane.xlu0 %816
    %818 = vrot.lane.b32.xlu0 %v334, 72
    %v819 = vpop.permute.xlu0 %818
    %820 = vrot.lane.b32.xlu0 %v335, 72
    %v821 = vpop.permute.xlu0 %820
    %822 = vrot.lane.b32.xlu0 %v336, 72
    %v823 = vpop.permute.xlu0 %822
    %824 = vrot.lane.b32.xlu0 %v337, 72
    %v825 = vpop.permute.xlu0 %824
    %826 = vrot.lane.b32.xlu0 %v338, 72
    %v827 = vpop.permute.xlu0 %826
    %828 = vrot.lane.b32.xlu0 %v339, 72
    %v829 = vpop.permute.xlu0 %828
    %830 = vrot.lane.b32.xlu0 %v340, 72
    %v831 = vpop.permute.xlu0 %830
    %832 = vrot.lane.b32.xlu0 %v341, 72
    %v833 = vpop.permute.xlu0 %832
    %v842 = vsel %vm25, %v819, 0.0
    %843 = vadd.xlane.f32.xlu0 %v842
    %v844 = vpop.xlane.xlu0 %843
    %v845 = vsel %vm25, %v821, 0.0
    %846 = vadd.xlane.f32.xlu0 %v845
    %v847 = vpop.xlane.xlu0 %846
    %v848 = vsel %vm25, %v823, 0.0
    %849 = vadd.xlane.f32.xlu0 %v848
    %v850 = vpop.xlane.xlu0 %849
    %v851 = vsel %vm25, %v825, 0.0
    %852 = vadd.xlane.f32.xlu0 %v851
    %v853 = vpop.xlane.xlu0 %852
    %v854 = vsel %vm25, %v827, 0.0
    %855 = vadd.xlane.f32.xlu0 %v854
    %v856 = vpop.xlane.xlu0 %855
    %v857 = vsel %vm25, %v829, 0.0
    %858 = vadd.xlane.f32.xlu0 %v857
    %v859 = vpop.xlane.xlu0 %858
    %v860 = vsel %vm25, %v831, 0.0
    %861 = vadd.xlane.f32.xlu0 %v860
    %v862 = vpop.xlane.xlu0 %861
    %v863 = vsel %vm25, %v833, 0.0
    %864 = vadd.xlane.f32.xlu0 %v863
    %v865 = vpop.xlane.xlu0 %864
    %v866 = vmax.f32 %v844, 1e-24
    %v867 = vmax.f32 %v847, 1e-24
    %v868 = vmax.f32 %v850, 1e-24
    %v869 = vmax.f32 %v853, 1e-24
    %v870 = vmax.f32 %v856, 1e-24
    %v871 = vmax.f32 %v859, 1e-24
    %v872 = vmax.f32 %v862, 1e-24
    %v873 = vmax.f32 %v865, 1e-24
    %v874 = vrsqrt.pop %v866
    %v875 = vrsqrt.pop %v867
    %v876 = vrsqrt.pop %v868
    %v877 = vrsqrt.pop %v869
    %v878 = vrsqrt.pop %v870
    %v879 = vrsqrt.pop %v871
    %v880 = vrsqrt.pop %v872
    %v881 = vrsqrt.pop %v873
    %v882 = vmul.f32 %v796, %v874
    %v883 = vmul.f32 %v799, %v875
    %v884 = vmul.f32 %v802, %v876
    %v885 = vmul.f32 %v805, %v877
    %v886 = vmul.f32 %v808, %v878
    %v887 = vmul.f32 %v811, %v879
    %v888 = vmul.f32 %v814, %v880
    %v889 = vmul.f32 %v817, %v881
    %v890 = vadd.f32 %v762, %v882
    %v891 = vadd.f32 %v763, %v883
    %v892 = vadd.f32 %v764, %v884
    %v893 = vadd.f32 %v765, %v885
    %v894 = vadd.f32 %v766, %v886
    %v895 = vadd.f32 %v767, %v887
    %v896 = vadd.f32 %v768, %v888
    %v897 = vadd.f32 %v769, %v889
    %899 = vrot.lane.b32.xlu0 %v19, 56
    %v900 = vpop.permute.xlu0 %899
    %s901 = vtos %v900
    %v902 = vstv %s901
    %v904 = vadd.f32 %v890, %v902
    %v905 = vadd.f32 %v891, %v902
    %v906 = vadd.f32 %v892, %v902
    %v907 = vadd.f32 %v893, %v902
    %v908 = vadd.f32 %v894, %v902
    %v909 = vadd.f32 %v895, %v902
    %v910 = vadd.f32 %v896, %v902
    %v911 = vadd.f32 %v897, %v902
    %v920 = vlaneseq
    %v921 = vand.u32 %v920, 127
    %v922 = vlaneseq
    %v923 = vshrl.u32 %v922, 7
    %v924 = vsub.s32 %v921, %v923
    %v925 = vrot.slane %v904, %v924
    %v926 = vlaneseq
    %v927 = vshrl.u32 %v926, 7
    %v928 = vsub.s32 %v921, %v927
    %v929 = vrot.slane %v905, %v928
    %v930 = vlaneseq
    %v931 = vshrl.u32 %v930, 7
    %v932 = vsub.s32 %v921, %v931
    %v933 = vrot.slane %v906, %v932
    %v934 = vlaneseq
    %v935 = vshrl.u32 %v934, 7
    %v936 = vsub.s32 %v921, %v935
    %v937 = vrot.slane %v907, %v936
    %v938 = vlaneseq
    %v939 = vshrl.u32 %v938, 7
    %v940 = vsub.s32 %v921, %v939
    %v941 = vrot.slane %v908, %v940
    %v942 = vlaneseq
    %v943 = vshrl.u32 %v942, 7
    %v944 = vsub.s32 %v921, %v943
    %v945 = vrot.slane %v909, %v944
    %v946 = vlaneseq
    %v947 = vshrl.u32 %v946, 7
    %v948 = vsub.s32 %v921, %v947
    %v949 = vrot.slane %v910, %v948
    %v950 = vlaneseq
    %v951 = vshrl.u32 %v950, 7
    %v952 = vsub.s32 %v921, %v951
    %v953 = vrot.slane %v911, %v952
    %vm954 = vcmask 1041409
    %v955 = vsel %vm954, %v929, %v925
    %vm956 = vcmask 1042434
    %v957 = vsel %vm956, %v933, %v955
    %vm958 = vcmask 1043459
    %v959 = vsel %vm958, %v937, %v957
    %vm960 = vcmask 1044484
    %v961 = vsel %vm960, %v941, %v959
    %vm962 = vcmask 1045509
    %v963 = vsel %vm962, %v945, %v961
    %vm964 = vcmask 1046534
    %v965 = vsel %vm964, %v949, %v963
    %vm966 = vcmask 1047559
    %v967 = vsel %vm966, %v953, %v965
    %v969 = vsel %vm25, %v967, -inf
    %970 = vmax.xlane.f32.xlu0 %v969
    %v971 = vpop.xlane.xlu0 %970
    %v973 = vlaneseq
    %v974 = vshrl.u32 %v973, 7
    %v975 = vsub.s32 0, %v974
    %v976 = vrot.slane %v971, %v975
    %v977 = vlaneseq
    %v978 = vshrl.u32 %v977, 7
    %v979 = vsub.s32 1, %v978
    %v980 = vrot.slane %v971, %v979
    %v981 = vlaneseq
    %v982 = vshrl.u32 %v981, 7
    %v983 = vsub.s32 2, %v982
    %v984 = vrot.slane %v971, %v983
    %v985 = vlaneseq
    %v986 = vshrl.u32 %v985, 7
    %v987 = vsub.s32 3, %v986
    %v988 = vrot.slane %v971, %v987
    %v989 = vlaneseq
    %v990 = vshrl.u32 %v989, 7
    %v991 = vsub.s32 4, %v990
    %v992 = vrot.slane %v971, %v991
    %v993 = vlaneseq
    %v994 = vshrl.u32 %v993, 7
    %v995 = vsub.s32 5, %v994
    %v996 = vrot.slane %v971, %v995
    %v997 = vlaneseq
    %v998 = vshrl.u32 %v997, 7
    %v999 = vsub.s32 6, %v998
    %v1000 = vrot.slane %v971, %v999
    %v1001 = vlaneseq
    %v1002 = vshrl.u32 %v1001, 7
    %v1003 = vsub.s32 7, %v1002
    %v1004 = vrot.slane %v971, %v1003
    %v1013 = vsub.f32 %v904, %v976
    %v1014 = vsub.f32 %v905, %v980
    %v1015 = vsub.f32 %v906, %v984
    %v1016 = vsub.f32 %v907, %v988
    %v1017 = vsub.f32 %v908, %v992
    %v1018 = vsub.f32 %v909, %v996
    %v1019 = vsub.f32 %v910, %v1000
    %v1020 = vsub.f32 %v911, %v1004
    %v1021 = vmul.f32 %v1013, 1.442695
    %v1022 = vpow.pop %v1021
    %v1023 = vmul.f32 %v1014, 1.442695
    %v1024 = vpow.pop %v1023
    %v1025 = vmul.f32 %v1015, 1.442695
    %v1026 = vpow.pop %v1025
    %v1027 = vmul.f32 %v1016, 1.442695
    %v1028 = vpow.pop %v1027
    %v1029 = vmul.f32 %v1017, 1.442695
    %v1030 = vpow.pop %v1029
    %v1031 = vmul.f32 %v1018, 1.442695
    %v1032 = vpow.pop %v1031
    %v1033 = vmul.f32 %v1019, 1.442695
    %v1034 = vpow.pop %v1033
    %v1035 = vmul.f32 %v1020, 1.442695
    %v1036 = vpow.pop %v1035
    %1045 = vset.pattern.permute.xlu0 0
    %1046 = vperm.xlu0 %1045, %v1022
    %v1047 = vpop.permute.xlu0 %1046
    %1048 = vset.pattern.permute.xlu0 0
    %1049 = vperm.xlu0 %1048, %v1024
    %v1050 = vpop.permute.xlu0 %1049
    %1051 = vset.pattern.permute.xlu0 0
    %1052 = vperm.xlu0 %1051, %v1026
    %v1053 = vpop.permute.xlu0 %1052
    %1054 = vset.pattern.permute.xlu0 0
    %1055 = vperm.xlu0 %1054, %v1028
    %v1056 = vpop.permute.xlu0 %1055
    %1057 = vset.pattern.permute.xlu0 0
    %1058 = vperm.xlu0 %1057, %v1030
    %v1059 = vpop.permute.xlu0 %1058
    %1060 = vset.pattern.permute.xlu0 0
    %1061 = vperm.xlu0 %1060, %v1032
    %v1062 = vpop.permute.xlu0 %1061
    %1063 = vset.pattern.permute.xlu0 0
    %1064 = vperm.xlu0 %1063, %v1034
    %v1065 = vpop.permute.xlu0 %1064
    %1066 = vset.pattern.permute.xlu0 0
    %1067 = vperm.xlu0 %1066, %v1036
    %v1068 = vpop.permute.xlu0 %1067
    %v1069 = vlaneseq
    %v1070 = vshrl.u32 %v1069, 7
    %v1071 = vsub.s32 %v921, %v1070
    %v1072 = vrot.slane %v1047, %v1071
    %v1073 = vlaneseq
    %v1074 = vshrl.u32 %v1073, 7
    %v1075 = vsub.s32 %v921, %v1074
    %v1076 = vrot.slane %v1050, %v1075
    %v1077 = vlaneseq
    %v1078 = vshrl.u32 %v1077, 7
    %v1079 = vsub.s32 %v921, %v1078
    %v1080 = vrot.slane %v1053, %v1079
    %v1081 = vlaneseq
    %v1082 = vshrl.u32 %v1081, 7
    %v1083 = vsub.s32 %v921, %v1082
    %v1084 = vrot.slane %v1056, %v1083
    %v1085 = vlaneseq
    %v1086 = vshrl.u32 %v1085, 7
    %v1087 = vsub.s32 %v921, %v1086
    %v1088 = vrot.slane %v1059, %v1087
    %v1089 = vlaneseq
    %v1090 = vshrl.u32 %v1089, 7
    %v1091 = vsub.s32 %v921, %v1090
    %v1092 = vrot.slane %v1062, %v1091
    %v1093 = vlaneseq
    %v1094 = vshrl.u32 %v1093, 7
    %v1095 = vsub.s32 %v921, %v1094
    %v1096 = vrot.slane %v1065, %v1095
    %v1097 = vlaneseq
    %v1098 = vshrl.u32 %v1097, 7
    %v1099 = vsub.s32 %v921, %v1098
    %v1100 = vrot.slane %v1068, %v1099
    %v1101 = vsel %vm954, %v1076, %v1072
    %v1102 = vsel %vm956, %v1080, %v1101
    %v1103 = vsel %vm958, %v1084, %v1102
    %v1104 = vsel %vm960, %v1088, %v1103
    %v1105 = vsel %vm962, %v1092, %v1104
    %v1106 = vsel %vm964, %v1096, %v1105
    %v1107 = vsel %vm966, %v1100, %v1106
    %v1109 = vsel %vm25, %v1107, 0.0
    %1110 = vadd.xlane.f32.xlu0 %v1109
    %v1111 = vpop.xlane.xlu0 %1110
    %v1112 = vrcp.pop %v1111
    %v1114 = vlaneseq
    %v1115 = vshrl.u32 %v1114, 7
    %v1116 = vsub.s32 0, %v1115
    %v1117 = vrot.slane %v1112, %v1116
    %v1118 = vlaneseq
    %v1119 = vshrl.u32 %v1118, 7
    %v1120 = vsub.s32 1, %v1119
    %v1121 = vrot.slane %v1112, %v1120
    %v1122 = vlaneseq
    %v1123 = vshrl.u32 %v1122, 7
    %v1124 = vsub.s32 2, %v1123
    %v1125 = vrot.slane %v1112, %v1124
    %v1126 = vlaneseq
    %v1127 = vshrl.u32 %v1126, 7
    %v1128 = vsub.s32 3, %v1127
    %v1129 = vrot.slane %v1112, %v1128
    %v1130 = vlaneseq
    %v1131 = vshrl.u32 %v1130, 7
    %v1132 = vsub.s32 4, %v1131
    %v1133 = vrot.slane %v1112, %v1132
    %v1134 = vlaneseq
    %v1135 = vshrl.u32 %v1134, 7
    %v1136 = vsub.s32 5, %v1135
    %v1137 = vrot.slane %v1112, %v1136
    %v1138 = vlaneseq
    %v1139 = vshrl.u32 %v1138, 7
    %v1140 = vsub.s32 6, %v1139
    %v1141 = vrot.slane %v1112, %v1140
    %v1142 = vlaneseq
    %v1143 = vshrl.u32 %v1142, 7
    %v1144 = vsub.s32 7, %v1143
    %v1145 = vrot.slane %v1112, %v1144
    %v1154 = vmul.f32 %v1022, %v1117
    %v1155 = vmul.f32 %v1024, %v1121
    %v1156 = vmul.f32 %v1026, %v1125
    %v1157 = vmul.f32 %v1028, %v1129
    %v1158 = vmul.f32 %v1030, %v1133
    %v1159 = vmul.f32 %v1032, %v1137
    %v1160 = vmul.f32 %v1034, %v1141
    %v1161 = vmul.f32 %v1036, %v1145
    %1170 = vset.pattern.permute.xlu0 0
    %1171 = vperm.xlu0 %1170, %v1154
    %v1172 = vpop.permute.xlu0 %1171
    %1173 = vset.pattern.permute.xlu0 0
    %1174 = vperm.xlu0 %1173, %v1155
    %v1175 = vpop.permute.xlu0 %1174
    %1176 = vset.pattern.permute.xlu0 0
    %1177 = vperm.xlu0 %1176, %v1156
    %v1178 = vpop.permute.xlu0 %1177
    %1179 = vset.pattern.permute.xlu0 0
    %1180 = vperm.xlu0 %1179, %v1157
    %v1181 = vpop.permute.xlu0 %1180
    %1182 = vset.pattern.permute.xlu0 0
    %1183 = vperm.xlu0 %1182, %v1158
    %v1184 = vpop.permute.xlu0 %1183
    %1185 = vset.pattern.permute.xlu0 0
    %1186 = vperm.xlu0 %1185, %v1159
    %v1187 = vpop.permute.xlu0 %1186
    %1188 = vset.pattern.permute.xlu0 0
    %1189 = vperm.xlu0 %1188, %v1160
    %v1190 = vpop.permute.xlu0 %1189
    %1191 = vset.pattern.permute.xlu0 0
    %1192 = vperm.xlu0 %1191, %v1161
    %v1193 = vpop.permute.xlu0 %1192
    %v1194 = vlaneseq
    %v1195 = vshrl.u32 %v1194, 7
    %v1196 = vsub.s32 %v921, %v1195
    %v1197 = vrot.slane %v1172, %v1196
    %v1198 = vlaneseq
    %v1199 = vshrl.u32 %v1198, 7
    %v1200 = vsub.s32 %v921, %v1199
    %v1201 = vrot.slane %v1175, %v1200
    %v1202 = vlaneseq
    %v1203 = vshrl.u32 %v1202, 7
    %v1204 = vsub.s32 %v921, %v1203
    %v1205 = vrot.slane %v1178, %v1204
    %v1206 = vlaneseq
    %v1207 = vshrl.u32 %v1206, 7
    %v1208 = vsub.s32 %v921, %v1207
    %v1209 = vrot.slane %v1181, %v1208
    %v1210 = vlaneseq
    %v1211 = vshrl.u32 %v1210, 7
    %v1212 = vsub.s32 %v921, %v1211
    %v1213 = vrot.slane %v1184, %v1212
    %v1214 = vlaneseq
    %v1215 = vshrl.u32 %v1214, 7
    %v1216 = vsub.s32 %v921, %v1215
    %v1217 = vrot.slane %v1187, %v1216
    %v1218 = vlaneseq
    %v1219 = vshrl.u32 %v1218, 7
    %v1220 = vsub.s32 %v921, %v1219
    %v1221 = vrot.slane %v1190, %v1220
    %v1222 = vlaneseq
    %v1223 = vshrl.u32 %v1222, 7
    %v1224 = vsub.s32 %v921, %v1223
    %v1225 = vrot.slane %v1193, %v1224
    %v1226 = vsel %vm954, %v1201, %v1197
    %v1227 = vsel %vm956, %v1205, %v1226
    %v1228 = vsel %vm958, %v1209, %v1227
    %v1229 = vsel %vm960, %v1213, %v1228
    %v1230 = vsel %vm962, %v1217, %v1229
    %v1231 = vsel %vm964, %v1221, %v1230
    %v1232 = vsel %vm966, %v1225, %v1231
    %v1233 = vsel %vm25, %v1232, 0
    %1235 = vmatprep.subr.mxu0 0.0
    %1236 = vmatpush1.msra.mxu0 %v184
    %1237 = vmatprep.subr.mxu0 0.0
    %1238 = vmatpush1.msra.mxu0 0.0
    %1239 = vmatprep.subr.mxu0 0.0
    %1240 = vmatpush1.msra.mxu0 0.0
    %1241 = vmatprep.subr.mxu0 0.0
    %1242 = vmatpush1.msra.mxu0 0.0
    %1243 = vmatprep.subr.mxu0 0.0
    %1244 = vmatpush1.msra.mxu0 0.0
    %1245 = vmatprep.subr.mxu0 0.0
    %1246 = vmatpush1.msra.mxu0 0.0
    %1247 = vmatprep.subr.mxu0 0.0
    %1248 = vmatpush1.msra.mxu0 0.0
    %1249 = vmatprep.subr.mxu0 0.0
    %1250 = vmatpush1.msra.mxu0 0.0
    %1251 = vmatprep.subr.mxu0 0.0
    %1252 = vmatpush1.msra.mxu0 0.0
    %1253 = vmatprep.subr.mxu0 0.0
    %1254 = vmatpush1.msra.mxu0 0.0
    %1255 = vmatprep.subr.mxu0 0.0
    %1256 = vmatpush1.msra.mxu0 0.0
    %1257 = vmatprep.subr.mxu0 0.0
    %1258 = vmatpush1.msra.mxu0 0.0
    %1259 = vmatprep.subr.mxu0 0.0
    %1260 = vmatpush1.msra.mxu0 0.0
    %1261 = vmatprep.subr.mxu0 0.0
    %1262 = vmatpush1.msra.mxu0 0.0
    %1263 = vmatprep.subr.mxu0 0.0
    %1264 = vmatpush1.msra.mxu0 0.0
    %1265 = vmatprep.subr.mxu0 0.0
    %1266 = vmatpush1.msra.mxu0 0.0
    %1267 = vmatprep.subr.mxu0 0.0
    %1268 = vmatpush1.msra.mxu0 0.0
    %1269 = vmatprep.subr.mxu0 0.0
    %1270 = vmatpush1.msra.mxu0 0.0
    %1271 = vmatprep.subr.mxu0 0.0
    %1272 = vmatpush1.msra.mxu0 0.0
    %1273 = vmatprep.subr.mxu0 0.0
    %1274 = vmatpush1.msra.mxu0 0.0
    %1275 = vmatprep.subr.mxu0 0.0
    %1276 = vmatpush1.msra.mxu0 0.0
    %1277 = vmatprep.subr.mxu0 0.0
    %1278 = vmatpush1.msra.mxu0 0.0
    %1279 = vmatprep.subr.mxu0 0.0
    %1280 = vmatpush1.msra.mxu0 0.0
    %1281 = vmatprep.subr.mxu0 0.0
    %1282 = vmatpush1.msra.mxu0 0.0
    %1283 = vmatprep.subr.mxu0 0.0
    %1284 = vmatpush1.msra.mxu0 0.0
    %1285 = vmatprep.subr.mxu0 0.0
    %1286 = vmatpush1.msra.mxu0 0.0
    %1287 = vmatprep.subr.mxu0 0.0
    %1288 = vmatpush1.msra.mxu0 0.0
    %1289 = vmatprep.subr.mxu0 0.0
    %1290 = vmatpush1.msra.mxu0 0.0
    %1291 = vmatprep.subr.mxu0 0.0
    %1292 = vmatpush1.msra.mxu0 0.0
    %1293 = vmatprep.subr.mxu0 0.0
    %1294 = vmatpush1.msra.mxu0 0.0
    %1295 = vmatprep.subr.mxu0 0.0
    %1296 = vmatpush1.msra.mxu0 0.0
    %1297 = vmatprep.subr.mxu0 0.0
    %1298 = vmatpush1.msra.mxu0 0.0
    %1299 = vmatprep.mubr.f32.mxu0 0.0
    %1300 = vmatmul.mubr.f32.gmra.mrb[0].mxu0 %v1233
    %v1301 = vpop.f32.mrb[0].mxu0
    %v1302 = vadd.f32 0.0, %v1301
    %v1303 = vpop.f32.mrb[0].mxu0
    %1304 = vdwg.mxu0
    %1306 = vrot.lane.b32.xlu0 %v18, 120
    %v1307 = vpop.permute.xlu0 %1306
    %1309 = vrot.lane.b32.xlu0 %v1302, 120
    %v1310 = vpop.permute.xlu0 %1309
    %v1312 = vsel %vm25, %v1307, 0
    %1314 = vmatprep.subr.mxu0 0.0
    %1315 = vmatpush1.msra.mxu0 %v1310
    %1316 = vmatprep.subr.mxu0 0.0
    %1317 = vmatpush1.msra.mxu0 0.0
    %1318 = vmatprep.subr.mxu0 0.0
    %1319 = vmatpush1.msra.mxu0 0.0
    %1320 = vmatprep.subr.mxu0 0.0
    %1321 = vmatpush1.msra.mxu0 0.0
    %1322 = vmatprep.subr.mxu0 0.0
    %1323 = vmatpush1.msra.mxu0 0.0
    %1324 = vmatprep.subr.mxu0 0.0
    %1325 = vmatpush1.msra.mxu0 0.0
    %1326 = vmatprep.subr.mxu0 0.0
    %1327 = vmatpush1.msra.mxu0 0.0
    %1328 = vmatprep.subr.mxu0 0.0
    %1329 = vmatpush1.msra.mxu0 0.0
    %1330 = vmatprep.subr.mxu0 0.0
    %1331 = vmatpush1.msra.mxu0 0.0
    %1332 = vmatprep.subr.mxu0 0.0
    %1333 = vmatpush1.msra.mxu0 0.0
    %1334 = vmatprep.subr.mxu0 0.0
    %1335 = vmatpush1.msra.mxu0 0.0
    %1336 = vmatprep.subr.mxu0 0.0
    %1337 = vmatpush1.msra.mxu0 0.0
    %1338 = vmatprep.subr.mxu0 0.0
    %1339 = vmatpush1.msra.mxu0 0.0
    %1340 = vmatprep.subr.mxu0 0.0
    %1341 = vmatpush1.msra.mxu0 0.0
    %1342 = vmatprep.subr.mxu0 0.0
    %1343 = vmatpush1.msra.mxu0 0.0
    %1344 = vmatprep.subr.mxu0 0.0
    %1345 = vmatpush1.msra.mxu0 0.0
    %1346 = vmatprep.subr.mxu0 0.0
    %1347 = vmatpush1.msra.mxu0 0.0
    %1348 = vmatprep.subr.mxu0 0.0
    %1349 = vmatpush1.msra.mxu0 0.0
    %1350 = vmatprep.subr.mxu0 0.0
    %1351 = vmatpush1.msra.mxu0 0.0
    %1352 = vmatprep.subr.mxu0 0.0
    %1353 = vmatpush1.msra.mxu0 0.0
    %1354 = vmatprep.subr.mxu0 0.0
    %1355 = vmatpush1.msra.mxu0 0.0
    %1356 = vmatprep.subr.mxu0 0.0
    %1357 = vmatpush1.msra.mxu0 0.0
    %1358 = vmatprep.subr.mxu0 0.0
    %1359 = vmatpush1.msra.mxu0 0.0
    %1360 = vmatprep.subr.mxu0 0.0
    %1361 = vmatpush1.msra.mxu0 0.0
    %1362 = vmatprep.subr.mxu0 0.0
    %1363 = vmatpush1.msra.mxu0 0.0
    %1364 = vmatprep.subr.mxu0 0.0
    %1365 = vmatpush1.msra.mxu0 0.0
    %1366 = vmatprep.subr.mxu0 0.0
    %1367 = vmatpush1.msra.mxu0 0.0
    %1368 = vmatprep.subr.mxu0 0.0
    %1369 = vmatpush1.msra.mxu0 0.0
    %1370 = vmatprep.subr.mxu0 0.0
    %1371 = vmatpush1.msra.mxu0 0.0
    %1372 = vmatprep.subr.mxu0 0.0
    %1373 = vmatpush1.msra.mxu0 0.0
    %1374 = vmatprep.subr.mxu0 0.0
    %1375 = vmatpush1.msra.mxu0 0.0
    %1376 = vmatprep.subr.mxu0 0.0
    %1377 = vmatpush1.msra.mxu0 0.0
    %1378 = vmatprep.mubr.f32.mxu0 0.0
    %1379 = vmatmul.mubr.f32.gmra.mrb[0].mxu0 %v1312
    %v1380 = vpop.f32.mrb[0].mxu0
    %v1381 = vadd.f32 0.0, %v1380
    %v1382 = vpop.f32.mrb[0].mxu0
    %1383 = vdwg.mxu0
    %v1384 = vsel %vm25, %v18, 0
    %1386 = vmatprep.subr.mxu0 0.0
    %1387 = vmatpush1.msra.mxu0 %v1302
    %1388 = vmatprep.subr.mxu0 0.0
    %1389 = vmatpush1.msra.mxu0 0.0
    %1390 = vmatprep.subr.mxu0 0.0
    %1391 = vmatpush1.msra.mxu0 0.0
    %1392 = vmatprep.subr.mxu0 0.0
    %1393 = vmatpush1.msra.mxu0 0.0
    %1394 = vmatprep.subr.mxu0 0.0
    %1395 = vmatpush1.msra.mxu0 0.0
    %1396 = vmatprep.subr.mxu0 0.0
    %1397 = vmatpush1.msra.mxu0 0.0
    %1398 = vmatprep.subr.mxu0 0.0
    %1399 = vmatpush1.msra.mxu0 0.0
    %1400 = vmatprep.subr.mxu0 0.0
    %1401 = vmatpush1.msra.mxu0 0.0
    %1402 = vmatprep.subr.mxu0 0.0
    %1403 = vmatpush1.msra.mxu0 0.0
    %1404 = vmatprep.subr.mxu0 0.0
    %1405 = vmatpush1.msra.mxu0 0.0
    %1406 = vmatprep.subr.mxu0 0.0
    %1407 = vmatpush1.msra.mxu0 0.0
    %1408 = vmatprep.subr.mxu0 0.0
    %1409 = vmatpush1.msra.mxu0 0.0
    %1410 = vmatprep.subr.mxu0 0.0
    %1411 = vmatpush1.msra.mxu0 0.0
    %1412 = vmatprep.subr.mxu0 0.0
    %1413 = vmatpush1.msra.mxu0 0.0
    %1414 = vmatprep.subr.mxu0 0.0
    %1415 = vmatpush1.msra.mxu0 0.0
    %1416 = vmatprep.subr.mxu0 0.0
    %1417 = vmatpush1.msra.mxu0 0.0
    %1418 = vmatprep.subr.mxu0 0.0
    %1419 = vmatpush1.msra.mxu0 0.0
    %1420 = vmatprep.subr.mxu0 0.0
    %1421 = vmatpush1.msra.mxu0 0.0
    %1422 = vmatprep.subr.mxu0 0.0
    %1423 = vmatpush1.msra.mxu0 0.0
    %1424 = vmatprep.subr.mxu0 0.0
    %1425 = vmatpush1.msra.mxu0 0.0
    %1426 = vmatprep.subr.mxu0 0.0
    %1427 = vmatpush1.msra.mxu0 0.0
    %1428 = vmatprep.subr.mxu0 0.0
    %1429 = vmatpush1.msra.mxu0 0.0
    %1430 = vmatprep.subr.mxu0 0.0
    %1431 = vmatpush1.msra.mxu0 0.0
    %1432 = vmatprep.subr.mxu0 0.0
    %1433 = vmatpush1.msra.mxu0 0.0
    %1434 = vmatprep.subr.mxu0 0.0
    %1435 = vmatpush1.msra.mxu0 0.0
    %1436 = vmatprep.subr.mxu0 0.0
    %1437 = vmatpush1.msra.mxu0 0.0
    %1438 = vmatprep.subr.mxu0 0.0
    %1439 = vmatpush1.msra.mxu0 0.0
    %1440 = vmatprep.subr.mxu0 0.0
    %1441 = vmatpush1.msra.mxu0 0.0
    %1442 = vmatprep.subr.mxu0 0.0
    %1443 = vmatpush1.msra.mxu0 0.0
    %1444 = vmatprep.subr.mxu0 0.0
    %1445 = vmatpush1.msra.mxu0 0.0
    %1446 = vmatprep.subr.mxu0 0.0
    %1447 = vmatpush1.msra.mxu0 0.0
    %1448 = vmatprep.subr.mxu0 0.0
    %1449 = vmatpush1.msra.mxu0 0.0
    %1450 = vmatprep.mubr.f32.mxu0 0.0
    %1451 = vmatmul.mubr.f32.gmra.mrb[0].mxu0 %v1384
    %v1452 = vpop.f32.mrb[0].mxu0
    %v1453 = vadd.f32 %v1381, %v1452
    %v1454 = vpop.f32.mrb[0].mxu0
    %1455 = vdwg.mxu0
    %1456 = vrot.lane.b32.xlu0 %v18, 112
    %v1457 = vpop.permute.xlu0 %1456
    %1458 = vrot.lane.b32.xlu0 %v1302, 112
    %v1459 = vpop.permute.xlu0 %1458
    %v1461 = vsel %vm25, %v1457, 0
    %1463 = vmatprep.subr.mxu0 0.0
    %1464 = vmatpush1.msra.mxu0 %v1459
    %1465 = vmatprep.subr.mxu0 0.0
    %1466 = vmatpush1.msra.mxu0 0.0
    %1467 = vmatprep.subr.mxu0 0.0
    %1468 = vmatpush1.msra.mxu0 0.0
    %1469 = vmatprep.subr.mxu0 0.0
    %1470 = vmatpush1.msra.mxu0 0.0
    %1471 = vmatprep.subr.mxu0 0.0
    %1472 = vmatpush1.msra.mxu0 0.0
    %1473 = vmatprep.subr.mxu0 0.0
    %1474 = vmatpush1.msra.mxu0 0.0
    %1475 = vmatprep.subr.mxu0 0.0
    %1476 = vmatpush1.msra.mxu0 0.0
    %1477 = vmatprep.subr.mxu0 0.0
    %1478 = vmatpush1.msra.mxu0 0.0
    %1479 = vmatprep.subr.mxu0 0.0
    %1480 = vmatpush1.msra.mxu0 0.0
    %1481 = vmatprep.subr.mxu0 0.0
    %1482 = vmatpush1.msra.mxu0 0.0
    %1483 = vmatprep.subr.mxu0 0.0
    %1484 = vmatpush1.msra.mxu0 0.0
    %1485 = vmatprep.subr.mxu0 0.0
    %1486 = vmatpush1.msra.mxu0 0.0
    %1487 = vmatprep.subr.mxu0 0.0
    %1488 = vmatpush1.msra.mxu0 0.0
    %1489 = vmatprep.subr.mxu0 0.0
    %1490 = vmatpush1.msra.mxu0 0.0
    %1491 = vmatprep.subr.mxu0 0.0
    %1492 = vmatpush1.msra.mxu0 0.0
    %1493 = vmatprep.subr.mxu0 0.0
    %1494 = vmatpush1.msra.mxu0 0.0
    %1495 = vmatprep.subr.mxu0 0.0
    %1496 = vmatpush1.msra.mxu0 0.0
    %1497 = vmatprep.subr.mxu0 0.0
    %1498 = vmatpush1.msra.mxu0 0.0
    %1499 = vmatprep.subr.mxu0 0.0
    %1500 = vmatpush1.msra.mxu0 0.0
    %1501 = vmatprep.subr.mxu0 0.0
    %1502 = vmatpush1.msra.mxu0 0.0
    %1503 = vmatprep.subr.mxu0 0.0
    %1504 = vmatpush1.msra.mxu0 0.0
    %1505 = vmatprep.subr.mxu0 0.0
    %1506 = vmatpush1.msra.mxu0 0.0
    %1507 = vmatprep.subr.mxu0 0.0
    %1508 = vmatpush1.msra.mxu0 0.0
    %1509 = vmatprep.subr.mxu0 0.0
    %1510 = vmatpush1.msra.mxu0 0.0
    %1511 = vmatprep.subr.mxu0 0.0
    %1512 = vmatpush1.msra.mxu0 0.0
    %1513 = vmatprep.subr.mxu0 0.0
    %1514 = vmatpush1.msra.mxu0 0.0
    %1515 = vmatprep.subr.mxu0 0.0
    %1516 = vmatpush1.msra.mxu0 0.0
    %1517 = vmatprep.subr.mxu0 0.0
    %1518 = vmatpush1.msra.mxu0 0.0
    %1519 = vmatprep.subr.mxu0 0.0
    %1520 = vmatpush1.msra.mxu0 0.0
    %1521 = vmatprep.subr.mxu0 0.0
    %1522 = vmatpush1.msra.mxu0 0.0
    %1523 = vmatprep.subr.mxu0 0.0
    %1524 = vmatpush1.msra.mxu0 0.0
    %1525 = vmatprep.subr.mxu0 0.0
    %1526 = vmatpush1.msra.mxu0 0.0
    %1527 = vmatprep.mubr.f32.mxu0 0.0
    %1528 = vmatmul.mubr.f32.gmra.mrb[0].mxu0 %v1461
    %v1529 = vpop.f32.mrb[0].mxu0
    %v1530 = vadd.f32 0.0, %v1529
    %v1531 = vpop.f32.mrb[0].mxu0
    %1532 = vdwg.mxu0
    %v1533 = vadd.f32 %v1453, %v1530
    %1534 = vrot.lane.b32.xlu0 %v18, 104
    %v1535 = vpop.permute.xlu0 %1534
    %1536 = vrot.lane.b32.xlu0 %v1302, 104
    %v1537 = vpop.permute.xlu0 %1536
    %v1539 = vsel %vm25, %v1535, 0
    %1541 = vmatprep.subr.mxu0 0.0
    %1542 = vmatpush1.msra.mxu0 %v1537
    %1543 = vmatprep.subr.mxu0 0.0
    %1544 = vmatpush1.msra.mxu0 0.0
    %1545 = vmatprep.subr.mxu0 0.0
    %1546 = vmatpush1.msra.mxu0 0.0
    %1547 = vmatprep.subr.mxu0 0.0
    %1548 = vmatpush1.msra.mxu0 0.0
    %1549 = vmatprep.subr.mxu0 0.0
    %1550 = vmatpush1.msra.mxu0 0.0
    %1551 = vmatprep.subr.mxu0 0.0
    %1552 = vmatpush1.msra.mxu0 0.0
    %1553 = vmatprep.subr.mxu0 0.0
    %1554 = vmatpush1.msra.mxu0 0.0
    %1555 = vmatprep.subr.mxu0 0.0
    %1556 = vmatpush1.msra.mxu0 0.0
    %1557 = vmatprep.subr.mxu0 0.0
    %1558 = vmatpush1.msra.mxu0 0.0
    %1559 = vmatprep.subr.mxu0 0.0
    %1560 = vmatpush1.msra.mxu0 0.0
    %1561 = vmatprep.subr.mxu0 0.0
    %1562 = vmatpush1.msra.mxu0 0.0
    %1563 = vmatprep.subr.mxu0 0.0
    %1564 = vmatpush1.msra.mxu0 0.0
    %1565 = vmatprep.subr.mxu0 0.0
    %1566 = vmatpush1.msra.mxu0 0.0
    %1567 = vmatprep.subr.mxu0 0.0
    %1568 = vmatpush1.msra.mxu0 0.0
    %1569 = vmatprep.subr.mxu0 0.0
    %1570 = vmatpush1.msra.mxu0 0.0
    %1571 = vmatprep.subr.mxu0 0.0
    %1572 = vmatpush1.msra.mxu0 0.0
    %1573 = vmatprep.subr.mxu0 0.0
    %1574 = vmatpush1.msra.mxu0 0.0
    %1575 = vmatprep.subr.mxu0 0.0
    %1576 = vmatpush1.msra.mxu0 0.0
    %1577 = vmatprep.subr.mxu0 0.0
    %1578 = vmatpush1.msra.mxu0 0.0
    %1579 = vmatprep.subr.mxu0 0.0
    %1580 = vmatpush1.msra.mxu0 0.0
    %1581 = vmatprep.subr.mxu0 0.0
    %1582 = vmatpush1.msra.mxu0 0.0
    %1583 = vmatprep.subr.mxu0 0.0
    %1584 = vmatpush1.msra.mxu0 0.0
    %1585 = vmatprep.subr.mxu0 0.0
    %1586 = vmatpush1.msra.mxu0 0.0
    %1587 = vmatprep.subr.mxu0 0.0
    %1588 = vmatpush1.msra.mxu0 0.0
    %1589 = vmatprep.subr.mxu0 0.0
    %1590 = vmatpush1.msra.mxu0 0.0
    %1591 = vmatprep.subr.mxu0 0.0
    %1592 = vmatpush1.msra.mxu0 0.0
    %1593 = vmatprep.subr.mxu0 0.0
    %1594 = vmatpush1.msra.mxu0 0.0
    %1595 = vmatprep.subr.mxu0 0.0
    %1596 = vmatpush1.msra.mxu0 0.0
    %1597 = vmatprep.subr.mxu0 0.0
    %1598 = vmatpush1.msra.mxu0 0.0
    %1599 = vmatprep.subr.mxu0 0.0
    %1600 = vmatpush1.msra.mxu0 0.0
    %1601 = vmatprep.subr.mxu0 0.0
    %1602 = vmatpush1.msra.mxu0 0.0
    %1603 = vmatprep.subr.mxu0 0.0
    %1604 = vmatpush1.msra.mxu0 0.0
    %1605 = vmatprep.mubr.f32.mxu0 0.0
    %1606 = vmatmul.mubr.f32.gmra.mrb[0].mxu0 %v1539
    %v1607 = vpop.f32.mrb[0].mxu0
    %v1608 = vadd.f32 0.0, %v1607
    %v1609 = vpop.f32.mrb[0].mxu0
    %1610 = vdwg.mxu0
    %v1611 = vadd.f32 %v1533, %v1608
    %1612 = vxpose.xlu0.b32.start [1/16] %v1611, 128
    %1613 = vxpose.xlu0.b32.cont [2/16] 0.0, 128
    %1614 = vxpose.xlu0.b32.cont [3/16] 0.0, 128
    %1615 = vxpose.xlu0.b32.cont [4/16] 0.0, 128
    %1616 = vxpose.xlu0.b32.cont [5/16] 0.0, 128
    %1617 = vxpose.xlu0.b32.cont [6/16] 0.0, 128
    %1618 = vxpose.xlu0.b32.cont [7/16] 0.0, 128
    %1619 = vxpose.xlu0.b32.cont [8/16] 0.0, 128
    %1620 = vxpose.xlu0.b32.cont [9/16] 0.0, 128
    %1621 = vxpose.xlu0.b32.cont [10/16] 0.0, 128
    %1622 = vxpose.xlu0.b32.cont [11/16] 0.0, 128
    %1623 = vxpose.xlu0.b32.cont [12/16] 0.0, 128
    %1624 = vxpose.xlu0.b32.cont [13/16] 0.0, 128
    %1625 = vxpose.xlu0.b32.cont [14/16] 0.0, 128
    %1626 = vxpose.xlu0.b32.cont [15/16] 0.0, 128
    %1627 = vxpose.xlu0.b32.end [16/16] 0.0, 128
    %v1628 = vpop.trf.xlu0
    %v1629 = vpop.trf.xlu0
    %v1630 = vpop.trf.xlu0
    %v1631 = vpop.trf.xlu0
    %v1632 = vpop.trf.xlu0
    %v1633 = vpop.trf.xlu0
    %v1634 = vpop.trf.xlu0
    %v1635 = vpop.trf.xlu0
    %v1636 = vpop.trf.xlu0
    %v1637 = vpop.trf.xlu0
    %v1638 = vpop.trf.xlu0
    %v1639 = vpop.trf.xlu0
    %v1640 = vpop.trf.xlu0
    %v1641 = vpop.trf.xlu0
    %v1642 = vpop.trf.xlu0
    %v1643 = vpop.trf.xlu0
    %1645 = vrot.lane.b32.xlu0 %v24, 64
    %v1646 = vpop.permute.xlu0 %1645
    %v1648 = vadd.f32 %v1628, %v1646
    %1649 = vset.pattern.permute.xlu0 80
    %1650 = vperm.xlu0 %1649, %v19
    %v1651 = vpop.permute.xlu0 %1650
    %v1653 = vmul.f32 %v1648, %v1651
    %1654 = vset.pattern.permute.xlu0 88
    %1655 = vperm.xlu0 %1654, %v19
    %v1656 = vpop.permute.xlu0 %1655
    %v1658 = vadd.f32 %v1653, %v1656
    %v1659 = vmax.f32 %v1658, 0.0
    %v1660 = vadd.f32 %v1659, %v14
    %1661 = vst.msk [vmem:[#allocation2] sm:$0xff] %vm25, %v1660
    %v1663 = vcombine.high %v189, %v189
    %v1665 = vunpack.c.l.s4 1966171168
    %v1666 = vunpack.c.0.s8 %v1665
    %v1667 = vlaneseq
    %v1668 = vshrl.u32 %v1667, 7
    %v1669 = vsub.s32 %v1666, %v1668
    %v1670 = vrot.slane %v189, %v1669
    %v1672 = vunpack.c.l.s4 1966171168
    %v1673 = vunpack.c.0.s8 %v1672
    %v1674 = vlaneseq
    %v1675 = vshrl.u32 %v1674, 7
    %v1676 = vsub.s32 %v1673, %v1675
    %v1677 = vrot.slane %v1663, %v1676
    %v1678 = vcombine.high %v1670, %v1670
    %v1679 = vcombine.high %v1677, %v1677
    %v1681 = vunpack.c.l.s4 1966171168
    %v1682 = vunpack.c.0.s8 %v1681
    %v1683 = vlaneseq
    %v1684 = vshrl.u32 %v1683, 7
    %v1685 = vsub.s32 %v1682, %v1684
    %v1686 = vrot.slane %v1670, %v1685
    %v1688 = vunpack.c.l.s4 1966171168
    %v1689 = vunpack.c.0.s8 %v1688
    %v1690 = vlaneseq
    %v1691 = vshrl.u32 %v1690, 7
    %v1692 = vsub.s32 %v1689, %v1691
    %v1693 = vrot.slane %v1677, %v1692
    %v1695 = vunpack.c.l.s4 1966171168
    %v1696 = vunpack.c.0.s8 %v1695
    %v1697 = vlaneseq
    %v1698 = vshrl.u32 %v1697, 7
    %v1699 = vsub.s32 %v1696, %v1698
    %v1700 = vrot.slane %v1678, %v1699
    %v1702 = vunpack.c.l.s4 1966171168
    %v1703 = vunpack.c.0.s8 %v1702
    %v1704 = vlaneseq
    %v1705 = vshrl.u32 %v1704, 7
    %v1706 = vsub.s32 %v1703, %v1705
    %v1707 = vrot.slane %v1679, %v1706
    %v1708 = vcombine.high %v1686, %v1686
    %v1709 = vcombine.high %v1693, %v1693
    %v1710 = vcombine.high %v1700, %v1700
    %v1711 = vcombine.high %v1707, %v1707
    %v1712 = vlaneseq
    %v1713 = vshrl.u32 %v1712, 7
    %v1714 = vsub.s32 0, %v1713
    %v1715 = vrot.slane %v1686, %v1714
    %v1716 = vlaneseq
    %v1717 = vshrl.u32 %v1716, 7
    %v1718 = vsub.s32 0, %v1717
    %v1719 = vrot.slane %v1700, %v1718
    %v1720 = vlaneseq
    %v1721 = vshrl.u32 %v1720, 7
    %v1722 = vsub.s32 0, %v1721
    %v1723 = vrot.slane %v1708, %v1722
    %v1724 = vlaneseq
    %v1725 = vshrl.u32 %v1724, 7
    %v1726 = vsub.s32 0, %v1725
    %v1727 = vrot.slane %v1710, %v1726
    %v1728 = vlaneseq
    %v1729 = vshrl.u32 %v1728, 7
    %v1730 = vsub.s32 0, %v1729
    %v1731 = vrot.slane %v1693, %v1730
    %v1732 = vlaneseq
    %v1733 = vshrl.u32 %v1732, 7
    %v1734 = vsub.s32 0, %v1733
    %v1735 = vrot.slane %v1707, %v1734
    %v1736 = vlaneseq
    %v1737 = vshrl.u32 %v1736, 7
    %v1738 = vsub.s32 0, %v1737
    %v1739 = vrot.slane %v1709, %v1738
    %v1740 = vlaneseq
    %v1741 = vshrl.u32 %v1740, 7
    %v1742 = vsub.s32 0, %v1741
    %v1743 = vrot.slane %v1711, %v1742
    %1753 = vrot.lane.b32.xlu0 %v104, 32
    %v1754 = vpop.permute.xlu0 %1753
    %v1756 = vmul.f32 %v1715, %v1754
    %v1757 = vmul.f32 %v1719, %v1754
    %v1758 = vmul.f32 %v1723, %v1754
    %v1759 = vmul.f32 %v1727, %v1754
    %v1760 = vmul.f32 %v1731, %v1754
    %v1761 = vmul.f32 %v1735, %v1754
    %v1762 = vmul.f32 %v1739, %v1754
    %v1763 = vmul.f32 %v1743, %v1754
    %1772 = vrot.lane.b32.xlu0 %v1756, 96
    %v1773 = vpop.permute.xlu0 %1772
    %1774 = vrot.lane.b32.xlu0 %v1757, 96
    %v1775 = vpop.permute.xlu0 %1774
    %1776 = vrot.lane.b32.xlu0 %v1758, 96
    %v1777 = vpop.permute.xlu0 %1776
    %1778 = vrot.lane.b32.xlu0 %v1759, 96
    %v1779 = vpop.permute.xlu0 %1778
    %1780 = vrot.lane.b32.xlu0 %v1760, 96
    %v1781 = vpop.permute.xlu0 %1780
    %1782 = vrot.lane.b32.xlu0 %v1761, 96
    %v1783 = vpop.permute.xlu0 %1782
    %1784 = vrot.lane.b32.xlu0 %v1762, 96
    %v1785 = vpop.permute.xlu0 %1784
    %1786 = vrot.lane.b32.xlu0 %v1763, 96
    %v1787 = vpop.permute.xlu0 %1786
    %v1796 = vadd.f32 %v1756, %v1773
    %v1797 = vadd.f32 %v1757, %v1775
    %v1798 = vadd.f32 %v1758, %v1777
    %v1799 = vadd.f32 %v1759, %v1779
    %v1800 = vadd.f32 %v1760, %v1781
    %v1801 = vadd.f32 %v1761, %v1783
    %v1802 = vadd.f32 %v1762, %v1785
    %v1803 = vadd.f32 %v1763, %v1787
    %v1804 = vand.u32 2147483647, %v1796
    %v1805 = vand.u32 2147483647, %v1797
    %v1806 = vand.u32 2147483647, %v1798
    %v1807 = vand.u32 2147483647, %v1799
    %v1808 = vand.u32 2147483647, %v1800
    %v1809 = vand.u32 2147483647, %v1801
    %v1810 = vand.u32 2147483647, %v1802
    %v1811 = vand.u32 2147483647, %v1803
    %v1812 = vmax.f32 %v1804, 1e-24
    %v1813 = vmax.f32 %v1805, 1e-24
    %v1814 = vmax.f32 %v1806, 1e-24
    %v1815 = vmax.f32 %v1807, 1e-24
    %v1816 = vmax.f32 %v1808, 1e-24
    %v1817 = vmax.f32 %v1809, 1e-24
    %v1818 = vmax.f32 %v1810, 1e-24
    %v1819 = vmax.f32 %v1811, 1e-24
    %v1820 = vrsqrt.pop %v1812
    %v1821 = vrsqrt.pop %v1813
    %v1822 = vrsqrt.pop %v1814
    %v1823 = vrsqrt.pop %v1815
    %v1824 = vrsqrt.pop %v1816
    %v1825 = vrsqrt.pop %v1817
    %v1826 = vrsqrt.pop %v1818
    %v1827 = vrsqrt.pop %v1819
    %v1828 = vmul.f32 %v1796, %v1820
    %v1829 = vmul.f32 %v1797, %v1821
    %v1830 = vmul.f32 %v1798, %v1822
    %v1831 = vmul.f32 %v1799, %v1823
    %v1832 = vmul.f32 %v1800, %v1824
    %v1833 = vmul.f32 %v1801, %v1825
    %v1834 = vmul.f32 %v1802, %v1826
    %v1835 = vmul.f32 %v1803, %v1827
    %v1836 = vmul.f32 %v1828, %v368
    %v1837 = vmul.f32 %v1829, %v368
    %v1838 = vmul.f32 %v1830, %v368
    %v1839 = vmul.f32 %v1831, %v368
    %v1840 = vmul.f32 %v1832, %v368
    %v1841 = vmul.f32 %v1833, %v368
    %v1842 = vmul.f32 %v1834, %v368
    %v1843 = vmul.f32 %v1835, %v368
    %1852 = vrot.lane.b32.xlu0 %v1836, 96
    %v1853 = vpop.permute.xlu0 %1852
    %1854 = vrot.lane.b32.xlu0 %v1837, 96
    %v1855 = vpop.permute.xlu0 %1854
    %1856 = vrot.lane.b32.xlu0 %v1838, 96
    %v1857 = vpop.permute.xlu0 %1856
    %1858 = vrot.lane.b32.xlu0 %v1839, 96
    %v1859 = vpop.permute.xlu0 %1858
    %1860 = vrot.lane.b32.xlu0 %v1840, 96
    %v1861 = vpop.permute.xlu0 %1860
    %1862 = vrot.lane.b32.xlu0 %v1841, 96
    %v1863 = vpop.permute.xlu0 %1862
    %1864 = vrot.lane.b32.xlu0 %v1842, 96
    %v1865 = vpop.permute.xlu0 %1864
    %1866 = vrot.lane.b32.xlu0 %v1843, 96
    %v1867 = vpop.permute.xlu0 %1866
    %v1876 = vsel %vm25, %v1853, 0.0
    %1877 = vadd.xlane.f32.xlu0 %v1876
    %v1878 = vpop.xlane.xlu0 %1877
    %v1879 = vsel %vm25, %v1855, 0.0
    %1880 = vadd.xlane.f32.xlu0 %v1879
    %v1881 = vpop.xlane.xlu0 %1880
    %v1882 = vsel %vm25, %v1857, 0.0
    %1883 = vadd.xlane.f32.xlu0 %v1882
    %v1884 = vpop.xlane.xlu0 %1883
    %v1885 = vsel %vm25, %v1859, 0.0
    %1886 = vadd.xlane.f32.xlu0 %v1885
    %v1887 = vpop.xlane.xlu0 %1886
    %v1888 = vsel %vm25, %v1861, 0.0
    %1889 = vadd.xlane.f32.xlu0 %v1888
    %v1890 = vpop.xlane.xlu0 %1889
    %v1891 = vsel %vm25, %v1863, 0.0
    %1892 = vadd.xlane.f32.xlu0 %v1891
    %v1893 = vpop.xlane.xlu0 %1892
    %v1894 = vsel %vm25, %v1865, 0.0
    %1895 = vadd.xlane.f32.xlu0 %v1894
    %v1896 = vpop.xlane.xlu0 %1895
    %v1897 = vsel %vm25, %v1867, 0.0
    %1898 = vadd.xlane.f32.xlu0 %v1897
    %v1899 = vpop.xlane.xlu0 %1898
    %1908 = vrot.lane.b32.xlu0 %v1804, 96
    %v1909 = vpop.permute.xlu0 %1908
    %1910 = vrot.lane.b32.xlu0 %v1805, 96
    %v1911 = vpop.permute.xlu0 %1910
    %1912 = vrot.lane.b32.xlu0 %v1806, 96
    %v1913 = vpop.permute.xlu0 %1912
    %1914 = vrot.lane.b32.xlu0 %v1807, 96
    %v1915 = vpop.permute.xlu0 %1914
    %1916 = vrot.lane.b32.xlu0 %v1808, 96
    %v1917 = vpop.permute.xlu0 %1916
    %1918 = vrot.lane.b32.xlu0 %v1809, 96
    %v1919 = vpop.permute.xlu0 %1918
    %1920 = vrot.lane.b32.xlu0 %v1810, 96
    %v1921 = vpop.permute.xlu0 %1920
    %1922 = vrot.lane.b32.xlu0 %v1811, 96
    %v1923 = vpop.permute.xlu0 %1922
    %v1932 = vsel %vm25, %v1909, 0.0
    %1933 = vadd.xlane.f32.xlu0 %v1932
    %v1934 = vpop.xlane.xlu0 %1933
    %v1935 = vsel %vm25, %v1911, 0.0
    %1936 = vadd.xlane.f32.xlu0 %v1935
    %v1937 = vpop.xlane.xlu0 %1936
    %v1938 = vsel %vm25, %v1913, 0.0
    %1939 = vadd.xlane.f32.xlu0 %v1938
    %v1940 = vpop.xlane.xlu0 %1939
    %v1941 = vsel %vm25, %v1915, 0.0
    %1942 = vadd.xlane.f32.xlu0 %v1941
    %v1943 = vpop.xlane.xlu0 %1942
    %v1944 = vsel %vm25, %v1917, 0.0
    %1945 = vadd.xlane.f32.xlu0 %v1944
    %v1946 = vpop.xlane.xlu0 %1945
    %v1947 = vsel %vm25, %v1919, 0.0
    %1948 = vadd.xlane.f32.xlu0 %v1947
    %v1949 = vpop.xlane.xlu0 %1948
    %v1950 = vsel %vm25, %v1921, 0.0
    %1951 = vadd.xlane.f32.xlu0 %v1950
    %v1952 = vpop.xlane.xlu0 %1951
    %v1953 = vsel %vm25, %v1923, 0.0
    %1954 = vadd.xlane.f32.xlu0 %v1953
    %v1955 = vpop.xlane.xlu0 %1954
    %v1956 = vmax.f32 %v1934, 1e-24
    %v1957 = vmax.f32 %v1937, 1e-24
    %v1958 = vmax.f32 %v1940, 1e-24
    %v1959 = vmax.f32 %v1943, 1e-24
    %v1960 = vmax.f32 %v1946, 1e-24
    %v1961 = vmax.f32 %v1949, 1e-24
    %v1962 = vmax.f32 %v1952, 1e-24
    %v1963 = vmax.f32 %v1955, 1e-24
    %v1964 = vrsqrt.pop %v1956
    %v1965 = vrsqrt.pop %v1957
    %v1966 = vrsqrt.pop %v1958
    %v1967 = vrsqrt.pop %v1959
    %v1968 = vrsqrt.pop %v1960
    %v1969 = vrsqrt.pop %v1961
    %v1970 = vrsqrt.pop %v1962
    %v1971 = vrsqrt.pop %v1963
    %v1972 = vmul.f32 %v1878, %v1964
    %v1973 = vmul.f32 %v1881, %v1965
    %v1974 = vmul.f32 %v1884, %v1966
    %v1975 = vmul.f32 %v1887, %v1967
    %v1976 = vmul.f32 %v1890, %v1968
    %v1977 = vmul.f32 %v1893, %v1969
    %v1978 = vmul.f32 %v1896, %v1970
    %v1979 = vmul.f32 %v1899, %v1971
    %1980 = vrot.lane.b32.xlu0 %v1836, 88
    %v1981 = vpop.permute.xlu0 %1980
    %1982 = vrot.lane.b32.xlu0 %v1837, 88
    %v1983 = vpop.permute.xlu0 %1982
    %1984 = vrot.lane.b32.xlu0 %v1838, 88
    %v1985 = vpop.permute.xlu0 %1984
    %1986 = vrot.lane.b32.xlu0 %v1839, 88
    %v1987 = vpop.permute.xlu0 %1986
    %1988 = vrot.lane.b32.xlu0 %v1840, 88
    %v1989 = vpop.permute.xlu0 %1988
    %1990 = vrot.lane.b32.xlu0 %v1841, 88
    %v1991 = vpop.permute.xlu0 %1990
    %1992 = vrot.lane.b32.xlu0 %v1842, 88
    %v1993 = vpop.permute.xlu0 %1992
    %1994 = vrot.lane.b32.xlu0 %v1843, 88
    %v1995 = vpop.permute.xlu0 %1994
    %v2004 = vsel %vm25, %v1981, 0.0
    %2005 = vadd.xlane.f32.xlu0 %v2004
    %v2006 = vpop.xlane.xlu0 %2005
    %v2007 = vsel %vm25, %v1983, 0.0
    %2008 = vadd.xlane.f32.xlu0 %v2007
    %v2009 = vpop.xlane.xlu0 %2008
    %v2010 = vsel %vm25, %v1985, 0.0
    %2011 = vadd.xlane.f32.xlu0 %v2010
    %v2012 = vpop.xlane.xlu0 %2011
    %v2013 = vsel %vm25, %v1987, 0.0
    %2014 = vadd.xlane.f32.xlu0 %v2013
    %v2015 = vpop.xlane.xlu0 %2014
    %v2016 = vsel %vm25, %v1989, 0.0
    %2017 = vadd.xlane.f32.xlu0 %v2016
    %v2018 = vpop.xlane.xlu0 %2017
    %v2019 = vsel %vm25, %v1991, 0.0
    %2020 = vadd.xlane.f32.xlu0 %v2019
    %v2021 = vpop.xlane.xlu0 %2020
    %v2022 = vsel %vm25, %v1993, 0.0
    %2023 = vadd.xlane.f32.xlu0 %v2022
    %v2024 = vpop.xlane.xlu0 %2023
    %v2025 = vsel %vm25, %v1995, 0.0
    %2026 = vadd.xlane.f32.xlu0 %v2025
    %v2027 = vpop.xlane.xlu0 %2026
    %2028 = vrot.lane.b32.xlu0 %v1804, 88
    %v2029 = vpop.permute.xlu0 %2028
    %2030 = vrot.lane.b32.xlu0 %v1805, 88
    %v2031 = vpop.permute.xlu0 %2030
    %2032 = vrot.lane.b32.xlu0 %v1806, 88
    %v2033 = vpop.permute.xlu0 %2032
    %2034 = vrot.lane.b32.xlu0 %v1807, 88
    %v2035 = vpop.permute.xlu0 %2034
    %2036 = vrot.lane.b32.xlu0 %v1808, 88
    %v2037 = vpop.permute.xlu0 %2036
    %2038 = vrot.lane.b32.xlu0 %v1809, 88
    %v2039 = vpop.permute.xlu0 %2038
    %2040 = vrot.lane.b32.xlu0 %v1810, 88
    %v2041 = vpop.permute.xlu0 %2040
    %2042 = vrot.lane.b32.xlu0 %v1811, 88
    %v2043 = vpop.permute.xlu0 %2042
    %v2052 = vsel %vm25, %v2029, 0.0
    %2053 = vadd.xlane.f32.xlu0 %v2052
    %v2054 = vpop.xlane.xlu0 %2053
    %v2055 = vsel %vm25, %v2031, 0.0
    %2056 = vadd.xlane.f32.xlu0 %v2055
    %v2057 = vpop.xlane.xlu0 %2056
    %v2058 = vsel %vm25, %v2033, 0.0
    %2059 = vadd.xlane.f32.xlu0 %v2058
    %v2060 = vpop.xlane.xlu0 %2059
    %v2061 = vsel %vm25, %v2035, 0.0
    %2062 = vadd.xlane.f32.xlu0 %v2061
    %v2063 = vpop.xlane.xlu0 %2062
    %v2064 = vsel %vm25, %v2037, 0.0
    %2065 = vadd.xlane.f32.xlu0 %v2064
    %v2066 = vpop.xlane.xlu0 %2065
    %v2067 = vsel %vm25, %v2039, 0.0
    %2068 = vadd.xlane.f32.xlu0 %v2067
    %v2069 = vpop.xlane.xlu0 %2068
    %v2070 = vsel %vm25, %v2041, 0.0
    %2071 = vadd.xlane.f32.xlu0 %v2070
    %v2072 = vpop.xlane.xlu0 %2071
    %v2073 = vsel %vm25, %v2043, 0.0
    %2074 = vadd.xlane.f32.xlu0 %v2073
    %v2075 = vpop.xlane.xlu0 %2074
    %v2076 = vmax.f32 %v2054, 1e-24
    %v2077 = vmax.f32 %v2057, 1e-24
    %v2078 = vmax.f32 %v2060, 1e-24
    %v2079 = vmax.f32 %v2063, 1e-24
    %v2080 = vmax.f32 %v2066, 1e-24
    %v2081 = vmax.f32 %v2069, 1e-24
    %v2082 = vmax.f32 %v2072, 1e-24
    %v2083 = vmax.f32 %v2075, 1e-24
    %v2084 = vrsqrt.pop %v2076
    %v2085 = vrsqrt.pop %v2077
    %v2086 = vrsqrt.pop %v2078
    %v2087 = vrsqrt.pop %v2079
    %v2088 = vrsqrt.pop %v2080
    %v2089 = vrsqrt.pop %v2081
    %v2090 = vrsqrt.pop %v2082
    %v2091 = vrsqrt.pop %v2083
    %v2092 = vmul.f32 %v2006, %v2084
    %v2093 = vmul.f32 %v2009, %v2085
    %v2094 = vmul.f32 %v2012, %v2086
    %v2095 = vmul.f32 %v2015, %v2087
    %v2096 = vmul.f32 %v2018, %v2088
    %v2097 = vmul.f32 %v2021, %v2089
    %v2098 = vmul.f32 %v2024, %v2090
    %v2099 = vmul.f32 %v2027, %v2091
    %v2100 = vadd.f32 %v1972, %v2092
    %v2101 = vadd.f32 %v1973, %v2093
    %v2102 = vadd.f32 %v1974, %v2094
    %v2103 = vadd.f32 %v1975, %v2095
    %v2104 = vadd.f32 %v1976, %v2096
    %v2105 = vadd.f32 %v1977, %v2097
    %v2106 = vadd.f32 %v1978, %v2098
    %v2107 = vadd.f32 %v1979, %v2099
    %2108 = vrot.lane.b32.xlu0 %v1836, 80
    %v2109 = vpop.permute.xlu0 %2108
    %2110 = vrot.lane.b32.xlu0 %v1837, 80
    %v2111 = vpop.permute.xlu0 %2110
    %2112 = vrot.lane.b32.xlu0 %v1838, 80
    %v2113 = vpop.permute.xlu0 %2112
    %2114 = vrot.lane.b32.xlu0 %v1839, 80
    %v2115 = vpop.permute.xlu0 %2114
    %2116 = vrot.lane.b32.xlu0 %v1840, 80
    %v2117 = vpop.permute.xlu0 %2116
    %2118 = vrot.lane.b32.xlu0 %v1841, 80
    %v2119 = vpop.permute.xlu0 %2118
    %2120 = vrot.lane.b32.xlu0 %v1842, 80
    %v2121 = vpop.permute.xlu0 %2120
    %2122 = vrot.lane.b32.xlu0 %v1843, 80
    %v2123 = vpop.permute.xlu0 %2122
    %v2132 = vsel %vm25, %v2109, 0.0
    %2133 = vadd.xlane.f32.xlu0 %v2132
    %v2134 = vpop.xlane.xlu0 %2133
    %v2135 = vsel %vm25, %v2111, 0.0
    %2136 = vadd.xlane.f32.xlu0 %v2135
    %v2137 = vpop.xlane.xlu0 %2136
    %v2138 = vsel %vm25, %v2113, 0.0
    %2139 = vadd.xlane.f32.xlu0 %v2138
    %v2140 = vpop.xlane.xlu0 %2139
    %v2141 = vsel %vm25, %v2115, 0.0
    %2142 = vadd.xlane.f32.xlu0 %v2141
    %v2143 = vpop.xlane.xlu0 %2142
    %v2144 = vsel %vm25, %v2117, 0.0
    %2145 = vadd.xlane.f32.xlu0 %v2144
    %v2146 = vpop.xlane.xlu0 %2145
    %v2147 = vsel %vm25, %v2119, 0.0
    %2148 = vadd.xlane.f32.xlu0 %v2147
    %v2149 = vpop.xlane.xlu0 %2148
    %v2150 = vsel %vm25, %v2121, 0.0
    %2151 = vadd.xlane.f32.xlu0 %v2150
    %v2152 = vpop.xlane.xlu0 %2151
    %v2153 = vsel %vm25, %v2123, 0.0
    %2154 = vadd.xlane.f32.xlu0 %v2153
    %v2155 = vpop.xlane.xlu0 %2154
    %2156 = vrot.lane.b32.xlu0 %v1804, 80
    %v2157 = vpop.permute.xlu0 %2156
    %2158 = vrot.lane.b32.xlu0 %v1805, 80
    %v2159 = vpop.permute.xlu0 %2158
    %2160 = vrot.lane.b32.xlu0 %v1806, 80
    %v2161 = vpop.permute.xlu0 %2160
    %2162 = vrot.lane.b32.xlu0 %v1807, 80
    %v2163 = vpop.permute.xlu0 %2162
    %2164 = vrot.lane.b32.xlu0 %v1808, 80
    %v2165 = vpop.permute.xlu0 %2164
    %2166 = vrot.lane.b32.xlu0 %v1809, 80
    %v2167 = vpop.permute.xlu0 %2166
    %2168 = vrot.lane.b32.xlu0 %v1810, 80
    %v2169 = vpop.permute.xlu0 %2168
    %2170 = vrot.lane.b32.xlu0 %v1811, 80
    %v2171 = vpop.permute.xlu0 %2170
    %v2180 = vsel %vm25, %v2157, 0.0
    %2181 = vadd.xlane.f32.xlu0 %v2180
    %v2182 = vpop.xlane.xlu0 %2181
    %v2183 = vsel %vm25, %v2159, 0.0
    %2184 = vadd.xlane.f32.xlu0 %v2183
    %v2185 = vpop.xlane.xlu0 %2184
    %v2186 = vsel %vm25, %v2161, 0.0
    %2187 = vadd.xlane.f32.xlu0 %v2186
    %v2188 = vpop.xlane.xlu0 %2187
    %v2189 = vsel %vm25, %v2163, 0.0
    %2190 = vadd.xlane.f32.xlu0 %v2189
    %v2191 = vpop.xlane.xlu0 %2190
    %v2192 = vsel %vm25, %v2165, 0.0
    %2193 = vadd.xlane.f32.xlu0 %v2192
    %v2194 = vpop.xlane.xlu0 %2193
    %v2195 = vsel %vm25, %v2167, 0.0
    %2196 = vadd.xlane.f32.xlu0 %v2195
    %v2197 = vpop.xlane.xlu0 %2196
    %v2198 = vsel %vm25, %v2169, 0.0
    %2199 = vadd.xlane.f32.xlu0 %v2198
    %v2200 = vpop.xlane.xlu0 %2199
    %v2201 = vsel %vm25, %v2171, 0.0
    %2202 = vadd.xlane.f32.xlu0 %v2201
    %v2203 = vpop.xlane.xlu0 %2202
    %v2204 = vmax.f32 %v2182, 1e-24
    %v2205 = vmax.f32 %v2185, 1e-24
    %v2206 = vmax.f32 %v2188, 1e-24
    %v2207 = vmax.f32 %v2191, 1e-24
    %v2208 = vmax.f32 %v2194, 1e-24
    %v2209 = vmax.f32 %v2197, 1e-24
    %v2210 = vmax.f32 %v2200, 1e-24
    %v2211 = vmax.f32 %v2203, 1e-24
    %v2212 = vrsqrt.pop %v2204
    %v2213 = vrsqrt.pop %v2205
    %v2214 = vrsqrt.pop %v2206
    %v2215 = vrsqrt.pop %v2207
    %v2216 = vrsqrt.pop %v2208
    %v2217 = vrsqrt.pop %v2209
    %v2218 = vrsqrt.pop %v2210
    %v2219 = vrsqrt.pop %v2211
    %v2220 = vmul.f32 %v2134, %v2212
    %v2221 = vmul.f32 %v2137, %v2213
    %v2222 = vmul.f32 %v2140, %v2214
    %v2223 = vmul.f32 %v2143, %v2215
    %v2224 = vmul.f32 %v2146, %v2216
    %v2225 = vmul.f32 %v2149, %v2217
    %v2226 = vmul.f32 %v2152, %v2218
    %v2227 = vmul.f32 %v2155, %v2219
    %v2228 = vadd.f32 %v2100, %v2220
    %v2229 = vadd.f32 %v2101, %v2221
    %v2230 = vadd.f32 %v2102, %v2222
    %v2231 = vadd.f32 %v2103, %v2223
    %v2232 = vadd.f32 %v2104, %v2224
    %v2233 = vadd.f32 %v2105, %v2225
    %v2234 = vadd.f32 %v2106, %v2226
    %v2235 = vadd.f32 %v2107, %v2227
    %2236 = vrot.lane.b32.xlu0 %v1836, 72
    %v2237 = vpop.permute.xlu0 %2236
    %2238 = vrot.lane.b32.xlu0 %v1837, 72
    %v2239 = vpop.permute.xlu0 %2238
    %2240 = vrot.lane.b32.xlu0 %v1838, 72
    %v2241 = vpop.permute.xlu0 %2240
    %2242 = vrot.lane.b32.xlu0 %v1839, 72
    %v2243 = vpop.permute.xlu0 %2242
    %2244 = vrot.lane.b32.xlu0 %v1840, 72
    %v2245 = vpop.permute.xlu0 %2244
    %2246 = vrot.lane.b32.xlu0 %v1841, 72
    %v2247 = vpop.permute.xlu0 %2246
    %2248 = vrot.lane.b32.xlu0 %v1842, 72
    %v2249 = vpop.permute.xlu0 %2248
    %2250 = vrot.lane.b32.xlu0 %v1843, 72
    %v2251 = vpop.permute.xlu0 %2250
    %v2260 = vsel %vm25, %v2237, 0.0
    %2261 = vadd.xlane.f32.xlu0 %v2260
    %v2262 = vpop.xlane.xlu0 %2261
    %v2263 = vsel %vm25, %v2239, 0.0
    %2264 = vadd.xlane.f32.xlu0 %v2263
    %v2265 = vpop.xlane.xlu0 %2264
    %v2266 = vsel %vm25, %v2241, 0.0
    %2267 = vadd.xlane.f32.xlu0 %v2266
    %v2268 = vpop.xlane.xlu0 %2267
    %v2269 = vsel %vm25, %v2243, 0.0
    %2270 = vadd.xlane.f32.xlu0 %v2269
    %v2271 = vpop.xlane.xlu0 %2270
    %v2272 = vsel %vm25, %v2245, 0.0
    %2273 = vadd.xlane.f32.xlu0 %v2272
    %v2274 = vpop.xlane.xlu0 %2273
    %v2275 = vsel %vm25, %v2247, 0.0
    %2276 = vadd.xlane.f32.xlu0 %v2275
    %v2277 = vpop.xlane.xlu0 %2276
    %v2278 = vsel %vm25, %v2249, 0.0
    %2279 = vadd.xlane.f32.xlu0 %v2278
    %v2280 = vpop.xlane.xlu0 %2279
    %v2281 = vsel %vm25, %v2251, 0.0
    %2282 = vadd.xlane.f32.xlu0 %v2281
    %v2283 = vpop.xlane.xlu0 %2282
    %2284 = vrot.lane.b32.xlu0 %v1804, 72
    %v2285 = vpop.permute.xlu0 %2284
    %2286 = vrot.lane.b32.xlu0 %v1805, 72
    %v2287 = vpop.permute.xlu0 %2286
    %2288 = vrot.lane.b32.xlu0 %v1806, 72
    %v2289 = vpop.permute.xlu0 %2288
    %2290 = vrot.lane.b32.xlu0 %v1807, 72
    %v2291 = vpop.permute.xlu0 %2290
    %2292 = vrot.lane.b32.xlu0 %v1808, 72
    %v2293 = vpop.permute.xlu0 %2292
    %2294 = vrot.lane.b32.xlu0 %v1809, 72
    %v2295 = vpop.permute.xlu0 %2294
    %2296 = vrot.lane.b32.xlu0 %v1810, 72
    %v2297 = vpop.permute.xlu0 %2296
    %2298 = vrot.lane.b32.xlu0 %v1811, 72
    %v2299 = vpop.permute.xlu0 %2298
    %v2308 = vsel %vm25, %v2285, 0.0
    %2309 = vadd.xlane.f32.xlu0 %v2308
    %v2310 = vpop.xlane.xlu0 %2309
    %v2311 = vsel %vm25, %v2287, 0.0
    %2312 = vadd.xlane.f32.xlu0 %v2311
    %v2313 = vpop.xlane.xlu0 %2312
    %v2314 = vsel %vm25, %v2289, 0.0
    %2315 = vadd.xlane.f32.xlu0 %v2314
    %v2316 = vpop.xlane.xlu0 %2315
    %v2317 = vsel %vm25, %v2291, 0.0
    %2318 = vadd.xlane.f32.xlu0 %v2317
    %v2319 = vpop.xlane.xlu0 %2318
    %v2320 = vsel %vm25, %v2293, 0.0
    %2321 = vadd.xlane.f32.xlu0 %v2320
    %v2322 = vpop.xlane.xlu0 %2321
    %v2323 = vsel %vm25, %v2295, 0.0
    %2324 = vadd.xlane.f32.xlu0 %v2323
    %v2325 = vpop.xlane.xlu0 %2324
    %v2326 = vsel %vm25, %v2297, 0.0
    %2327 = vadd.xlane.f32.xlu0 %v2326
    %v2328 = vpop.xlane.xlu0 %2327
    %v2329 = vsel %vm25, %v2299, 0.0
    %2330 = vadd.xlane.f32.xlu0 %v2329
    %v2331 = vpop.xlane.xlu0 %2330
    %v2332 = vmax.f32 %v2310, 1e-24
    %v2333 = vmax.f32 %v2313, 1e-24
    %v2334 = vmax.f32 %v2316, 1e-24
    %v2335 = vmax.f32 %v2319, 1e-24
    %v2336 = vmax.f32 %v2322, 1e-24
    %v2337 = vmax.f32 %v2325, 1e-24
    %v2338 = vmax.f32 %v2328, 1e-24
    %v2339 = vmax.f32 %v2331, 1e-24
    %v2340 = vrsqrt.pop %v2332
    %v2341 = vrsqrt.pop %v2333
    %v2342 = vrsqrt.pop %v2334
    %v2343 = vrsqrt.pop %v2335
    %v2344 = vrsqrt.pop %v2336
    %v2345 = vrsqrt.pop %v2337
    %v2346 = vrsqrt.pop %v2338
    %v2347 = vrsqrt.pop %v2339
    %v2348 = vmul.f32 %v2262, %v2340
    %v2349 = vmul.f32 %v2265, %v2341
    %v2350 = vmul.f32 %v2268, %v2342
    %v2351 = vmul.f32 %v2271, %v2343
    %v2352 = vmul.f32 %v2274, %v2344
    %v2353 = vmul.f32 %v2277, %v2345
    %v2354 = vmul.f32 %v2280, %v2346
    %v2355 = vmul.f32 %v2283, %v2347
    %v2356 = vadd.f32 %v2228, %v2348
    %v2357 = vadd.f32 %v2229, %v2349
    %v2358 = vadd.f32 %v2230, %v2350
    %v2359 = vadd.f32 %v2231, %v2351
    %v2360 = vadd.f32 %v2232, %v2352
    %v2361 = vadd.f32 %v2233, %v2353
    %v2362 = vadd.f32 %v2234, %v2354
    %v2363 = vadd.f32 %v2235, %v2355
    %v2364 = vadd.f32 %v2356, %v902
    %v2365 = vadd.f32 %v2357, %v902
    %v2366 = vadd.f32 %v2358, %v902
    %v2367 = vadd.f32 %v2359, %v902
    %v2368 = vadd.f32 %v2360, %v902
    %v2369 = vadd.f32 %v2361, %v902
    %v2370 = vadd.f32 %v2362, %v902
    %v2371 = vadd.f32 %v2363, %v902
    %v2380 = vlaneseq
    %v2381 = vshrl.u32 %v2380, 7
    %v2382 = vsub.s32 %v921, %v2381
    %v2383 = vrot.slane %v2364, %v2382
    %v2384 = vlaneseq
    %v2385 = vshrl.u32 %v2384, 7
    %v2386 = vsub.s32 %v921, %v2385
    %v2387 = vrot.slane %v2365, %v2386
    %v2388 = vlaneseq
    %v2389 = vshrl.u32 %v2388, 7
    %v2390 = vsub.s32 %v921, %v2389
    %v2391 = vrot.slane %v2366, %v2390
    %v2392 = vlaneseq
    %v2393 = vshrl.u32 %v2392, 7
    %v2394 = vsub.s32 %v921, %v2393
    %v2395 = vrot.slane %v2367, %v2394
    %v2396 = vlaneseq
    %v2397 = vshrl.u32 %v2396, 7
    %v2398 = vsub.s32 %v921, %v2397
    %v2399 = vrot.slane %v2368, %v2398
    %v2400 = vlaneseq
    %v2401 = vshrl.u32 %v2400, 7
    %v2402 = vsub.s32 %v921, %v2401
    %v2403 = vrot.slane %v2369, %v2402
    %v2404 = vlaneseq
    %v2405 = vshrl.u32 %v2404, 7
    %v2406 = vsub.s32 %v921, %v2405
    %v2407 = vrot.slane %v2370, %v2406
    %v2408 = vlaneseq
    %v2409 = vshrl.u32 %v2408, 7
    %v2410 = vsub.s32 %v921, %v2409
    %v2411 = vrot.slane %v2371, %v2410
    %v2412 = vsel %vm954, %v2387, %v2383
    %v2413 = vsel %vm956, %v2391, %v2412
    %v2414 = vsel %vm958, %v2395, %v2413
    %v2415 = vsel %vm960, %v2399, %v2414
    %v2416 = vsel %vm962, %v2403, %v2415
    %v2417 = vsel %vm964, %v2407, %v2416
    %v2418 = vsel %vm966, %v2411, %v2417
    %v2420 = vsel %vm25, %v2418, -inf
    %2421 = vmax.xlane.f32.xlu0 %v2420
    %v2422 = vpop.xlane.xlu0 %2421
    %v2424 = vlaneseq
    %v2425 = vshrl.u32 %v2424, 7
    %v2426 = vsub.s32 0, %v2425
    %v2427 = vrot.slane %v2422, %v2426
    %v2428 = vlaneseq
    %v2429 = vshrl.u32 %v2428, 7
    %v2430 = vsub.s32 1, %v2429
    %v2431 = vrot.slane %v2422, %v2430
    %v2432 = vlaneseq
    %v2433 = vshrl.u32 %v2432, 7
    %v2434 = vsub.s32 2, %v2433
    %v2435 = vrot.slane %v2422, %v2434
    %v2436 = vlaneseq
    %v2437 = vshrl.u32 %v2436, 7
    %v2438 = vsub.s32 3, %v2437
    %v2439 = vrot.slane %v2422, %v2438
    %v2440 = vlaneseq
    %v2441 = vshrl.u32 %v2440, 7
    %v2442 = vsub.s32 4, %v2441
    %v2443 = vrot.slane %v2422, %v2442
    %v2444 = vlaneseq
    %v2445 = vshrl.u32 %v2444, 7
    %v2446 = vsub.s32 5, %v2445
    %v2447 = vrot.slane %v2422, %v2446
    %v2448 = vlaneseq
    %v2449 = vshrl.u32 %v2448, 7
    %v2450 = vsub.s32 6, %v2449
    %v2451 = vrot.slane %v2422, %v2450
    %v2452 = vlaneseq
    %v2453 = vshrl.u32 %v2452, 7
    %v2454 = vsub.s32 7, %v2453
    %v2455 = vrot.slane %v2422, %v2454
    %v2464 = vsub.f32 %v2364, %v2427
    %v2465 = vsub.f32 %v2365, %v2431
    %v2466 = vsub.f32 %v2366, %v2435
    %v2467 = vsub.f32 %v2367, %v2439
    %v2468 = vsub.f32 %v2368, %v2443
    %v2469 = vsub.f32 %v2369, %v2447
    %v2470 = vsub.f32 %v2370, %v2451
    %v2471 = vsub.f32 %v2371, %v2455
    %v2472 = vmul.f32 %v2464, 1.442695
    %v2473 = vpow.pop %v2472
    %v2474 = vmul.f32 %v2465, 1.442695
    %v2475 = vpow.pop %v2474
    %v2476 = vmul.f32 %v2466, 1.442695
    %v2477 = vpow.pop %v2476
    %v2478 = vmul.f32 %v2467, 1.442695
    %v2479 = vpow.pop %v2478
    %v2480 = vmul.f32 %v2468, 1.442695
    %v2481 = vpow.pop %v2480
    %v2482 = vmul.f32 %v2469, 1.442695
    %v2483 = vpow.pop %v2482
    %v2484 = vmul.f32 %v2470, 1.442695
    %v2485 = vpow.pop %v2484
    %v2486 = vmul.f32 %v2471, 1.442695
    %v2487 = vpow.pop %v2486
    %2496 = vset.pattern.permute.xlu0 0
    %2497 = vperm.xlu0 %2496, %v2473
    %v2498 = vpop.permute.xlu0 %2497
    %2499 = vset.pattern.permute.xlu0 0
    %2500 = vperm.xlu0 %2499, %v2475
    %v2501 = vpop.permute.xlu0 %2500
    %2502 = vset.pattern.permute.xlu0 0
    %2503 = vperm.xlu0 %2502, %v2477
    %v2504 = vpop.permute.xlu0 %2503
    %2505 = vset.pattern.permute.xlu0 0
    %2506 = vperm.xlu0 %2505, %v2479
    %v2507 = vpop.permute.xlu0 %2506
    %2508 = vset.pattern.permute.xlu0 0
    %2509 = vperm.xlu0 %2508, %v2481
    %v2510 = vpop.permute.xlu0 %2509
    %2511 = vset.pattern.permute.xlu0 0
    %2512 = vperm.xlu0 %2511, %v2483
    %v2513 = vpop.permute.xlu0 %2512
    %2514 = vset.pattern.permute.xlu0 0
    %2515 = vperm.xlu0 %2514, %v2485
    %v2516 = vpop.permute.xlu0 %2515
    %2517 = vset.pattern.permute.xlu0 0
    %2518 = vperm.xlu0 %2517, %v2487
    %v2519 = vpop.permute.xlu0 %2518
    %v2520 = vlaneseq
    %v2521 = vshrl.u32 %v2520, 7
    %v2522 = vsub.s32 %v921, %v2521
    %v2523 = vrot.slane %v2498, %v2522
    %v2524 = vlaneseq
    %v2525 = vshrl.u32 %v2524, 7
    %v2526 = vsub.s32 %v921, %v2525
    %v2527 = vrot.slane %v2501, %v2526
    %v2528 = vlaneseq
    %v2529 = vshrl.u32 %v2528, 7
    %v2530 = vsub.s32 %v921, %v2529
    %v2531 = vrot.slane %v2504, %v2530
    %v2532 = vlaneseq
    %v2533 = vshrl.u32 %v2532, 7
    %v2534 = vsub.s32 %v921, %v2533
    %v2535 = vrot.slane %v2507, %v2534
    %v2536 = vlaneseq
    %v2537 = vshrl.u32 %v2536, 7
    %v2538 = vsub.s32 %v921, %v2537
    %v2539 = vrot.slane %v2510, %v2538
    %v2540 = vlaneseq
    %v2541 = vshrl.u32 %v2540, 7
    %v2542 = vsub.s32 %v921, %v2541
    %v2543 = vrot.slane %v2513, %v2542
    %v2544 = vlaneseq
    %v2545 = vshrl.u32 %v2544, 7
    %v2546 = vsub.s32 %v921, %v2545
    %v2547 = vrot.slane %v2516, %v2546
    %v2548 = vlaneseq
    %v2549 = vshrl.u32 %v2548, 7
    %v2550 = vsub.s32 %v921, %v2549
    %v2551 = vrot.slane %v2519, %v2550
    %v2552 = vsel %vm954, %v2527, %v2523
    %v2553 = vsel %vm956, %v2531, %v2552
    %v2554 = vsel %vm958, %v2535, %v2553
    %v2555 = vsel %vm960, %v2539, %v2554
    %v2556 = vsel %vm962, %v2543, %v2555
    %v2557 = vsel %vm964, %v2547, %v2556
    %v2558 = vsel %vm966, %v2551, %v2557
    %v2560 = vsel %vm25, %v2558, 0.0
    %2561 = vadd.xlane.f32.xlu0 %v2560
    %v2562 = vpop.xlane.xlu0 %2561
    %v2563 = vrcp.pop %v2562
    %v2565 = vlaneseq
    %v2566 = vshrl.u32 %v2565, 7
    %v2567 = vsub.s32 0, %v2566
    %v2568 = vrot.slane %v2563, %v2567
    %v2569 = vlaneseq
    %v2570 = vshrl.u32 %v2569, 7
    %v2571 = vsub.s32 1, %v2570
    %v2572 = vrot.slane %v2563, %v2571
    %v2573 = vlaneseq
    %v2574 = vshrl.u32 %v2573, 7
    %v2575 = vsub.s32 2, %v2574
    %v2576 = vrot.slane %v2563, %v2575
    %v2577 = vlaneseq
    %v2578 = vshrl.u32 %v2577, 7
    %v2579 = vsub.s32 3, %v2578
    %v2580 = vrot.slane %v2563, %v2579
    %v2581 = vlaneseq
    %v2582 = vshrl.u32 %v2581, 7
    %v2583 = vsub.s32 4, %v2582
    %v2584 = vrot.slane %v2563, %v2583
    %v2585 = vlaneseq
    %v2586 = vshrl.u32 %v2585, 7
    %v2587 = vsub.s32 5, %v2586
    %v2588 = vrot.slane %v2563, %v2587
    %v2589 = vlaneseq
    %v2590 = vshrl.u32 %v2589, 7
    %v2591 = vsub.s32 6, %v2590
    %v2592 = vrot.slane %v2563, %v2591
    %v2593 = vlaneseq
    %v2594 = vshrl.u32 %v2593, 7
    %v2595 = vsub.s32 7, %v2594
    %v2596 = vrot.slane %v2563, %v2595
    %v2605 = vmul.f32 %v2473, %v2568
    %v2606 = vmul.f32 %v2475, %v2572
    %v2607 = vmul.f32 %v2477, %v2576
    %v2608 = vmul.f32 %v2479, %v2580
    %v2609 = vmul.f32 %v2481, %v2584
    %v2610 = vmul.f32 %v2483, %v2588
    %v2611 = vmul.f32 %v2485, %v2592
    %v2612 = vmul.f32 %v2487, %v2596
    %2621 = vset.pattern.permute.xlu0 0
    %2622 = vperm.xlu0 %2621, %v2605
    %v2623 = vpop.permute.xlu0 %2622
    %2624 = vset.pattern.permute.xlu0 0
    %2625 = vperm.xlu0 %2624, %v2606
    %v2626 = vpop.permute.xlu0 %2625
    %2627 = vset.pattern.permute.xlu0 0
    %2628 = vperm.xlu0 %2627, %v2607
    %v2629 = vpop.permute.xlu0 %2628
    %2630 = vset.pattern.permute.xlu0 0
    %2631 = vperm.xlu0 %2630, %v2608
    %v2632 = vpop.permute.xlu0 %2631
    %2633 = vset.pattern.permute.xlu0 0
    %2634 = vperm.xlu0 %2633, %v2609
    %v2635 = vpop.permute.xlu0 %2634
    %2636 = vset.pattern.permute.xlu0 0
    %2637 = vperm.xlu0 %2636, %v2610
    %v2638 = vpop.permute.xlu0 %2637
    %2639 = vset.pattern.permute.xlu0 0
    %2640 = vperm.xlu0 %2639, %v2611
    %v2641 = vpop.permute.xlu0 %2640
    %2642 = vset.pattern.permute.xlu0 0
    %2643 = vperm.xlu0 %2642, %v2612
    %v2644 = vpop.permute.xlu0 %2643
    %v2645 = vlaneseq
    %v2646 = vshrl.u32 %v2645, 7
    %v2647 = vsub.s32 %v921, %v2646
    %v2648 = vrot.slane %v2623, %v2647
    %v2649 = vlaneseq
    %v2650 = vshrl.u32 %v2649, 7
    %v2651 = vsub.s32 %v921, %v2650
    %v2652 = vrot.slane %v2626, %v2651
    %v2653 = vlaneseq
    %v2654 = vshrl.u32 %v2653, 7
    %v2655 = vsub.s32 %v921, %v2654
    %v2656 = vrot.slane %v2629, %v2655
    %v2657 = vlaneseq
    %v2658 = vshrl.u32 %v2657, 7
    %v2659 = vsub.s32 %v921, %v2658
    %v2660 = vrot.slane %v2632, %v2659
    %v2661 = vlaneseq
    %v2662 = vshrl.u32 %v2661, 7
    %v2663 = vsub.s32 %v921, %v2662
    %v2664 = vrot.slane %v2635, %v2663
    %v2665 = vlaneseq
    %v2666 = vshrl.u32 %v2665, 7
    %v2667 = vsub.s32 %v921, %v2666
    %v2668 = vrot.slane %v2638, %v2667
    %v2669 = vlaneseq
    %v2670 = vshrl.u32 %v2669, 7
    %v2671 = vsub.s32 %v921, %v2670
    %v2672 = vrot.slane %v2641, %v2671
    %v2673 = vlaneseq
    %v2674 = vshrl.u32 %v2673, 7
    %v2675 = vsub.s32 %v921, %v2674
    %v2676 = vrot.slane %v2644, %v2675
    %v2677 = vsel %vm954, %v2652, %v2648
    %v2678 = vsel %vm956, %v2656, %v2677
    %v2679 = vsel %vm958, %v2660, %v2678
    %v2680 = vsel %vm960, %v2664, %v2679
    %v2681 = vsel %vm962, %v2668, %v2680
    %v2682 = vsel %vm964, %v2672, %v2681
    %v2683 = vsel %vm966, %v2676, %v2682
    %v2684 = vsel %vm25, %v2683, 0
    %2686 = vmatprep.subr.mxu0 0.0
    %2687 = vmatpush1.msra.mxu0 %v189
    %2688 = vmatprep.subr.mxu0 0.0
    %2689 = vmatpush1.msra.mxu0 0.0
    %2690 = vmatprep.subr.mxu0 0.0
    %2691 = vmatpush1.msra.mxu0 0.0
    %2692 = vmatprep.subr.mxu0 0.0
    %2693 = vmatpush1.msra.mxu0 0.0
    %2694 = vmatprep.subr.mxu0 0.0
    %2695 = vmatpush1.msra.mxu0 0.0
    %2696 = vmatprep.subr.mxu0 0.0
    %2697 = vmatpush1.msra.mxu0 0.0
    %2698 = vmatprep.subr.mxu0 0.0
    %2699 = vmatpush1.msra.mxu0 0.0
    %2700 = vmatprep.subr.mxu0 0.0
    %2701 = vmatpush1.msra.mxu0 0.0
    %2702 = vmatprep.subr.mxu0 0.0
    %2703 = vmatpush1.msra.mxu0 0.0
    %2704 = vmatprep.subr.mxu0 0.0
    %2705 = vmatpush1.msra.mxu0 0.0
    %2706 = vmatprep.subr.mxu0 0.0
    %2707 = vmatpush1.msra.mxu0 0.0
    %2708 = vmatprep.subr.mxu0 0.0
    %2709 = vmatpush1.msra.mxu0 0.0
    %2710 = vmatprep.subr.mxu0 0.0
    %2711 = vmatpush1.msra.mxu0 0.0
    %2712 = vmatprep.subr.mxu0 0.0
    %2713 = vmatpush1.msra.mxu0 0.0
    %2714 = vmatprep.subr.mxu0 0.0
    %2715 = vmatpush1.msra.mxu0 0.0
    %2716 = vmatprep.subr.mxu0 0.0
    %2717 = vmatpush1.msra.mxu0 0.0
    %2718 = vmatprep.subr.mxu0 0.0
    %2719 = vmatpush1.msra.mxu0 0.0
    %2720 = vmatprep.subr.mxu0 0.0
    %2721 = vmatpush1.msra.mxu0 0.0
    %2722 = vmatprep.subr.mxu0 0.0
    %2723 = vmatpush1.msra.mxu0 0.0
    %2724 = vmatprep.subr.mxu0 0.0
    %2725 = vmatpush1.msra.mxu0 0.0
    %2726 = vmatprep.subr.mxu0 0.0
    %2727 = vmatpush1.msra.mxu0 0.0
    %2728 = vmatprep.subr.mxu0 0.0
    %2729 = vmatpush1.msra.mxu0 0.0
    %2730 = vmatprep.subr.mxu0 0.0
    %2731 = vmatpush1.msra.mxu0 0.0
    %2732 = vmatprep.subr.mxu0 0.0
    %2733 = vmatpush1.msra.mxu0 0.0
    %2734 = vmatprep.subr.mxu0 0.0
    %2735 = vmatpush1.msra.mxu0 0.0
    %2736 = vmatprep.subr.mxu0 0.0
    %2737 = vmatpush1.msra.mxu0 0.0
    %2738 = vmatprep.subr.mxu0 0.0
    %2739 = vmatpush1.msra.mxu0 0.0
    %2740 = vmatprep.subr.mxu0 0.0
    %2741 = vmatpush1.msra.mxu0 0.0
    %2742 = vmatprep.subr.mxu0 0.0
    %2743 = vmatpush1.msra.mxu0 0.0
    %2744 = vmatprep.subr.mxu0 0.0
    %2745 = vmatpush1.msra.mxu0 0.0
    %2746 = vmatprep.subr.mxu0 0.0
    %2747 = vmatpush1.msra.mxu0 0.0
    %2748 = vmatprep.subr.mxu0 0.0
    %2749 = vmatpush1.msra.mxu0 0.0
    %2750 = vmatprep.mubr.f32.mxu0 0.0
    %2751 = vmatmul.mubr.f32.gmra.mrb[0].mxu0 %v2684
    %v2752 = vpop.f32.mrb[0].mxu0
    %v2753 = vadd.f32 0.0, %v2752
    %v2754 = vpop.f32.mrb[0].mxu0
    %2755 = vdwg.mxu0
    %2757 = vrot.lane.b32.xlu0 %v2753, 120
    %v2758 = vpop.permute.xlu0 %2757
    %2760 = vmatprep.subr.mxu0 0.0
    %2761 = vmatpush1.msra.mxu0 %v2758
    %2762 = vmatprep.subr.mxu0 0.0
    %2763 = vmatpush1.msra.mxu0 0.0
    %2764 = vmatprep.subr.mxu0 0.0
    %2765 = vmatpush1.msra.mxu0 0.0
    %2766 = vmatprep.subr.mxu0 0.0
    %2767 = vmatpush1.msra.mxu0 0.0
    %2768 = vmatprep.subr.mxu0 0.0
    %2769 = vmatpush1.msra.mxu0 0.0
    %2770 = vmatprep.subr.mxu0 0.0
    %2771 = vmatpush1.msra.mxu0 0.0
    %2772 = vmatprep.subr.mxu0 0.0
    %2773 = vmatpush1.msra.mxu0 0.0
    %2774 = vmatprep.subr.mxu0 0.0
    %2775 = vmatpush1.msra.mxu0 0.0
    %2776 = vmatprep.subr.mxu0 0.0
    %2777 = vmatpush1.msra.mxu0 0.0
    %2778 = vmatprep.subr.mxu0 0.0
    %2779 = vmatpush1.msra.mxu0 0.0
    %2780 = vmatprep.subr.mxu0 0.0
    %2781 = vmatpush1.msra.mxu0 0.0
    %2782 = vmatprep.subr.mxu0 0.0
    %2783 = vmatpush1.msra.mxu0 0.0
    %2784 = vmatprep.subr.mxu0 0.0
    %2785 = vmatpush1.msra.mxu0 0.0
    %2786 = vmatprep.subr.mxu0 0.0
    %2787 = vmatpush1.msra.mxu0 0.0
    %2788 = vmatprep.subr.mxu0 0.0
    %2789 = vmatpush1.msra.mxu0 0.0
    %2790 = vmatprep.subr.mxu0 0.0
    %2791 = vmatpush1.msra.mxu0 0.0
    %2792 = vmatprep.subr.mxu0 0.0
    %2793 = vmatpush1.msra.mxu0 0.0
    %2794 = vmatprep.subr.mxu0 0.0
    %2795 = vmatpush1.msra.mxu0 0.0
    %2796 = vmatprep.subr.mxu0 0.0
    %2797 = vmatpush1.msra.mxu0 0.0
    %2798 = vmatprep.subr.mxu0 0.0
    %2799 = vmatpush1.msra.mxu0 0.0
    %2800 = vmatprep.subr.mxu0 0.0
    %2801 = vmatpush1.msra.mxu0 0.0
    %2802 = vmatprep.subr.mxu0 0.0
    %2803 = vmatpush1.msra.mxu0 0.0
    %2804 = vmatprep.subr.mxu0 0.0
    %2805 = vmatpush1.msra.mxu0 0.0
    %2806 = vmatprep.subr.mxu0 0.0
    %2807 = vmatpush1.msra.mxu0 0.0
    %2808 = vmatprep.subr.mxu0 0.0
    %2809 = vmatpush1.msra.mxu0 0.0
    %2810 = vmatprep.subr.mxu0 0.0
    %2811 = vmatpush1.msra.mxu0 0.0
    %2812 = vmatprep.subr.mxu0 0.0
    %2813 = vmatpush1.msra.mxu0 0.0
    %2814 = vmatprep.subr.mxu0 0.0
    %2815 = vmatpush1.msra.mxu0 0.0
    %2816 = vmatprep.subr.mxu0 0.0
    %2817 = vmatpush1.msra.mxu0 0.0
    %2818 = vmatprep.subr.mxu0 0.0
    %2819 = vmatpush1.msra.mxu0 0.0
    %2820 = vmatprep.subr.mxu0 0.0
    %2821 = vmatpush1.msra.mxu0 0.0
    %2822 = vmatprep.subr.mxu0 0.0
    %2823 = vmatpush1.msra.mxu0 0.0
    %2824 = vmatprep.mubr.f32.mxu0 0.0
    %2825 = vmatmul.mubr.f32.gmra.mrb[0].mxu0 %v1312
    %v2826 = vpop.f32.mrb[0].mxu0
    %v2827 = vadd.f32 0.0, %v2826
    %v2828 = vpop.f32.mrb[0].mxu0
    %2829 = vdwg.mxu0
    %2830 = vmatprep.subr.mxu0 0.0
    %2831 = vmatpush1.msra.mxu0 %v2753
    %2832 = vmatprep.subr.mxu0 0.0
    %2833 = vmatpush1.msra.mxu0 0.0
    %2834 = vmatprep.subr.mxu0 0.0
    %2835 = vmatpush1.msra.mxu0 0.0
    %2836 = vmatprep.subr.mxu0 0.0
    %2837 = vmatpush1.msra.mxu0 0.0
    %2838 = vmatprep.subr.mxu0 0.0
    %2839 = vmatpush1.msra.mxu0 0.0
    %2840 = vmatprep.subr.mxu0 0.0
    %2841 = vmatpush1.msra.mxu0 0.0
    %2842 = vmatprep.subr.mxu0 0.0
    %2843 = vmatpush1.msra.mxu0 0.0
    %2844 = vmatprep.subr.mxu0 0.0
    %2845 = vmatpush1.msra.mxu0 0.0
    %2846 = vmatprep.subr.mxu0 0.0
    %2847 = vmatpush1.msra.mxu0 0.0
    %2848 = vmatprep.subr.mxu0 0.0
    %2849 = vmatpush1.msra.mxu0 0.0
    %2850 = vmatprep.subr.mxu0 0.0
    %2851 = vmatpush1.msra.mxu0 0.0
    %2852 = vmatprep.subr.mxu0 0.0
    %2853 = vmatpush1.msra.mxu0 0.0
    %2854 = vmatprep.subr.mxu0 0.0
    %2855 = vmatpush1.msra.mxu0 0.0
    %2856 = vmatprep.subr.mxu0 0.0
    %2857 = vmatpush1.msra.mxu0 0.0
    %2858 = vmatprep.subr.mxu0 0.0
    %2859 = vmatpush1.msra.mxu0 0.0
    %2860 = vmatprep.subr.mxu0 0.0
    %2861 = vmatpush1.msra.mxu0 0.0
    %2862 = vmatprep.subr.mxu0 0.0
    %2863 = vmatpush1.msra.mxu0 0.0
    %2864 = vmatprep.subr.mxu0 0.0
    %2865 = vmatpush1.msra.mxu0 0.0
    %2866 = vmatprep.subr.mxu0 0.0
    %2867 = vmatpush1.msra.mxu0 0.0
    %2868 = vmatprep.subr.mxu0 0.0
    %2869 = vmatpush1.msra.mxu0 0.0
    %2870 = vmatprep.subr.mxu0 0.0
    %2871 = vmatpush1.msra.mxu0 0.0
    %2872 = vmatprep.subr.mxu0 0.0
    %2873 = vmatpush1.msra.mxu0 0.0
    %2874 = vmatprep.subr.mxu0 0.0
    %2875 = vmatpush1.msra.mxu0 0.0
    %2876 = vmatprep.subr.mxu0 0.0
    %2877 = vmatpush1.msra.mxu0 0.0
    %2878 = vmatprep.subr.mxu0 0.0
    %2879 = vmatpush1.msra.mxu0 0.0
    %2880 = vmatprep.subr.mxu0 0.0
    %2881 = vmatpush1.msra.mxu0 0.0
    %2882 = vmatprep.subr.mxu0 0.0
    %2883 = vmatpush1.msra.mxu0 0.0
    %2884 = vmatprep.subr.mxu0 0.0
    %2885 = vmatpush1.msra.mxu0 0.0
    %2886 = vmatprep.subr.mxu0 0.0
    %2887 = vmatpush1.msra.mxu0 0.0
    %2888 = vmatprep.subr.mxu0 0.0
    %2889 = vmatpush1.msra.mxu0 0.0
    %2890 = vmatprep.subr.mxu0 0.0
    %2891 = vmatpush1.msra.mxu0 0.0
    %2892 = vmatprep.subr.mxu0 0.0
    %2893 = vmatpush1.msra.mxu0 0.0
    %2894 = vmatprep.mubr.f32.mxu0 0.0
    %2895 = vmatmul.mubr.f32.gmra.mrb[0].mxu0 %v1384
    %v2896 = vpop.f32.mrb[0].mxu0
    %v2897 = vadd.f32 %v2827, %v2896
    %v2898 = vpop.f32.mrb[0].mxu0
    %2899 = vdwg.mxu0
    %2900 = vrot.lane.b32.xlu0 %v2753, 112
    %v2901 = vpop.permute.xlu0 %2900
    %2903 = vmatprep.subr.mxu0 0.0
    %2904 = vmatpush1.msra.mxu0 %v2901
    %2905 = vmatprep.subr.mxu0 0.0
    %2906 = vmatpush1.msra.mxu0 0.0
    %2907 = vmatprep.subr.mxu0 0.0
    %2908 = vmatpush1.msra.mxu0 0.0
    %2909 = vmatprep.subr.mxu0 0.0
    %2910 = vmatpush1.msra.mxu0 0.0
    %2911 = vmatprep.subr.mxu0 0.0
    %2912 = vmatpush1.msra.mxu0 0.0
    %2913 = vmatprep.subr.mxu0 0.0
    %2914 = vmatpush1.msra.mxu0 0.0
    %2915 = vmatprep.subr.mxu0 0.0
    %2916 = vmatpush1.msra.mxu0 0.0
    %2917 = vmatprep.subr.mxu0 0.0
    %2918 = vmatpush1.msra.mxu0 0.0
    %2919 = vmatprep.subr.mxu0 0.0
    %2920 = vmatpush1.msra.mxu0 0.0
    %2921 = vmatprep.subr.mxu0 0.0
    %2922 = vmatpush1.msra.mxu0 0.0
    %2923 = vmatprep.subr.mxu0 0.0
    %2924 = vmatpush1.msra.mxu0 0.0
    %2925 = vmatprep.subr.mxu0 0.0
    %2926 = vmatpush1.msra.mxu0 0.0
    %2927 = vmatprep.subr.mxu0 0.0
    %2928 = vmatpush1.msra.mxu0 0.0
    %2929 = vmatprep.subr.mxu0 0.0
    %2930 = vmatpush1.msra.mxu0 0.0
    %2931 = vmatprep.subr.mxu0 0.0
    %2932 = vmatpush1.msra.mxu0 0.0
    %2933 = vmatprep.subr.mxu0 0.0
    %2934 = vmatpush1.msra.mxu0 0.0
    %2935 = vmatprep.subr.mxu0 0.0
    %2936 = vmatpush1.msra.mxu0 0.0
    %2937 = vmatprep.subr.mxu0 0.0
    %2938 = vmatpush1.msra.mxu0 0.0
    %2939 = vmatprep.subr.mxu0 0.0
    %2940 = vmatpush1.msra.mxu0 0.0
    %2941 = vmatprep.subr.mxu0 0.0
    %2942 = vmatpush1.msra.mxu0 0.0
    %2943 = vmatprep.subr.mxu0 0.0
    %2944 = vmatpush1.msra.mxu0 0.0
    %2945 = vmatprep.subr.mxu0 0.0
    %2946 = vmatpush1.msra.mxu0 0.0
    %2947 = vmatprep.subr.mxu0 0.0
    %2948 = vmatpush1.msra.mxu0 0.0
    %2949 = vmatprep.subr.mxu0 0.0
    %2950 = vmatpush1.msra.mxu0 0.0
    %2951 = vmatprep.subr.mxu0 0.0
    %2952 = vmatpush1.msra.mxu0 0.0
    %2953 = vmatprep.subr.mxu0 0.0
    %2954 = vmatpush1.msra.mxu0 0.0
    %2955 = vmatprep.subr.mxu0 0.0
    %2956 = vmatpush1.msra.mxu0 0.0
    %2957 = vmatprep.subr.mxu0 0.0
    %2958 = vmatpush1.msra.mxu0 0.0
    %2959 = vmatprep.subr.mxu0 0.0
    %2960 = vmatpush1.msra.mxu0 0.0
    %2961 = vmatprep.subr.mxu0 0.0
    %2962 = vmatpush1.msra.mxu0 0.0
    %2963 = vmatprep.subr.mxu0 0.0
    %2964 = vmatpush1.msra.mxu0 0.0
    %2965 = vmatprep.subr.mxu0 0.0
    %2966 = vmatpush1.msra.mxu0 0.0
    %2967 = vmatprep.mubr.f32.mxu0 0.0
    %2968 = vmatmul.mubr.f32.gmra.mrb[0].mxu0 %v1461
    %v2969 = vpop.f32.mrb[0].mxu0
    %v2970 = vadd.f32 0.0, %v2969
    %v2971 = vpop.f32.mrb[0].mxu0
    %2972 = vdwg.mxu0
    %v2973 = vadd.f32 %v2897, %v2970
    %2974 = vrot.lane.b32.xlu0 %v2753, 104
    %v2975 = vpop.permute.xlu0 %2974
    %2977 = vmatprep.subr.mxu0 0.0
    %2978 = vmatpush1.msra.mxu0 %v2975
    %2979 = vmatprep.subr.mxu0 0.0
    %2980 = vmatpush1.msra.mxu0 0.0
    %2981 = vmatprep.subr.mxu0 0.0
    %2982 = vmatpush1.msra.mxu0 0.0
    %2983 = vmatprep.subr.mxu0 0.0
    %2984 = vmatpush1.msra.mxu0 0.0
    %2985 = vmatprep.subr.mxu0 0.0
    %2986 = vmatpush1.msra.mxu0 0.0
    %2987 = vmatprep.subr.mxu0 0.0
    %2988 = vmatpush1.msra.mxu0 0.0
    %2989 = vmatprep.subr.mxu0 0.0
    %2990 = vmatpush1.msra.mxu0 0.0
    %2991 = vmatprep.subr.mxu0 0.0
    %2992 = vmatpush1.msra.mxu0 0.0
    %2993 = vmatprep.subr.mxu0 0.0
    %2994 = vmatpush1.msra.mxu0 0.0
    %2995 = vmatprep.subr.mxu0 0.0
    %2996 = vmatpush1.msra.mxu0 0.0
    %2997 = vmatprep.subr.mxu0 0.0
    %2998 = vmatpush1.msra.mxu0 0.0
    %2999 = vmatprep.subr.mxu0 0.0
    %3000 = vmatpush1.msra.mxu0 0.0
    %3001 = vmatprep.subr.mxu0 0.0
    %3002 = vmatpush1.msra.mxu0 0.0
    %3003 = vmatprep.subr.mxu0 0.0
    %3004 = vmatpush1.msra.mxu0 0.0
    %3005 = vmatprep.subr.mxu0 0.0
    %3006 = vmatpush1.msra.mxu0 0.0
    %3007 = vmatprep.subr.mxu0 0.0
    %3008 = vmatpush1.msra.mxu0 0.0
    %3009 = vmatprep.subr.mxu0 0.0
    %3010 = vmatpush1.msra.mxu0 0.0
    %3011 = vmatprep.subr.mxu0 0.0
    %3012 = vmatpush1.msra.mxu0 0.0
    %3013 = vmatprep.subr.mxu0 0.0
    %3014 = vmatpush1.msra.mxu0 0.0
    %3015 = vmatprep.subr.mxu0 0.0
    %3016 = vmatpush1.msra.mxu0 0.0
    %3017 = vmatprep.subr.mxu0 0.0
    %3018 = vmatpush1.msra.mxu0 0.0
    %3019 = vmatprep.subr.mxu0 0.0
    %3020 = vmatpush1.msra.mxu0 0.0
    %3021 = vmatprep.subr.mxu0 0.0
    %3022 = vmatpush1.msra.mxu0 0.0
    %3023 = vmatprep.subr.mxu0 0.0
    %3024 = vmatpush1.msra.mxu0 0.0
    %3025 = vmatprep.subr.mxu0 0.0
    %3026 = vmatpush1.msra.mxu0 0.0
    %3027 = vmatprep.subr.mxu0 0.0
    %3028 = vmatpush1.msra.mxu0 0.0
    %3029 = vmatprep.subr.mxu0 0.0
    %3030 = vmatpush1.msra.mxu0 0.0
    %3031 = vmatprep.subr.mxu0 0.0
    %3032 = vmatpush1.msra.mxu0 0.0
    %3033 = vmatprep.subr.mxu0 0.0
    %3034 = vmatpush1.msra.mxu0 0.0
    %3035 = vmatprep.subr.mxu0 0.0
    %3036 = vmatpush1.msra.mxu0 0.0
    %3037 = vmatprep.subr.mxu0 0.0
    %3038 = vmatpush1.msra.mxu0 0.0
    %3039 = vmatprep.subr.mxu0 0.0
    %3040 = vmatpush1.msra.mxu0 0.0
    %3041 = vmatprep.mubr.f32.mxu0 0.0
    %3042 = vmatmul.mubr.f32.gmra.mrb[0].mxu0 %v1539
    %v3043 = vpop.f32.mrb[0].mxu0
    %v3044 = vadd.f32 0.0, %v3043
    %v3045 = vpop.f32.mrb[0].mxu0
    %3046 = vdwg.mxu0
    %v3047 = vadd.f32 %v2973, %v3044
    %3048 = vxpose.xlu0.b32.start [1/16] %v3047, 128
    %3049 = vxpose.xlu0.b32.cont [2/16] 0.0, 128
    %3050 = vxpose.xlu0.b32.cont [3/16] 0.0, 128
    %3051 = vxpose.xlu0.b32.cont [4/16] 0.0, 128
    %3052 = vxpose.xlu0.b32.cont [5/16] 0.0, 128
    %3053 = vxpose.xlu0.b32.cont [6/16] 0.0, 128
    %3054 = vxpose.xlu0.b32.cont [7/16] 0.0, 128
    %3055 = vxpose.xlu0.b32.cont [8/16] 0.0, 128
    %3056 = vxpose.xlu0.b32.cont [9/16] 0.0, 128
    %3057 = vxpose.xlu0.b32.cont [10/16] 0.0, 128
    %3058 = vxpose.xlu0.b32.cont [11/16] 0.0, 128
    %3059 = vxpose.xlu0.b32.cont [12/16] 0.0, 128
    %3060 = vxpose.xlu0.b32.cont [13/16] 0.0, 128
    %3061 = vxpose.xlu0.b32.cont [14/16] 0.0, 128
    %3062 = vxpose.xlu0.b32.cont [15/16] 0.0, 128
    %3063 = vxpose.xlu0.b32.end [16/16] 0.0, 128
    %v3064 = vpop.trf.xlu0
    %v3065 = vpop.trf.xlu0
    %v3066 = vpop.trf.xlu0
    %v3067 = vpop.trf.xlu0
    %v3068 = vpop.trf.xlu0
    %v3069 = vpop.trf.xlu0
    %v3070 = vpop.trf.xlu0
    %v3071 = vpop.trf.xlu0
    %v3072 = vpop.trf.xlu0
    %v3073 = vpop.trf.xlu0
    %v3074 = vpop.trf.xlu0
    %v3075 = vpop.trf.xlu0
    %v3076 = vpop.trf.xlu0
    %v3077 = vpop.trf.xlu0
    %v3078 = vpop.trf.xlu0
    %v3079 = vpop.trf.xlu0
    %v3080 = vadd.f32 %v3064, %v1646
    %v3081 = vmul.f32 %v3080, %v1651
    %v3082 = vadd.f32 %v3081, %v1656
    %v3083 = vmax.f32 %v3082, 0.0
    %v3084 = vadd.f32 %v3083, %v15
    %3085 = vst.msk [vmem:[#allocation2 + $0x8] sm:$0xff] %vm25, %v3084
    %v3086 = vld [vmem:[#allocation2] sm:$0xff]
    %v3087 = vld [vmem:[#allocation2 + $0x8] sm:$0xff]
    %v3089 = vsel %vm25, %v3086, 0
    %v3092 = vsel %vm25, %v3087, 0
    %3094 = vmatprep.subr.mxu0 0.0
    %3095 = vmatpush1.msra.mxu0 %v17
    %3096 = vmatprep.subr.mxu0 0.0
    %3097 = vmatpush1.msra.mxu0 0.0
    %3098 = vmatprep.subr.mxu0 0.0
    %3099 = vmatpush1.msra.mxu0 0.0
    %3100 = vmatprep.subr.mxu0 0.0
    %3101 = vmatpush1.msra.mxu0 0.0
    %3102 = vmatprep.subr.mxu0 0.0
    %3103 = vmatpush1.msra.mxu0 0.0
    %3104 = vmatprep.subr.mxu0 0.0
    %3105 = vmatpush1.msra.mxu0 0.0
    %3106 = vmatprep.subr.mxu0 0.0
    %3107 = vmatpush1.msra.mxu0 0.0
    %3108 = vmatprep.subr.mxu0 0.0
    %3109 = vmatpush1.msra.mxu0 0.0
    %3110 = vmatprep.subr.mxu0 0.0
    %3111 = vmatpush1.msra.mxu0 0.0
    %3112 = vmatprep.subr.mxu0 0.0
    %3113 = vmatpush1.msra.mxu0 0.0
    %3114 = vmatprep.subr.mxu0 0.0
    %3115 = vmatpush1.msra.mxu0 0.0
    %3116 = vmatprep.subr.mxu0 0.0
    %3117 = vmatpush1.msra.mxu0 0.0
    %3118 = vmatprep.subr.mxu0 0.0
    %3119 = vmatpush1.msra.mxu0 0.0
    %3120 = vmatprep.subr.mxu0 0.0
    %3121 = vmatpush1.msra.mxu0 0.0
    %3122 = vmatprep.subr.mxu0 0.0
    %3123 = vmatpush1.msra.mxu0 0.0
    %3124 = vmatprep.subr.mxu0 0.0
    %3125 = vmatpush1.msra.mxu0 0.0
    %3126 = vmatprep.subr.mxu0 0.0
    %3127 = vmatpush1.msra.mxu0 0.0
    %3128 = vmatprep.subr.mxu0 0.0
    %3129 = vmatpush1.msra.mxu0 0.0
    %3130 = vmatprep.subr.mxu0 0.0
    %3131 = vmatpush1.msra.mxu0 0.0
    %3132 = vmatprep.subr.mxu0 0.0
    %3133 = vmatpush1.msra.mxu0 0.0
    %3134 = vmatprep.subr.mxu0 0.0
    %3135 = vmatpush1.msra.mxu0 0.0
    %3136 = vmatprep.subr.mxu0 0.0
    %3137 = vmatpush1.msra.mxu0 0.0
    %3138 = vmatprep.subr.mxu0 0.0
    %3139 = vmatpush1.msra.mxu0 0.0
    %3140 = vmatprep.subr.mxu0 0.0
    %3141 = vmatpush1.msra.mxu0 0.0
    %3142 = vmatprep.subr.mxu0 0.0
    %3143 = vmatpush1.msra.mxu0 0.0
    %3144 = vmatprep.subr.mxu0 0.0
    %3145 = vmatpush1.msra.mxu0 0.0
    %3146 = vmatprep.subr.mxu0 0.0
    %3147 = vmatpush1.msra.mxu0 0.0
    %3148 = vmatprep.subr.mxu0 0.0
    %3149 = vmatpush1.msra.mxu0 0.0
    %3150 = vmatprep.subr.mxu0 0.0
    %3151 = vmatpush1.msra.mxu0 0.0
    %3152 = vmatprep.subr.mxu0 0.0
    %3153 = vmatpush1.msra.mxu0 0.0
    %3154 = vmatprep.subr.mxu0 0.0
    %3155 = vmatpush1.msra.mxu0 0.0
    %3156 = vmatprep.subr.mxu0 0.0
    %3157 = vmatpush1.msra.mxu0 0.0
    %3158 = vmatprep.mubr.f32.mxu0 0.0
    %3159 = vmatmul.mubr.f32.gmra.mrb[0].mxu0 %v3089
    %v3160 = vpop.f32.mrb[0].mxu0
    %v3161 = vadd.f32 %v110, %v3160
    %v3162 = vpop.f32.mrb[0].mxu0
    %3163 = vmatprep.mubr.f32.mxu0 0.0
    %3164 = vmatmul.mubr.f32.gmra.mrb[0].mxu0 %v3092
    %v3165 = vpop.f32.mrb[0].mxu0
    %v3166 = vadd.f32 %v110, %v3165
    %v3167 = vpop.f32.mrb[0].mxu0
    %3168 = vdwg.mxu0
    %v3170 = vcombine.high %v3161, %v3161
    %v3172 = vunpack.c.l.s4 1966171168
    %v3173 = vunpack.c.0.s8 %v3172
    %v3174 = vlaneseq
    %v3175 = vshrl.u32 %v3174, 7
    %v3176 = vsub.s32 %v3173, %v3175
    %v3177 = vrot.slane %v3161, %v3176
    %v3179 = vunpack.c.l.s4 1966171168
    %v3180 = vunpack.c.0.s8 %v3179
    %v3181 = vlaneseq
    %v3182 = vshrl.u32 %v3181, 7
    %v3183 = vsub.s32 %v3180, %v3182
    %v3184 = vrot.slane %v3170, %v3183
    %v3185 = vcombine.high %v3177, %v3177
    %v3186 = vcombine.high %v3184, %v3184
    %v3188 = vunpack.c.l.s4 1966171168
    %v3189 = vunpack.c.0.s8 %v3188
    %v3190 = vlaneseq
    %v3191 = vshrl.u32 %v3190, 7
    %v3192 = vsub.s32 %v3189, %v3191
    %v3193 = vrot.slane %v3177, %v3192
    %v3195 = vunpack.c.l.s4 1966171168
    %v3196 = vunpack.c.0.s8 %v3195
    %v3197 = vlaneseq
    %v3198 = vshrl.u32 %v3197, 7
    %v3199 = vsub.s32 %v3196, %v3198
    %v3200 = vrot.slane %v3184, %v3199
    %v3202 = vunpack.c.l.s4 1966171168
    %v3203 = vunpack.c.0.s8 %v3202
    %v3204 = vlaneseq
    %v3205 = vshrl.u32 %v3204, 7
    %v3206 = vsub.s32 %v3203, %v3205
    %v3207 = vrot.slane %v3185, %v3206
    %v3209 = vunpack.c.l.s4 1966171168
    %v3210 = vunpack.c.0.s8 %v3209
    %v3211 = vlaneseq
    %v3212 = vshrl.u32 %v3211, 7
    %v3213 = vsub.s32 %v3210, %v3212
    %v3214 = vrot.slane %v3186, %v3213
    %v3215 = vcombine.high %v3193, %v3193
    %v3216 = vcombine.high %v3200, %v3200
    %v3217 = vcombine.high %v3207, %v3207
    %v3218 = vcombine.high %v3214, %v3214
    %v3219 = vlaneseq
    %v3220 = vshrl.u32 %v3219, 7
    %v3221 = vsub.s32 0, %v3220
    %v3222 = vrot.slane %v3193, %v3221
    %v3223 = vlaneseq
    %v3224 = vshrl.u32 %v3223, 7
    %v3225 = vsub.s32 0, %v3224
    %v3226 = vrot.slane %v3207, %v3225
    %v3227 = vlaneseq
    %v3228 = vshrl.u32 %v3227, 7
    %v3229 = vsub.s32 0, %v3228
    %v3230 = vrot.slane %v3215, %v3229
    %v3231 = vlaneseq
    %v3232 = vshrl.u32 %v3231, 7
    %v3233 = vsub.s32 0, %v3232
    %v3234 = vrot.slane %v3217, %v3233
    %v3235 = vlaneseq
    %v3236 = vshrl.u32 %v3235, 7
    %v3237 = vsub.s32 0, %v3236
    %v3238 = vrot.slane %v3200, %v3237
    %v3239 = vlaneseq
    %v3240 = vshrl.u32 %v3239, 7
    %v3241 = vsub.s32 0, %v3240
    %v3242 = vrot.slane %v3214, %v3241
    %v3243 = vlaneseq
    %v3244 = vshrl.u32 %v3243, 7
    %v3245 = vsub.s32 0, %v3244
    %v3246 = vrot.slane %v3216, %v3245
    %v3247 = vlaneseq
    %v3248 = vshrl.u32 %v3247, 7
    %v3249 = vsub.s32 0, %v3248
    %v3250 = vrot.slane %v3218, %v3249
    %v3259 = vmul.f32 %v3222, %v284
    %v3260 = vmul.f32 %v3226, %v284
    %v3261 = vmul.f32 %v3230, %v284
    %v3262 = vmul.f32 %v3234, %v284
    %v3263 = vmul.f32 %v3238, %v284
    %v3264 = vmul.f32 %v3242, %v284
    %v3265 = vmul.f32 %v3246, %v284
    %v3266 = vmul.f32 %v3250, %v284
    %3275 = vrot.lane.b32.xlu0 %v3259, 96
    %v3276 = vpop.permute.xlu0 %3275
    %3277 = vrot.lane.b32.xlu0 %v3260, 96
    %v3278 = vpop.permute.xlu0 %3277
    %3279 = vrot.lane.b32.xlu0 %v3261, 96
    %v3280 = vpop.permute.xlu0 %3279
    %3281 = vrot.lane.b32.xlu0 %v3262, 96
    %v3282 = vpop.permute.xlu0 %3281
    %3283 = vrot.lane.b32.xlu0 %v3263, 96
    %v3284 = vpop.permute.xlu0 %3283
    %3285 = vrot.lane.b32.xlu0 %v3264, 96
    %v3286 = vpop.permute.xlu0 %3285
    %3287 = vrot.lane.b32.xlu0 %v3265, 96
    %v3288 = vpop.permute.xlu0 %3287
    %3289 = vrot.lane.b32.xlu0 %v3266, 96
    %v3290 = vpop.permute.xlu0 %3289
    %v3299 = vadd.f32 %v3259, %v3276
    %v3300 = vadd.f32 %v3260, %v3278
    %v3301 = vadd.f32 %v3261, %v3280
    %v3302 = vadd.f32 %v3262, %v3282
    %v3303 = vadd.f32 %v3263, %v3284
    %v3304 = vadd.f32 %v3264, %v3286
    %v3305 = vadd.f32 %v3265, %v3288
    %v3306 = vadd.f32 %v3266, %v3290
    %v3307 = vand.u32 2147483647, %v3299
    %v3308 = vand.u32 2147483647, %v3300
    %v3309 = vand.u32 2147483647, %v3301
    %v3310 = vand.u32 2147483647, %v3302
    %v3311 = vand.u32 2147483647, %v3303
    %v3312 = vand.u32 2147483647, %v3304
    %v3313 = vand.u32 2147483647, %v3305
    %v3314 = vand.u32 2147483647, %v3306
    %v3315 = vmax.f32 %v3307, 1e-24
    %v3316 = vmax.f32 %v3308, 1e-24
    %v3317 = vmax.f32 %v3309, 1e-24
    %v3318 = vmax.f32 %v3310, 1e-24
    %v3319 = vmax.f32 %v3311, 1e-24
    %v3320 = vmax.f32 %v3312, 1e-24
    %v3321 = vmax.f32 %v3313, 1e-24
    %v3322 = vmax.f32 %v3314, 1e-24
    %v3323 = vrsqrt.pop %v3315
    %v3324 = vrsqrt.pop %v3316
    %v3325 = vrsqrt.pop %v3317
    %v3326 = vrsqrt.pop %v3318
    %v3327 = vrsqrt.pop %v3319
    %v3328 = vrsqrt.pop %v3320
    %v3329 = vrsqrt.pop %v3321
    %v3330 = vrsqrt.pop %v3322
    %v3331 = vmul.f32 %v3299, %v3323
    %v3332 = vmul.f32 %v3300, %v3324
    %v3333 = vmul.f32 %v3301, %v3325
    %v3334 = vmul.f32 %v3302, %v3326
    %v3335 = vmul.f32 %v3303, %v3327
    %v3336 = vmul.f32 %v3304, %v3328
    %v3337 = vmul.f32 %v3305, %v3329
    %v3338 = vmul.f32 %v3306, %v3330
    %v3339 = vmul.f32 %v3331, %v368
    %v3340 = vmul.f32 %v3332, %v368
    %v3341 = vmul.f32 %v3333, %v368
    %v3342 = vmul.f32 %v3334, %v368
    %v3343 = vmul.f32 %v3335, %v368
    %v3344 = vmul.f32 %v3336, %v368
    %v3345 = vmul.f32 %v3337, %v368
    %v3346 = vmul.f32 %v3338, %v368
    %3355 = vrot.lane.b32.xlu0 %v3339, 96
    %v3356 = vpop.permute.xlu0 %3355
    %3357 = vrot.lane.b32.xlu0 %v3340, 96
    %v3358 = vpop.permute.xlu0 %3357
    %3359 = vrot.lane.b32.xlu0 %v3341, 96
    %v3360 = vpop.permute.xlu0 %3359
    %3361 = vrot.lane.b32.xlu0 %v3342, 96
    %v3362 = vpop.permute.xlu0 %3361
    %3363 = vrot.lane.b32.xlu0 %v3343, 96
    %v3364 = vpop.permute.xlu0 %3363
    %3365 = vrot.lane.b32.xlu0 %v3344, 96
    %v3366 = vpop.permute.xlu0 %3365
    %3367 = vrot.lane.b32.xlu0 %v3345, 96
    %v3368 = vpop.permute.xlu0 %3367
    %3369 = vrot.lane.b32.xlu0 %v3346, 96
    %v3370 = vpop.permute.xlu0 %3369
    %v3379 = vsel %vm25, %v3356, 0.0
    %3380 = vadd.xlane.f32.xlu0 %v3379
    %v3381 = vpop.xlane.xlu0 %3380
    %v3382 = vsel %vm25, %v3358, 0.0
    %3383 = vadd.xlane.f32.xlu0 %v3382
    %v3384 = vpop.xlane.xlu0 %3383
    %v3385 = vsel %vm25, %v3360, 0.0
    %3386 = vadd.xlane.f32.xlu0 %v3385
    %v3387 = vpop.xlane.xlu0 %3386
    %v3388 = vsel %vm25, %v3362, 0.0
    %3389 = vadd.xlane.f32.xlu0 %v3388
    %v3390 = vpop.xlane.xlu0 %3389
    %v3391 = vsel %vm25, %v3364, 0.0
    %3392 = vadd.xlane.f32.xlu0 %v3391
    %v3393 = vpop.xlane.xlu0 %3392
    %v3394 = vsel %vm25, %v3366, 0.0
    %3395 = vadd.xlane.f32.xlu0 %v3394
    %v3396 = vpop.xlane.xlu0 %3395
    %v3397 = vsel %vm25, %v3368, 0.0
    %3398 = vadd.xlane.f32.xlu0 %v3397
    %v3399 = vpop.xlane.xlu0 %3398
    %v3400 = vsel %vm25, %v3370, 0.0
    %3401 = vadd.xlane.f32.xlu0 %v3400
    %v3402 = vpop.xlane.xlu0 %3401
    %3411 = vrot.lane.b32.xlu0 %v3307, 96
    %v3412 = vpop.permute.xlu0 %3411
    %3413 = vrot.lane.b32.xlu0 %v3308, 96
    %v3414 = vpop.permute.xlu0 %3413
    %3415 = vrot.lane.b32.xlu0 %v3309, 96
    %v3416 = vpop.permute.xlu0 %3415
    %3417 = vrot.lane.b32.xlu0 %v3310, 96
    %v3418 = vpop.permute.xlu0 %3417
    %3419 = vrot.lane.b32.xlu0 %v3311, 96
    %v3420 = vpop.permute.xlu0 %3419
    %3421 = vrot.lane.b32.xlu0 %v3312, 96
    %v3422 = vpop.permute.xlu0 %3421
    %3423 = vrot.lane.b32.xlu0 %v3313, 96
    %v3424 = vpop.permute.xlu0 %3423
    %3425 = vrot.lane.b32.xlu0 %v3314, 96
    %v3426 = vpop.permute.xlu0 %3425
    %v3435 = vsel %vm25, %v3412, 0.0
    %3436 = vadd.xlane.f32.xlu0 %v3435
    %v3437 = vpop.xlane.xlu0 %3436
    %v3438 = vsel %vm25, %v3414, 0.0
    %3439 = vadd.xlane.f32.xlu0 %v3438
    %v3440 = vpop.xlane.xlu0 %3439
    %v3441 = vsel %vm25, %v3416, 0.0
    %3442 = vadd.xlane.f32.xlu0 %v3441
    %v3443 = vpop.xlane.xlu0 %3442
    %v3444 = vsel %vm25, %v3418, 0.0
    %3445 = vadd.xlane.f32.xlu0 %v3444
    %v3446 = vpop.xlane.xlu0 %3445
    %v3447 = vsel %vm25, %v3420, 0.0
    %3448 = vadd.xlane.f32.xlu0 %v3447
    %v3449 = vpop.xlane.xlu0 %3448
    %v3450 = vsel %vm25, %v3422, 0.0
    %3451 = vadd.xlane.f32.xlu0 %v3450
    %v3452 = vpop.xlane.xlu0 %3451
    %v3453 = vsel %vm25, %v3424, 0.0
    %3454 = vadd.xlane.f32.xlu0 %v3453
    %v3455 = vpop.xlane.xlu0 %3454
    %v3456 = vsel %vm25, %v3426, 0.0
    %3457 = vadd.xlane.f32.xlu0 %v3456
    %v3458 = vpop.xlane.xlu0 %3457
    %v3459 = vmax.f32 %v3437, 1e-24
    %v3460 = vmax.f32 %v3440, 1e-24
    %v3461 = vmax.f32 %v3443, 1e-24
    %v3462 = vmax.f32 %v3446, 1e-24
    %v3463 = vmax.f32 %v3449, 1e-24
    %v3464 = vmax.f32 %v3452, 1e-24
    %v3465 = vmax.f32 %v3455, 1e-24
    %v3466 = vmax.f32 %v3458, 1e-24
    %v3467 = vrsqrt.pop %v3459
    %v3468 = vrsqrt.pop %v3460
    %v3469 = vrsqrt.pop %v3461
    %v3470 = vrsqrt.pop %v3462
    %v3471 = vrsqrt.pop %v3463
    %v3472 = vrsqrt.pop %v3464
    %v3473 = vrsqrt.pop %v3465
    %v3474 = vrsqrt.pop %v3466
    %v3475 = vmul.f32 %v3381, %v3467
    %v3476 = vmul.f32 %v3384, %v3468
    %v3477 = vmul.f32 %v3387, %v3469
    %v3478 = vmul.f32 %v3390, %v3470
    %v3479 = vmul.f32 %v3393, %v3471
    %v3480 = vmul.f32 %v3396, %v3472
    %v3481 = vmul.f32 %v3399, %v3473
    %v3482 = vmul.f32 %v3402, %v3474
    %3483 = vrot.lane.b32.xlu0 %v3339, 88
    %v3484 = vpop.permute.xlu0 %3483
    %3485 = vrot.lane.b32.xlu0 %v3340, 88
    %v3486 = vpop.permute.xlu0 %3485
    %3487 = vrot.lane.b32.xlu0 %v3341, 88
    %v3488 = vpop.permute.xlu0 %3487
    %3489 = vrot.lane.b32.xlu0 %v3342, 88
    %v3490 = vpop.permute.xlu0 %3489
    %3491 = vrot.lane.b32.xlu0 %v3343, 88
    %v3492 = vpop.permute.xlu0 %3491
    %3493 = vrot.lane.b32.xlu0 %v3344, 88
    %v3494 = vpop.permute.xlu0 %3493
    %3495 = vrot.lane.b32.xlu0 %v3345, 88
    %v3496 = vpop.permute.xlu0 %3495
    %3497 = vrot.lane.b32.xlu0 %v3346, 88
    %v3498 = vpop.permute.xlu0 %3497
    %v3507 = vsel %vm25, %v3484, 0.0
    %3508 = vadd.xlane.f32.xlu0 %v3507
    %v3509 = vpop.xlane.xlu0 %3508
    %v3510 = vsel %vm25, %v3486, 0.0
    %3511 = vadd.xlane.f32.xlu0 %v3510
    %v3512 = vpop.xlane.xlu0 %3511
    %v3513 = vsel %vm25, %v3488, 0.0
    %3514 = vadd.xlane.f32.xlu0 %v3513
    %v3515 = vpop.xlane.xlu0 %3514
    %v3516 = vsel %vm25, %v3490, 0.0
    %3517 = vadd.xlane.f32.xlu0 %v3516
    %v3518 = vpop.xlane.xlu0 %3517
    %v3519 = vsel %vm25, %v3492, 0.0
    %3520 = vadd.xlane.f32.xlu0 %v3519
    %v3521 = vpop.xlane.xlu0 %3520
    %v3522 = vsel %vm25, %v3494, 0.0
    %3523 = vadd.xlane.f32.xlu0 %v3522
    %v3524 = vpop.xlane.xlu0 %3523
    %v3525 = vsel %vm25, %v3496, 0.0
    %3526 = vadd.xlane.f32.xlu0 %v3525
    %v3527 = vpop.xlane.xlu0 %3526
    %v3528 = vsel %vm25, %v3498, 0.0
    %3529 = vadd.xlane.f32.xlu0 %v3528
    %v3530 = vpop.xlane.xlu0 %3529
    %3531 = vrot.lane.b32.xlu0 %v3307, 88
    %v3532 = vpop.permute.xlu0 %3531
    %3533 = vrot.lane.b32.xlu0 %v3308, 88
    %v3534 = vpop.permute.xlu0 %3533
    %3535 = vrot.lane.b32.xlu0 %v3309, 88
    %v3536 = vpop.permute.xlu0 %3535
    %3537 = vrot.lane.b32.xlu0 %v3310, 88
    %v3538 = vpop.permute.xlu0 %3537
    %3539 = vrot.lane.b32.xlu0 %v3311, 88
    %v3540 = vpop.permute.xlu0 %3539
    %3541 = vrot.lane.b32.xlu0 %v3312, 88
    %v3542 = vpop.permute.xlu0 %3541
    %3543 = vrot.lane.b32.xlu0 %v3313, 88
    %v3544 = vpop.permute.xlu0 %3543
    %3545 = vrot.lane.b32.xlu0 %v3314, 88
    %v3546 = vpop.permute.xlu0 %3545
    %v3555 = vsel %vm25, %v3532, 0.0
    %3556 = vadd.xlane.f32.xlu0 %v3555
    %v3557 = vpop.xlane.xlu0 %3556
    %v3558 = vsel %vm25, %v3534, 0.0
    %3559 = vadd.xlane.f32.xlu0 %v3558
    %v3560 = vpop.xlane.xlu0 %3559
    %v3561 = vsel %vm25, %v3536, 0.0
    %3562 = vadd.xlane.f32.xlu0 %v3561
    %v3563 = vpop.xlane.xlu0 %3562
    %v3564 = vsel %vm25, %v3538, 0.0
    %3565 = vadd.xlane.f32.xlu0 %v3564
    %v3566 = vpop.xlane.xlu0 %3565
    %v3567 = vsel %vm25, %v3540, 0.0
    %3568 = vadd.xlane.f32.xlu0 %v3567
    %v3569 = vpop.xlane.xlu0 %3568
    %v3570 = vsel %vm25, %v3542, 0.0
    %3571 = vadd.xlane.f32.xlu0 %v3570
    %v3572 = vpop.xlane.xlu0 %3571
    %v3573 = vsel %vm25, %v3544, 0.0
    %3574 = vadd.xlane.f32.xlu0 %v3573
    %v3575 = vpop.xlane.xlu0 %3574
    %v3576 = vsel %vm25, %v3546, 0.0
    %3577 = vadd.xlane.f32.xlu0 %v3576
    %v3578 = vpop.xlane.xlu0 %3577
    %v3579 = vmax.f32 %v3557, 1e-24
    %v3580 = vmax.f32 %v3560, 1e-24
    %v3581 = vmax.f32 %v3563, 1e-24
    %v3582 = vmax.f32 %v3566, 1e-24
    %v3583 = vmax.f32 %v3569, 1e-24
    %v3584 = vmax.f32 %v3572, 1e-24
    %v3585 = vmax.f32 %v3575, 1e-24
    %v3586 = vmax.f32 %v3578, 1e-24
    %v3587 = vrsqrt.pop %v3579
    %v3588 = vrsqrt.pop %v3580
    %v3589 = vrsqrt.pop %v3581
    %v3590 = vrsqrt.pop %v3582
    %v3591 = vrsqrt.pop %v3583
    %v3592 = vrsqrt.pop %v3584
    %v3593 = vrsqrt.pop %v3585
    %v3594 = vrsqrt.pop %v3586
    %v3595 = vmul.f32 %v3509, %v3587
    %v3596 = vmul.f32 %v3512, %v3588
    %v3597 = vmul.f32 %v3515, %v3589
    %v3598 = vmul.f32 %v3518, %v3590
    %v3599 = vmul.f32 %v3521, %v3591
    %v3600 = vmul.f32 %v3524, %v3592
    %v3601 = vmul.f32 %v3527, %v3593
    %v3602 = vmul.f32 %v3530, %v3594
    %v3603 = vadd.f32 %v3475, %v3595
    %v3604 = vadd.f32 %v3476, %v3596
    %v3605 = vadd.f32 %v3477, %v3597
    %v3606 = vadd.f32 %v3478, %v3598
    %v3607 = vadd.f32 %v3479, %v3599
    %v3608 = vadd.f32 %v3480, %v3600
    %v3609 = vadd.f32 %v3481, %v3601
    %v3610 = vadd.f32 %v3482, %v3602
    %3611 = vrot.lane.b32.xlu0 %v3339, 80
    %v3612 = vpop.permute.xlu0 %3611
    %3613 = vrot.lane.b32.xlu0 %v3340, 80
    %v3614 = vpop.permute.xlu0 %3613
    %3615 = vrot.lane.b32.xlu0 %v3341, 80
    %v3616 = vpop.permute.xlu0 %3615
    %3617 = vrot.lane.b32.xlu0 %v3342, 80
    %v3618 = vpop.permute.xlu0 %3617
    %3619 = vrot.lane.b32.xlu0 %v3343, 80
    %v3620 = vpop.permute.xlu0 %3619
    %3621 = vrot.lane.b32.xlu0 %v3344, 80
    %v3622 = vpop.permute.xlu0 %3621
    %3623 = vrot.lane.b32.xlu0 %v3345, 80
    %v3624 = vpop.permute.xlu0 %3623
    %3625 = vrot.lane.b32.xlu0 %v3346, 80
    %v3626 = vpop.permute.xlu0 %3625
    %v3635 = vsel %vm25, %v3612, 0.0
    %3636 = vadd.xlane.f32.xlu0 %v3635
    %v3637 = vpop.xlane.xlu0 %3636
    %v3638 = vsel %vm25, %v3614, 0.0
    %3639 = vadd.xlane.f32.xlu0 %v3638
    %v3640 = vpop.xlane.xlu0 %3639
    %v3641 = vsel %vm25, %v3616, 0.0
    %3642 = vadd.xlane.f32.xlu0 %v3641
    %v3643 = vpop.xlane.xlu0 %3642
    %v3644 = vsel %vm25, %v3618, 0.0
    %3645 = vadd.xlane.f32.xlu0 %v3644
    %v3646 = vpop.xlane.xlu0 %3645
    %v3647 = vsel %vm25, %v3620, 0.0
    %3648 = vadd.xlane.f32.xlu0 %v3647
    %v3649 = vpop.xlane.xlu0 %3648
    %v3650 = vsel %vm25, %v3622, 0.0
    %3651 = vadd.xlane.f32.xlu0 %v3650
    %v3652 = vpop.xlane.xlu0 %3651
    %v3653 = vsel %vm25, %v3624, 0.0
    %3654 = vadd.xlane.f32.xlu0 %v3653
    %v3655 = vpop.xlane.xlu0 %3654
    %v3656 = vsel %vm25, %v3626, 0.0
    %3657 = vadd.xlane.f32.xlu0 %v3656
    %v3658 = vpop.xlane.xlu0 %3657
    %3659 = vrot.lane.b32.xlu0 %v3307, 80
    %v3660 = vpop.permute.xlu0 %3659
    %3661 = vrot.lane.b32.xlu0 %v3308, 80
    %v3662 = vpop.permute.xlu0 %3661
    %3663 = vrot.lane.b32.xlu0 %v3309, 80
    %v3664 = vpop.permute.xlu0 %3663
    %3665 = vrot.lane.b32.xlu0 %v3310, 80
    %v3666 = vpop.permute.xlu0 %3665
    %3667 = vrot.lane.b32.xlu0 %v3311, 80
    %v3668 = vpop.permute.xlu0 %3667
    %3669 = vrot.lane.b32.xlu0 %v3312, 80
    %v3670 = vpop.permute.xlu0 %3669
    %3671 = vrot.lane.b32.xlu0 %v3313, 80
    %v3672 = vpop.permute.xlu0 %3671
    %3673 = vrot.lane.b32.xlu0 %v3314, 80
    %v3674 = vpop.permute.xlu0 %3673
    %v3683 = vsel %vm25, %v3660, 0.0
    %3684 = vadd.xlane.f32.xlu0 %v3683
    %v3685 = vpop.xlane.xlu0 %3684
    %v3686 = vsel %vm25, %v3662, 0.0
    %3687 = vadd.xlane.f32.xlu0 %v3686
    %v3688 = vpop.xlane.xlu0 %3687
    %v3689 = vsel %vm25, %v3664, 0.0
    %3690 = vadd.xlane.f32.xlu0 %v3689
    %v3691 = vpop.xlane.xlu0 %3690
    %v3692 = vsel %vm25, %v3666, 0.0
    %3693 = vadd.xlane.f32.xlu0 %v3692
    %v3694 = vpop.xlane.xlu0 %3693
    %v3695 = vsel %vm25, %v3668, 0.0
    %3696 = vadd.xlane.f32.xlu0 %v3695
    %v3697 = vpop.xlane.xlu0 %3696
    %v3698 = vsel %vm25, %v3670, 0.0
    %3699 = vadd.xlane.f32.xlu0 %v3698
    %v3700 = vpop.xlane.xlu0 %3699
    %v3701 = vsel %vm25, %v3672, 0.0
    %3702 = vadd.xlane.f32.xlu0 %v3701
    %v3703 = vpop.xlane.xlu0 %3702
    %v3704 = vsel %vm25, %v3674, 0.0
    %3705 = vadd.xlane.f32.xlu0 %v3704
    %v3706 = vpop.xlane.xlu0 %3705
    %v3707 = vmax.f32 %v3685, 1e-24
    %v3708 = vmax.f32 %v3688, 1e-24
    %v3709 = vmax.f32 %v3691, 1e-24
    %v3710 = vmax.f32 %v3694, 1e-24
    %v3711 = vmax.f32 %v3697, 1e-24
    %v3712 = vmax.f32 %v3700, 1e-24
    %v3713 = vmax.f32 %v3703, 1e-24
    %v3714 = vmax.f32 %v3706, 1e-24
    %v3715 = vrsqrt.pop %v3707
    %v3716 = vrsqrt.pop %v3708
    %v3717 = vrsqrt.pop %v3709
    %v3718 = vrsqrt.pop %v3710
    %v3719 = vrsqrt.pop %v3711
    %v3720 = vrsqrt.pop %v3712
    %v3721 = vrsqrt.pop %v3713
    %v3722 = vrsqrt.pop %v3714
    %v3723 = vmul.f32 %v3637, %v3715
    %v3724 = vmul.f32 %v3640, %v3716
    %v3725 = vmul.f32 %v3643, %v3717
    %v3726 = vmul.f32 %v3646, %v3718
    %v3727 = vmul.f32 %v3649, %v3719
    %v3728 = vmul.f32 %v3652, %v3720
    %v3729 = vmul.f32 %v3655, %v3721
    %v3730 = vmul.f32 %v3658, %v3722
    %v3731 = vadd.f32 %v3603, %v3723
    %v3732 = vadd.f32 %v3604, %v3724
    %v3733 = vadd.f32 %v3605, %v3725
    %v3734 = vadd.f32 %v3606, %v3726
    %v3735 = vadd.f32 %v3607, %v3727
    %v3736 = vadd.f32 %v3608, %v3728
    %v3737 = vadd.f32 %v3609, %v3729
    %v3738 = vadd.f32 %v3610, %v3730
    %3739 = vrot.lane.b32.xlu0 %v3339, 72
    %v3740 = vpop.permute.xlu0 %3739
    %3741 = vrot.lane.b32.xlu0 %v3340, 72
    %v3742 = vpop.permute.xlu0 %3741
    %3743 = vrot.lane.b32.xlu0 %v3341, 72
    %v3744 = vpop.permute.xlu0 %3743
    %3745 = vrot.lane.b32.xlu0 %v3342, 72
    %v3746 = vpop.permute.xlu0 %3745
    %3747 = vrot.lane.b32.xlu0 %v3343, 72
    %v3748 = vpop.permute.xlu0 %3747
    %3749 = vrot.lane.b32.xlu0 %v3344, 72
    %v3750 = vpop.permute.xlu0 %3749
    %3751 = vrot.lane.b32.xlu0 %v3345, 72
    %v3752 = vpop.permute.xlu0 %3751
    %3753 = vrot.lane.b32.xlu0 %v3346, 72
    %v3754 = vpop.permute.xlu0 %3753
    %v3763 = vsel %vm25, %v3740, 0.0
    %3764 = vadd.xlane.f32.xlu0 %v3763
    %v3765 = vpop.xlane.xlu0 %3764
    %v3766 = vsel %vm25, %v3742, 0.0
    %3767 = vadd.xlane.f32.xlu0 %v3766
    %v3768 = vpop.xlane.xlu0 %3767
    %v3769 = vsel %vm25, %v3744, 0.0
    %3770 = vadd.xlane.f32.xlu0 %v3769
    %v3771 = vpop.xlane.xlu0 %3770
    %v3772 = vsel %vm25, %v3746, 0.0
    %3773 = vadd.xlane.f32.xlu0 %v3772
    %v3774 = vpop.xlane.xlu0 %3773
    %v3775 = vsel %vm25, %v3748, 0.0
    %3776 = vadd.xlane.f32.xlu0 %v3775
    %v3777 = vpop.xlane.xlu0 %3776
    %v3778 = vsel %vm25, %v3750, 0.0
    %3779 = vadd.xlane.f32.xlu0 %v3778
    %v3780 = vpop.xlane.xlu0 %3779
    %v3781 = vsel %vm25, %v3752, 0.0
    %3782 = vadd.xlane.f32.xlu0 %v3781
    %v3783 = vpop.xlane.xlu0 %3782
    %v3784 = vsel %vm25, %v3754, 0.0
    %3785 = vadd.xlane.f32.xlu0 %v3784
    %v3786 = vpop.xlane.xlu0 %3785
    %3787 = vrot.lane.b32.xlu0 %v3307, 72
    %v3788 = vpop.permute.xlu0 %3787
    %3789 = vrot.lane.b32.xlu0 %v3308, 72
    %v3790 = vpop.permute.xlu0 %3789
    %3791 = vrot.lane.b32.xlu0 %v3309, 72
    %v3792 = vpop.permute.xlu0 %3791
    %3793 = vrot.lane.b32.xlu0 %v3310, 72
    %v3794 = vpop.permute.xlu0 %3793
    %3795 = vrot.lane.b32.xlu0 %v3311, 72
    %v3796 = vpop.permute.xlu0 %3795
    %3797 = vrot.lane.b32.xlu0 %v3312, 72
    %v3798 = vpop.permute.xlu0 %3797
    %3799 = vrot.lane.b32.xlu0 %v3313, 72
    %v3800 = vpop.permute.xlu0 %3799
    %3801 = vrot.lane.b32.xlu0 %v3314, 72
    %v3802 = vpop.permute.xlu0 %3801
    %v3811 = vsel %vm25, %v3788, 0.0
    %3812 = vadd.xlane.f32.xlu0 %v3811
    %v3813 = vpop.xlane.xlu0 %3812
    %v3814 = vsel %vm25, %v3790, 0.0
    %3815 = vadd.xlane.f32.xlu0 %v3814
    %v3816 = vpop.xlane.xlu0 %3815
    %v3817 = vsel %vm25, %v3792, 0.0
    %3818 = vadd.xlane.f32.xlu0 %v3817
    %v3819 = vpop.xlane.xlu0 %3818
    %v3820 = vsel %vm25, %v3794, 0.0
    %3821 = vadd.xlane.f32.xlu0 %v3820
    %v3822 = vpop.xlane.xlu0 %3821
    %v3823 = vsel %vm25, %v3796, 0.0
    %3824 = vadd.xlane.f32.xlu0 %v3823
    %v3825 = vpop.xlane.xlu0 %3824
    %v3826 = vsel %vm25, %v3798, 0.0
    %3827 = vadd.xlane.f32.xlu0 %v3826
    %v3828 = vpop.xlane.xlu0 %3827
    %v3829 = vsel %vm25, %v3800, 0.0
    %3830 = vadd.xlane.f32.xlu0 %v3829
    %v3831 = vpop.xlane.xlu0 %3830
    %v3832 = vsel %vm25, %v3802, 0.0
    %3833 = vadd.xlane.f32.xlu0 %v3832
    %v3834 = vpop.xlane.xlu0 %3833
    %v3835 = vmax.f32 %v3813, 1e-24
    %v3836 = vmax.f32 %v3816, 1e-24
    %v3837 = vmax.f32 %v3819, 1e-24
    %v3838 = vmax.f32 %v3822, 1e-24
    %v3839 = vmax.f32 %v3825, 1e-24
    %v3840 = vmax.f32 %v3828, 1e-24
    %v3841 = vmax.f32 %v3831, 1e-24
    %v3842 = vmax.f32 %v3834, 1e-24
    %v3843 = vrsqrt.pop %v3835
    %v3844 = vrsqrt.pop %v3836
    %v3845 = vrsqrt.pop %v3837
    %v3846 = vrsqrt.pop %v3838
    %v3847 = vrsqrt.pop %v3839
    %v3848 = vrsqrt.pop %v3840
    %v3849 = vrsqrt.pop %v3841
    %v3850 = vrsqrt.pop %v3842
    %v3851 = vmul.f32 %v3765, %v3843
    %v3852 = vmul.f32 %v3768, %v3844
    %v3853 = vmul.f32 %v3771, %v3845
    %v3854 = vmul.f32 %v3774, %v3846
    %v3855 = vmul.f32 %v3777, %v3847
    %v3856 = vmul.f32 %v3780, %v3848
    %v3857 = vmul.f32 %v3783, %v3849
    %v3858 = vmul.f32 %v3786, %v3850
    %v3859 = vadd.f32 %v3731, %v3851
    %v3860 = vadd.f32 %v3732, %v3852
    %v3861 = vadd.f32 %v3733, %v3853
    %v3862 = vadd.f32 %v3734, %v3854
    %v3863 = vadd.f32 %v3735, %v3855
    %v3864 = vadd.f32 %v3736, %v3856
    %v3865 = vadd.f32 %v3737, %v3857
    %v3866 = vadd.f32 %v3738, %v3858
    %v3867 = vadd.f32 %v3859, %v902
    %v3868 = vadd.f32 %v3860, %v902
    %v3869 = vadd.f32 %v3861, %v902
    %v3870 = vadd.f32 %v3862, %v902
    %v3871 = vadd.f32 %v3863, %v902
    %v3872 = vadd.f32 %v3864, %v902
    %v3873 = vadd.f32 %v3865, %v902
    %v3874 = vadd.f32 %v3866, %v902
    %v3883 = vlaneseq
    %v3884 = vshrl.u32 %v3883, 7
    %v3885 = vsub.s32 %v921, %v3884
    %v3886 = vrot.slane %v3867, %v3885
    %v3887 = vlaneseq
    %v3888 = vshrl.u32 %v3887, 7
    %v3889 = vsub.s32 %v921, %v3888
    %v3890 = vrot.slane %v3868, %v3889
    %v3891 = vlaneseq
    %v3892 = vshrl.u32 %v3891, 7
    %v3893 = vsub.s32 %v921, %v3892
    %v3894 = vrot.slane %v3869, %v3893
    %v3895 = vlaneseq
    %v3896 = vshrl.u32 %v3895, 7
    %v3897 = vsub.s32 %v921, %v3896
    %v3898 = vrot.slane %v3870, %v3897
    %v3899 = vlaneseq
    %v3900 = vshrl.u32 %v3899, 7
    %v3901 = vsub.s32 %v921, %v3900
    %v3902 = vrot.slane %v3871, %v3901
    %v3903 = vlaneseq
    %v3904 = vshrl.u32 %v3903, 7
    %v3905 = vsub.s32 %v921, %v3904
    %v3906 = vrot.slane %v3872, %v3905
    %v3907 = vlaneseq
    %v3908 = vshrl.u32 %v3907, 7
    %v3909 = vsub.s32 %v921, %v3908
    %v3910 = vrot.slane %v3873, %v3909
    %v3911 = vlaneseq
    %v3912 = vshrl.u32 %v3911, 7
    %v3913 = vsub.s32 %v921, %v3912
    %v3914 = vrot.slane %v3874, %v3913
    %v3915 = vsel %vm954, %v3890, %v3886
    %v3916 = vsel %vm956, %v3894, %v3915
    %v3917 = vsel %vm958, %v3898, %v3916
    %v3918 = vsel %vm960, %v3902, %v3917
    %v3919 = vsel %vm962, %v3906, %v3918
    %v3920 = vsel %vm964, %v3910, %v3919
    %v3921 = vsel %vm966, %v3914, %v3920
    %v3923 = vsel %vm25, %v3921, -inf
    %3924 = vmax.xlane.f32.xlu0 %v3923
    %v3925 = vpop.xlane.xlu0 %3924
    %v3927 = vlaneseq
    %v3928 = vshrl.u32 %v3927, 7
    %v3929 = vsub.s32 0, %v3928
    %v3930 = vrot.slane %v3925, %v3929
    %v3931 = vlaneseq
    %v3932 = vshrl.u32 %v3931, 7
    %v3933 = vsub.s32 1, %v3932
    %v3934 = vrot.slane %v3925, %v3933
    %v3935 = vlaneseq
    %v3936 = vshrl.u32 %v3935, 7
    %v3937 = vsub.s32 2, %v3936
    %v3938 = vrot.slane %v3925, %v3937
    %v3939 = vlaneseq
    %v3940 = vshrl.u32 %v3939, 7
    %v3941 = vsub.s32 3, %v3940
    %v3942 = vrot.slane %v3925, %v3941
    %v3943 = vlaneseq
    %v3944 = vshrl.u32 %v3943, 7
    %v3945 = vsub.s32 4, %v3944
    %v3946 = vrot.slane %v3925, %v3945
    %v3947 = vlaneseq
    %v3948 = vshrl.u32 %v3947, 7
    %v3949 = vsub.s32 5, %v3948
    %v3950 = vrot.slane %v3925, %v3949
    %v3951 = vlaneseq
    %v3952 = vshrl.u32 %v3951, 7
    %v3953 = vsub.s32 6, %v3952
    %v3954 = vrot.slane %v3925, %v3953
    %v3955 = vlaneseq
    %v3956 = vshrl.u32 %v3955, 7
    %v3957 = vsub.s32 7, %v3956
    %v3958 = vrot.slane %v3925, %v3957
    %v3967 = vsub.f32 %v3867, %v3930
    %v3968 = vsub.f32 %v3868, %v3934
    %v3969 = vsub.f32 %v3869, %v3938
    %v3970 = vsub.f32 %v3870, %v3942
    %v3971 = vsub.f32 %v3871, %v3946
    %v3972 = vsub.f32 %v3872, %v3950
    %v3973 = vsub.f32 %v3873, %v3954
    %v3974 = vsub.f32 %v3874, %v3958
    %v3975 = vmul.f32 %v3967, 1.442695
    %v3976 = vpow.pop %v3975
    %v3977 = vmul.f32 %v3968, 1.442695
    %v3978 = vpow.pop %v3977
    %v3979 = vmul.f32 %v3969, 1.442695
    %v3980 = vpow.pop %v3979
    %v3981 = vmul.f32 %v3970, 1.442695
    %v3982 = vpow.pop %v3981
    %v3983 = vmul.f32 %v3971, 1.442695
    %v3984 = vpow.pop %v3983
    %v3985 = vmul.f32 %v3972, 1.442695
    %v3986 = vpow.pop %v3985
    %v3987 = vmul.f32 %v3973, 1.442695
    %v3988 = vpow.pop %v3987
    %v3989 = vmul.f32 %v3974, 1.442695
    %v3990 = vpow.pop %v3989
    %3999 = vset.pattern.permute.xlu0 0
    %4000 = vperm.xlu0 %3999, %v3976
    %v4001 = vpop.permute.xlu0 %4000
    %4002 = vset.pattern.permute.xlu0 0
    %4003 = vperm.xlu0 %4002, %v3978
    %v4004 = vpop.permute.xlu0 %4003
    %4005 = vset.pattern.permute.xlu0 0
    %4006 = vperm.xlu0 %4005, %v3980
    %v4007 = vpop.permute.xlu0 %4006
    %4008 = vset.pattern.permute.xlu0 0
    %4009 = vperm.xlu0 %4008, %v3982
    %v4010 = vpop.permute.xlu0 %4009
    %4011 = vset.pattern.permute.xlu0 0
    %4012 = vperm.xlu0 %4011, %v3984
    %v4013 = vpop.permute.xlu0 %4012
    %4014 = vset.pattern.permute.xlu0 0
    %4015 = vperm.xlu0 %4014, %v3986
    %v4016 = vpop.permute.xlu0 %4015
    %4017 = vset.pattern.permute.xlu0 0
    %4018 = vperm.xlu0 %4017, %v3988
    %v4019 = vpop.permute.xlu0 %4018
    %4020 = vset.pattern.permute.xlu0 0
    %4021 = vperm.xlu0 %4020, %v3990
    %v4022 = vpop.permute.xlu0 %4021
    %v4023 = vlaneseq
    %v4024 = vshrl.u32 %v4023, 7
    %v4025 = vsub.s32 %v921, %v4024
    %v4026 = vrot.slane %v4001, %v4025
    %v4027 = vlaneseq
    %v4028 = vshrl.u32 %v4027, 7
    %v4029 = vsub.s32 %v921, %v4028
    %v4030 = vrot.slane %v4004, %v4029
    %v4031 = vlaneseq
    %v4032 = vshrl.u32 %v4031, 7
    %v4033 = vsub.s32 %v921, %v4032
    %v4034 = vrot.slane %v4007, %v4033
    %v4035 = vlaneseq
    %v4036 = vshrl.u32 %v4035, 7
    %v4037 = vsub.s32 %v921, %v4036
    %v4038 = vrot.slane %v4010, %v4037
    %v4039 = vlaneseq
    %v4040 = vshrl.u32 %v4039, 7
    %v4041 = vsub.s32 %v921, %v4040
    %v4042 = vrot.slane %v4013, %v4041
    %v4043 = vlaneseq
    %v4044 = vshrl.u32 %v4043, 7
    %v4045 = vsub.s32 %v921, %v4044
    %v4046 = vrot.slane %v4016, %v4045
    %v4047 = vlaneseq
    %v4048 = vshrl.u32 %v4047, 7
    %v4049 = vsub.s32 %v921, %v4048
    %v4050 = vrot.slane %v4019, %v4049
    %v4051 = vlaneseq
    %v4052 = vshrl.u32 %v4051, 7
    %v4053 = vsub.s32 %v921, %v4052
    %v4054 = vrot.slane %v4022, %v4053
    %v4055 = vsel %vm954, %v4030, %v4026
    %v4056 = vsel %vm956, %v4034, %v4055
    %v4057 = vsel %vm958, %v4038, %v4056
    %v4058 = vsel %vm960, %v4042, %v4057
    %v4059 = vsel %vm962, %v4046, %v4058
    %v4060 = vsel %vm964, %v4050, %v4059
    %v4061 = vsel %vm966, %v4054, %v4060
    %v4063 = vsel %vm25, %v4061, 0.0
    %4064 = vadd.xlane.f32.xlu0 %v4063
    %v4065 = vpop.xlane.xlu0 %4064
    %v4066 = vrcp.pop %v4065
    %v4068 = vlaneseq
    %v4069 = vshrl.u32 %v4068, 7
    %v4070 = vsub.s32 0, %v4069
    %v4071 = vrot.slane %v4066, %v4070
    %v4072 = vlaneseq
    %v4073 = vshrl.u32 %v4072, 7
    %v4074 = vsub.s32 1, %v4073
    %v4075 = vrot.slane %v4066, %v4074
    %v4076 = vlaneseq
    %v4077 = vshrl.u32 %v4076, 7
    %v4078 = vsub.s32 2, %v4077
    %v4079 = vrot.slane %v4066, %v4078
    %v4080 = vlaneseq
    %v4081 = vshrl.u32 %v4080, 7
    %v4082 = vsub.s32 3, %v4081
    %v4083 = vrot.slane %v4066, %v4082
    %v4084 = vlaneseq
    %v4085 = vshrl.u32 %v4084, 7
    %v4086 = vsub.s32 4, %v4085
    %v4087 = vrot.slane %v4066, %v4086
    %v4088 = vlaneseq
    %v4089 = vshrl.u32 %v4088, 7
    %v4090 = vsub.s32 5, %v4089
    %v4091 = vrot.slane %v4066, %v4090
    %v4092 = vlaneseq
    %v4093 = vshrl.u32 %v4092, 7
    %v4094 = vsub.s32 6, %v4093
    %v4095 = vrot.slane %v4066, %v4094
    %v4096 = vlaneseq
    %v4097 = vshrl.u32 %v4096, 7
    %v4098 = vsub.s32 7, %v4097
    %v4099 = vrot.slane %v4066, %v4098
    %v4108 = vmul.f32 %v3976, %v4071
    %v4109 = vmul.f32 %v3978, %v4075
    %v4110 = vmul.f32 %v3980, %v4079
    %v4111 = vmul.f32 %v3982, %v4083
    %v4112 = vmul.f32 %v3984, %v4087
    %v4113 = vmul.f32 %v3986, %v4091
    %v4114 = vmul.f32 %v3988, %v4095
    %v4115 = vmul.f32 %v3990, %v4099
    %4124 = vset.pattern.permute.xlu0 0
    %4125 = vperm.xlu0 %4124, %v4108
    %v4126 = vpop.permute.xlu0 %4125
    %4127 = vset.pattern.permute.xlu0 0
    %4128 = vperm.xlu0 %4127, %v4109
    %v4129 = vpop.permute.xlu0 %4128
    %4130 = vset.pattern.permute.xlu0 0
    %4131 = vperm.xlu0 %4130, %v4110
    %v4132 = vpop.permute.xlu0 %4131
    %4133 = vset.pattern.permute.xlu0 0
    %4134 = vperm.xlu0 %4133, %v4111
    %v4135 = vpop.permute.xlu0 %4134
    %4136 = vset.pattern.permute.xlu0 0
    %4137 = vperm.xlu0 %4136, %v4112
    %v4138 = vpop.permute.xlu0 %4137
    %4139 = vset.pattern.permute.xlu0 0
    %4140 = vperm.xlu0 %4139, %v4113
    %v4141 = vpop.permute.xlu0 %4140
    %4142 = vset.pattern.permute.xlu0 0
    %4143 = vperm.xlu0 %4142, %v4114
    %v4144 = vpop.permute.xlu0 %4143
    %4145 = vset.pattern.permute.xlu0 0
    %4146 = vperm.xlu0 %4145, %v4115
    %v4147 = vpop.permute.xlu0 %4146
    %v4148 = vlaneseq
    %v4149 = vshrl.u32 %v4148, 7
    %v4150 = vsub.s32 %v921, %v4149
    %v4151 = vrot.slane %v4126, %v4150
    %v4152 = vlaneseq
    %v4153 = vshrl.u32 %v4152, 7
    %v4154 = vsub.s32 %v921, %v4153
    %v4155 = vrot.slane %v4129, %v4154
    %v4156 = vlaneseq
    %v4157 = vshrl.u32 %v4156, 7
    %v4158 = vsub.s32 %v921, %v4157
    %v4159 = vrot.slane %v4132, %v4158
    %v4160 = vlaneseq
    %v4161 = vshrl.u32 %v4160, 7
    %v4162 = vsub.s32 %v921, %v4161
    %v4163 = vrot.slane %v4135, %v4162
    %v4164 = vlaneseq
    %v4165 = vshrl.u32 %v4164, 7
    %v4166 = vsub.s32 %v921, %v4165
    %v4167 = vrot.slane %v4138, %v4166
    %v4168 = vlaneseq
    %v4169 = vshrl.u32 %v4168, 7
    %v4170 = vsub.s32 %v921, %v4169
    %v4171 = vrot.slane %v4141, %v4170
    %v4172 = vlaneseq
    %v4173 = vshrl.u32 %v4172, 7
    %v4174 = vsub.s32 %v921, %v4173
    %v4175 = vrot.slane %v4144, %v4174
    %v4176 = vlaneseq
    %v4177 = vshrl.u32 %v4176, 7
    %v4178 = vsub.s32 %v921, %v4177
    %v4179 = vrot.slane %v4147, %v4178
    %v4180 = vsel %vm954, %v4155, %v4151
    %v4181 = vsel %vm956, %v4159, %v4180
    %v4182 = vsel %vm958, %v4163, %v4181
    %v4183 = vsel %vm960, %v4167, %v4182
    %v4184 = vsel %vm962, %v4171, %v4183
    %v4185 = vsel %vm964, %v4175, %v4184
    %v4186 = vsel %vm966, %v4179, %v4185
    %v4187 = vsel %vm25, %v4186, 0
    %4189 = vmatprep.subr.mxu0 0.0
    %4190 = vmatpush1.msra.mxu0 %v3161
    %4191 = vmatprep.subr.mxu0 0.0
    %4192 = vmatpush1.msra.mxu0 0.0
    %4193 = vmatprep.subr.mxu0 0.0
    %4194 = vmatpush1.msra.mxu0 0.0
    %4195 = vmatprep.subr.mxu0 0.0
    %4196 = vmatpush1.msra.mxu0 0.0
    %4197 = vmatprep.subr.mxu0 0.0
    %4198 = vmatpush1.msra.mxu0 0.0
    %4199 = vmatprep.subr.mxu0 0.0
    %4200 = vmatpush1.msra.mxu0 0.0
    %4201 = vmatprep.subr.mxu0 0.0
    %4202 = vmatpush1.msra.mxu0 0.0
    %4203 = vmatprep.subr.mxu0 0.0
    %4204 = vmatpush1.msra.mxu0 0.0
    %4205 = vmatprep.subr.mxu0 0.0
    %4206 = vmatpush1.msra.mxu0 0.0
    %4207 = vmatprep.subr.mxu0 0.0
    %4208 = vmatpush1.msra.mxu0 0.0
    %4209 = vmatprep.subr.mxu0 0.0
    %4210 = vmatpush1.msra.mxu0 0.0
    %4211 = vmatprep.subr.mxu0 0.0
    %4212 = vmatpush1.msra.mxu0 0.0
    %4213 = vmatprep.subr.mxu0 0.0
    %4214 = vmatpush1.msra.mxu0 0.0
    %4215 = vmatprep.subr.mxu0 0.0
    %4216 = vmatpush1.msra.mxu0 0.0
    %4217 = vmatprep.subr.mxu0 0.0
    %4218 = vmatpush1.msra.mxu0 0.0
    %4219 = vmatprep.subr.mxu0 0.0
    %4220 = vmatpush1.msra.mxu0 0.0
    %4221 = vmatprep.subr.mxu0 0.0
    %4222 = vmatpush1.msra.mxu0 0.0
    %4223 = vmatprep.subr.mxu0 0.0
    %4224 = vmatpush1.msra.mxu0 0.0
    %4225 = vmatprep.subr.mxu0 0.0
    %4226 = vmatpush1.msra.mxu0 0.0
    %4227 = vmatprep.subr.mxu0 0.0
    %4228 = vmatpush1.msra.mxu0 0.0
    %4229 = vmatprep.subr.mxu0 0.0
    %4230 = vmatpush1.msra.mxu0 0.0
    %4231 = vmatprep.subr.mxu0 0.0
    %4232 = vmatpush1.msra.mxu0 0.0
    %4233 = vmatprep.subr.mxu0 0.0
    %4234 = vmatpush1.msra.mxu0 0.0
    %4235 = vmatprep.subr.mxu0 0.0
    %4236 = vmatpush1.msra.mxu0 0.0
    %4237 = vmatprep.subr.mxu0 0.0
    %4238 = vmatpush1.msra.mxu0 0.0
    %4239 = vmatprep.subr.mxu0 0.0
    %4240 = vmatpush1.msra.mxu0 0.0
    %4241 = vmatprep.subr.mxu0 0.0
    %4242 = vmatpush1.msra.mxu0 0.0
    %4243 = vmatprep.subr.mxu0 0.0
    %4244 = vmatpush1.msra.mxu0 0.0
    %4245 = vmatprep.subr.mxu0 0.0
    %4246 = vmatpush1.msra.mxu0 0.0
    %4247 = vmatprep.subr.mxu0 0.0
    %4248 = vmatpush1.msra.mxu0 0.0
    %4249 = vmatprep.subr.mxu0 0.0
    %4250 = vmatpush1.msra.mxu0 0.0
    %4251 = vmatprep.subr.mxu0 0.0
    %4252 = vmatpush1.msra.mxu0 0.0
    %4253 = vmatprep.mubr.f32.mxu0 0.0
    %4254 = vmatmul.mubr.f32.gmra.mrb[0].mxu0 %v4187
    %v4255 = vpop.f32.mrb[0].mxu0
    %v4256 = vadd.f32 0.0, %v4255
    %v4257 = vpop.f32.mrb[0].mxu0
    %4258 = vdwg.mxu0
    %4260 = vrot.lane.b32.xlu0 %v4256, 120
    %v4261 = vpop.permute.xlu0 %4260
    %4263 = vmatprep.subr.mxu0 0.0
    %4264 = vmatpush1.msra.mxu0 %v4261
    %4265 = vmatprep.subr.mxu0 0.0
    %4266 = vmatpush1.msra.mxu0 0.0
    %4267 = vmatprep.subr.mxu0 0.0
    %4268 = vmatpush1.msra.mxu0 0.0
    %4269 = vmatprep.subr.mxu0 0.0
    %4270 = vmatpush1.msra.mxu0 0.0
    %4271 = vmatprep.subr.mxu0 0.0
    %4272 = vmatpush1.msra.mxu0 0.0
    %4273 = vmatprep.subr.mxu0 0.0
    %4274 = vmatpush1.msra.mxu0 0.0
    %4275 = vmatprep.subr.mxu0 0.0
    %4276 = vmatpush1.msra.mxu0 0.0
    %4277 = vmatprep.subr.mxu0 0.0
    %4278 = vmatpush1.msra.mxu0 0.0
    %4279 = vmatprep.subr.mxu0 0.0
    %4280 = vmatpush1.msra.mxu0 0.0
    %4281 = vmatprep.subr.mxu0 0.0
    %4282 = vmatpush1.msra.mxu0 0.0
    %4283 = vmatprep.subr.mxu0 0.0
    %4284 = vmatpush1.msra.mxu0 0.0
    %4285 = vmatprep.subr.mxu0 0.0
    %4286 = vmatpush1.msra.mxu0 0.0
    %4287 = vmatprep.subr.mxu0 0.0
    %4288 = vmatpush1.msra.mxu0 0.0
    %4289 = vmatprep.subr.mxu0 0.0
    %4290 = vmatpush1.msra.mxu0 0.0
    %4291 = vmatprep.subr.mxu0 0.0
    %4292 = vmatpush1.msra.mxu0 0.0
    %4293 = vmatprep.subr.mxu0 0.0
    %4294 = vmatpush1.msra.mxu0 0.0
    %4295 = vmatprep.subr.mxu0 0.0
    %4296 = vmatpush1.msra.mxu0 0.0
    %4297 = vmatprep.subr.mxu0 0.0
    %4298 = vmatpush1.msra.mxu0 0.0
    %4299 = vmatprep.subr.mxu0 0.0
    %4300 = vmatpush1.msra.mxu0 0.0
    %4301 = vmatprep.subr.mxu0 0.0
    %4302 = vmatpush1.msra.mxu0 0.0
    %4303 = vmatprep.subr.mxu0 0.0
    %4304 = vmatpush1.msra.mxu0 0.0
    %4305 = vmatprep.subr.mxu0 0.0
    %4306 = vmatpush1.msra.mxu0 0.0
    %4307 = vmatprep.subr.mxu0 0.0
    %4308 = vmatpush1.msra.mxu0 0.0
    %4309 = vmatprep.subr.mxu0 0.0
    %4310 = vmatpush1.msra.mxu0 0.0
    %4311 = vmatprep.subr.mxu0 0.0
    %4312 = vmatpush1.msra.mxu0 0.0
    %4313 = vmatprep.subr.mxu0 0.0
    %4314 = vmatpush1.msra.mxu0 0.0
    %4315 = vmatprep.subr.mxu0 0.0
    %4316 = vmatpush1.msra.mxu0 0.0
    %4317 = vmatprep.subr.mxu0 0.0
    %4318 = vmatpush1.msra.mxu0 0.0
    %4319 = vmatprep.subr.mxu0 0.0
    %4320 = vmatpush1.msra.mxu0 0.0
    %4321 = vmatprep.subr.mxu0 0.0
    %4322 = vmatpush1.msra.mxu0 0.0
    %4323 = vmatprep.subr.mxu0 0.0
    %4324 = vmatpush1.msra.mxu0 0.0
    %4325 = vmatprep.subr.mxu0 0.0
    %4326 = vmatpush1.msra.mxu0 0.0
    %4327 = vmatprep.mubr.f32.mxu0 0.0
    %4328 = vmatmul.mubr.f32.gmra.mrb[0].mxu0 %v1312
    %v4329 = vpop.f32.mrb[0].mxu0
    %v4330 = vadd.f32 0.0, %v4329
    %v4331 = vpop.f32.mrb[0].mxu0
    %4332 = vdwg.mxu0
    %4333 = vmatprep.subr.mxu0 0.0
    %4334 = vmatpush1.msra.mxu0 %v4256
    %4335 = vmatprep.subr.mxu0 0.0
    %4336 = vmatpush1.msra.mxu0 0.0
    %4337 = vmatprep.subr.mxu0 0.0
    %4338 = vmatpush1.msra.mxu0 0.0
    %4339 = vmatprep.subr.mxu0 0.0
    %4340 = vmatpush1.msra.mxu0 0.0
    %4341 = vmatprep.subr.mxu0 0.0
    %4342 = vmatpush1.msra.mxu0 0.0
    %4343 = vmatprep.subr.mxu0 0.0
    %4344 = vmatpush1.msra.mxu0 0.0
    %4345 = vmatprep.subr.mxu0 0.0
    %4346 = vmatpush1.msra.mxu0 0.0
    %4347 = vmatprep.subr.mxu0 0.0
    %4348 = vmatpush1.msra.mxu0 0.0
    %4349 = vmatprep.subr.mxu0 0.0
    %4350 = vmatpush1.msra.mxu0 0.0
    %4351 = vmatprep.subr.mxu0 0.0
    %4352 = vmatpush1.msra.mxu0 0.0
    %4353 = vmatprep.subr.mxu0 0.0
    %4354 = vmatpush1.msra.mxu0 0.0
    %4355 = vmatprep.subr.mxu0 0.0
    %4356 = vmatpush1.msra.mxu0 0.0
    %4357 = vmatprep.subr.mxu0 0.0
    %4358 = vmatpush1.msra.mxu0 0.0
    %4359 = vmatprep.subr.mxu0 0.0
    %4360 = vmatpush1.msra.mxu0 0.0
    %4361 = vmatprep.subr.mxu0 0.0
    %4362 = vmatpush1.msra.mxu0 0.0
    %4363 = vmatprep.subr.mxu0 0.0
    %4364 = vmatpush1.msra.mxu0 0.0
    %4365 = vmatprep.subr.mxu0 0.0
    %4366 = vmatpush1.msra.mxu0 0.0
    %4367 = vmatprep.subr.mxu0 0.0
    %4368 = vmatpush1.msra.mxu0 0.0
    %4369 = vmatprep.subr.mxu0 0.0
    %4370 = vmatpush1.msra.mxu0 0.0
    %4371 = vmatprep.subr.mxu0 0.0
    %4372 = vmatpush1.msra.mxu0 0.0
    %4373 = vmatprep.subr.mxu0 0.0
    %4374 = vmatpush1.msra.mxu0 0.0
    %4375 = vmatprep.subr.mxu0 0.0
    %4376 = vmatpush1.msra.mxu0 0.0
    %4377 = vmatprep.subr.mxu0 0.0
    %4378 = vmatpush1.msra.mxu0 0.0
    %4379 = vmatprep.subr.mxu0 0.0
    %4380 = vmatpush1.msra.mxu0 0.0
    %4381 = vmatprep.subr.mxu0 0.0
    %4382 = vmatpush1.msra.mxu0 0.0
    %4383 = vmatprep.subr.mxu0 0.0
    %4384 = vmatpush1.msra.mxu0 0.0
    %4385 = vmatprep.subr.mxu0 0.0
    %4386 = vmatpush1.msra.mxu0 0.0
    %4387 = vmatprep.subr.mxu0 0.0
    %4388 = vmatpush1.msra.mxu0 0.0
    %4389 = vmatprep.subr.mxu0 0.0
    %4390 = vmatpush1.msra.mxu0 0.0
    %4391 = vmatprep.subr.mxu0 0.0
    %4392 = vmatpush1.msra.mxu0 0.0
    %4393 = vmatprep.subr.mxu0 0.0
    %4394 = vmatpush1.msra.mxu0 0.0
    %4395 = vmatprep.subr.mxu0 0.0
    %4396 = vmatpush1.msra.mxu0 0.0
    %4397 = vmatprep.mubr.f32.mxu0 0.0
    %4398 = vmatmul.mubr.f32.gmra.mrb[0].mxu0 %v1384
    %v4399 = vpop.f32.mrb[0].mxu0
    %v4400 = vadd.f32 %v4330, %v4399
    %v4401 = vpop.f32.mrb[0].mxu0
    %4402 = vdwg.mxu0
    %4403 = vrot.lane.b32.xlu0 %v4256, 112
    %v4404 = vpop.permute.xlu0 %4403
    %4406 = vmatprep.subr.mxu0 0.0
    %4407 = vmatpush1.msra.mxu0 %v4404
    %4408 = vmatprep.subr.mxu0 0.0
    %4409 = vmatpush1.msra.mxu0 0.0
    %4410 = vmatprep.subr.mxu0 0.0
    %4411 = vmatpush1.msra.mxu0 0.0
    %4412 = vmatprep.subr.mxu0 0.0
    %4413 = vmatpush1.msra.mxu0 0.0
    %4414 = vmatprep.subr.mxu0 0.0
    %4415 = vmatpush1.msra.mxu0 0.0
    %4416 = vmatprep.subr.mxu0 0.0
    %4417 = vmatpush1.msra.mxu0 0.0
    %4418 = vmatprep.subr.mxu0 0.0
    %4419 = vmatpush1.msra.mxu0 0.0
    %4420 = vmatprep.subr.mxu0 0.0
    %4421 = vmatpush1.msra.mxu0 0.0
    %4422 = vmatprep.subr.mxu0 0.0
    %4423 = vmatpush1.msra.mxu0 0.0
    %4424 = vmatprep.subr.mxu0 0.0
    %4425 = vmatpush1.msra.mxu0 0.0
    %4426 = vmatprep.subr.mxu0 0.0
    %4427 = vmatpush1.msra.mxu0 0.0
    %4428 = vmatprep.subr.mxu0 0.0
    %4429 = vmatpush1.msra.mxu0 0.0
    %4430 = vmatprep.subr.mxu0 0.0
    %4431 = vmatpush1.msra.mxu0 0.0
    %4432 = vmatprep.subr.mxu0 0.0
    %4433 = vmatpush1.msra.mxu0 0.0
    %4434 = vmatprep.subr.mxu0 0.0
    %4435 = vmatpush1.msra.mxu0 0.0
    %4436 = vmatprep.subr.mxu0 0.0
    %4437 = vmatpush1.msra.mxu0 0.0
    %4438 = vmatprep.subr.mxu0 0.0
    %4439 = vmatpush1.msra.mxu0 0.0
    %4440 = vmatprep.subr.mxu0 0.0
    %4441 = vmatpush1.msra.mxu0 0.0
    %4442 = vmatprep.subr.mxu0 0.0
    %4443 = vmatpush1.msra.mxu0 0.0
    %4444 = vmatprep.subr.mxu0 0.0
    %4445 = vmatpush1.msra.mxu0 0.0
    %4446 = vmatprep.subr.mxu0 0.0
    %4447 = vmatpush1.msra.mxu0 0.0
    %4448 = vmatprep.subr.mxu0 0.0
    %4449 = vmatpush1.msra.mxu0 0.0
    %4450 = vmatprep.subr.mxu0 0.0
    %4451 = vmatpush1.msra.mxu0 0.0
    %4452 = vmatprep.subr.mxu0 0.0
    %4453 = vmatpush1.msra.mxu0 0.0
    %4454 = vmatprep.subr.mxu0 0.0
    %4455 = vmatpush1.msra.mxu0 0.0
    %4456 = vmatprep.subr.mxu0 0.0
    %4457 = vmatpush1.msra.mxu0 0.0
    %4458 = vmatprep.subr.mxu0 0.0
    %4459 = vmatpush1.msra.mxu0 0.0
    %4460 = vmatprep.subr.mxu0 0.0
    %4461 = vmatpush1.msra.mxu0 0.0
    %4462 = vmatprep.subr.mxu0 0.0
    %4463 = vmatpush1.msra.mxu0 0.0
    %4464 = vmatprep.subr.mxu0 0.0
    %4465 = vmatpush1.msra.mxu0 0.0
    %4466 = vmatprep.subr.mxu0 0.0
    %4467 = vmatpush1.msra.mxu0 0.0
    %4468 = vmatprep.subr.mxu0 0.0
    %4469 = vmatpush1.msra.mxu0 0.0
    %4470 = vmatprep.mubr.f32.mxu0 0.0
    %4471 = vmatmul.mubr.f32.gmra.mrb[0].mxu0 %v1461
    %v4472 = vpop.f32.mrb[0].mxu0
    %v4473 = vadd.f32 0.0, %v4472
    %v4474 = vpop.f32.mrb[0].mxu0
    %4475 = vdwg.mxu0
    %v4476 = vadd.f32 %v4400, %v4473
    %4477 = vrot.lane.b32.xlu0 %v4256, 104
    %v4478 = vpop.permute.xlu0 %4477
    %4480 = vmatprep.subr.mxu0 0.0
    %4481 = vmatpush1.msra.mxu0 %v4478
    %4482 = vmatprep.subr.mxu0 0.0
    %4483 = vmatpush1.msra.mxu0 0.0
    %4484 = vmatprep.subr.mxu0 0.0
    %4485 = vmatpush1.msra.mxu0 0.0
    %4486 = vmatprep.subr.mxu0 0.0
    %4487 = vmatpush1.msra.mxu0 0.0
    %4488 = vmatprep.subr.mxu0 0.0
    %4489 = vmatpush1.msra.mxu0 0.0
    %4490 = vmatprep.subr.mxu0 0.0
    %4491 = vmatpush1.msra.mxu0 0.0
    %4492 = vmatprep.subr.mxu0 0.0
    %4493 = vmatpush1.msra.mxu0 0.0
    %4494 = vmatprep.subr.mxu0 0.0
    %4495 = vmatpush1.msra.mxu0 0.0
    %4496 = vmatprep.subr.mxu0 0.0
    %4497 = vmatpush1.msra.mxu0 0.0
    %4498 = vmatprep.subr.mxu0 0.0
    %4499 = vmatpush1.msra.mxu0 0.0
    %4500 = vmatprep.subr.mxu0 0.0
    %4501 = vmatpush1.msra.mxu0 0.0
    %4502 = vmatprep.subr.mxu0 0.0
    %4503 = vmatpush1.msra.mxu0 0.0
    %4504 = vmatprep.subr.mxu0 0.0
    %4505 = vmatpush1.msra.mxu0 0.0
    %4506 = vmatprep.subr.mxu0 0.0
    %4507 = vmatpush1.msra.mxu0 0.0
    %4508 = vmatprep.subr.mxu0 0.0
    %4509 = vmatpush1.msra.mxu0 0.0
    %4510 = vmatprep.subr.mxu0 0.0
    %4511 = vmatpush1.msra.mxu0 0.0
    %4512 = vmatprep.subr.mxu0 0.0
    %4513 = vmatpush1.msra.mxu0 0.0
    %4514 = vmatprep.subr.mxu0 0.0
    %4515 = vmatpush1.msra.mxu0 0.0
    %4516 = vmatprep.subr.mxu0 0.0
    %4517 = vmatpush1.msra.mxu0 0.0
    %4518 = vmatprep.subr.mxu0 0.0
    %4519 = vmatpush1.msra.mxu0 0.0
    %4520 = vmatprep.subr.mxu0 0.0
    %4521 = vmatpush1.msra.mxu0 0.0
    %4522 = vmatprep.subr.mxu0 0.0
    %4523 = vmatpush1.msra.mxu0 0.0
    %4524 = vmatprep.subr.mxu0 0.0
    %4525 = vmatpush1.msra.mxu0 0.0
    %4526 = vmatprep.subr.mxu0 0.0
    %4527 = vmatpush1.msra.mxu0 0.0
    %4528 = vmatprep.subr.mxu0 0.0
    %4529 = vmatpush1.msra.mxu0 0.0
    %4530 = vmatprep.subr.mxu0 0.0
    %4531 = vmatpush1.msra.mxu0 0.0
    %4532 = vmatprep.subr.mxu0 0.0
    %4533 = vmatpush1.msra.mxu0 0.0
    %4534 = vmatprep.subr.mxu0 0.0
    %4535 = vmatpush1.msra.mxu0 0.0
    %4536 = vmatprep.subr.mxu0 0.0
    %4537 = vmatpush1.msra.mxu0 0.0
    %4538 = vmatprep.subr.mxu0 0.0
    %4539 = vmatpush1.msra.mxu0 0.0
    %4540 = vmatprep.subr.mxu0 0.0
    %4541 = vmatpush1.msra.mxu0 0.0
    %4542 = vmatprep.subr.mxu0 0.0
    %4543 = vmatpush1.msra.mxu0 0.0
    %4544 = vmatprep.mubr.f32.mxu0 0.0
    %4545 = vmatmul.mubr.f32.gmra.mrb[0].mxu0 %v1539
    %v4546 = vpop.f32.mrb[0].mxu0
    %v4547 = vadd.f32 0.0, %v4546
    %v4548 = vpop.f32.mrb[0].mxu0
    %4549 = vdwg.mxu0
    %v4550 = vadd.f32 %v4476, %v4547
    %4551 = vxpose.xlu0.b32.start [1/16] %v4550, 128
    %4552 = vxpose.xlu0.b32.cont [2/16] 0.0, 128
    %4553 = vxpose.xlu0.b32.cont [3/16] 0.0, 128
    %4554 = vxpose.xlu0.b32.cont [4/16] 0.0, 128
    %4555 = vxpose.xlu0.b32.cont [5/16] 0.0, 128
    %4556 = vxpose.xlu0.b32.cont [6/16] 0.0, 128
    %4557 = vxpose.xlu0.b32.cont [7/16] 0.0, 128
    %4558 = vxpose.xlu0.b32.cont [8/16] 0.0, 128
    %4559 = vxpose.xlu0.b32.cont [9/16] 0.0, 128
    %4560 = vxpose.xlu0.b32.cont [10/16] 0.0, 128
    %4561 = vxpose.xlu0.b32.cont [11/16] 0.0, 128
    %4562 = vxpose.xlu0.b32.cont [12/16] 0.0, 128
    %4563 = vxpose.xlu0.b32.cont [13/16] 0.0, 128
    %4564 = vxpose.xlu0.b32.cont [14/16] 0.0, 128
    %4565 = vxpose.xlu0.b32.cont [15/16] 0.0, 128
    %4566 = vxpose.xlu0.b32.end [16/16] 0.0, 128
    %v4567 = vpop.trf.xlu0
    %v4568 = vpop.trf.xlu0
    %v4569 = vpop.trf.xlu0
    %v4570 = vpop.trf.xlu0
    %v4571 = vpop.trf.xlu0
    %v4572 = vpop.trf.xlu0
    %v4573 = vpop.trf.xlu0
    %v4574 = vpop.trf.xlu0
    %v4575 = vpop.trf.xlu0
    %v4576 = vpop.trf.xlu0
    %v4577 = vpop.trf.xlu0
    %v4578 = vpop.trf.xlu0
    %v4579 = vpop.trf.xlu0
    %v4580 = vpop.trf.xlu0
    %v4581 = vpop.trf.xlu0
    %v4582 = vpop.trf.xlu0
    %v4583 = vadd.f32 %v4567, %v1646
    %v4584 = vmul.f32 %v4583, %v1651
    %v4585 = vadd.f32 %v4584, %v1656
    %v4586 = vmax.f32 %v4585, 0.0
    %v4587 = vadd.f32 %v4586, %v3086
    %4588 = vst.msk [vmem:[#allocation2] sm:$0xff] %vm25, %v4587
    %v4590 = vcombine.high %v3166, %v3166
    %v4592 = vunpack.c.l.s4 1966171168
    %v4593 = vunpack.c.0.s8 %v4592
    %v4594 = vlaneseq
    %v4595 = vshrl.u32 %v4594, 7
    %v4596 = vsub.s32 %v4593, %v4595
    %v4597 = vrot.slane %v3166, %v4596
    %v4599 = vunpack.c.l.s4 1966171168
    %v4600 = vunpack.c.0.s8 %v4599
    %v4601 = vlaneseq
    %v4602 = vshrl.u32 %v4601, 7
    %v4603 = vsub.s32 %v4600, %v4602
    %v4604 = vrot.slane %v4590, %v4603
    %v4605 = vcombine.high %v4597, %v4597
    %v4606 = vcombine.high %v4604, %v4604
    %v4608 = vunpack.c.l.s4 1966171168
    %v4609 = vunpack.c.0.s8 %v4608
    %v4610 = vlaneseq
    %v4611 = vshrl.u32 %v4610, 7
    %v4612 = vsub.s32 %v4609, %v4611
    %v4613 = vrot.slane %v4597, %v4612
    %v4615 = vunpack.c.l.s4 1966171168
    %v4616 = vunpack.c.0.s8 %v4615
    %v4617 = vlaneseq
    %v4618 = vshrl.u32 %v4617, 7
    %v4619 = vsub.s32 %v4616, %v4618
    %v4620 = vrot.slane %v4604, %v4619
    %v4622 = vunpack.c.l.s4 1966171168
    %v4623 = vunpack.c.0.s8 %v4622
    %v4624 = vlaneseq
    %v4625 = vshrl.u32 %v4624, 7
    %v4626 = vsub.s32 %v4623, %v4625
    %v4627 = vrot.slane %v4605, %v4626
    %v4629 = vunpack.c.l.s4 1966171168
    %v4630 = vunpack.c.0.s8 %v4629
    %v4631 = vlaneseq
    %v4632 = vshrl.u32 %v4631, 7
    %v4633 = vsub.s32 %v4630, %v4632
    %v4634 = vrot.slane %v4606, %v4633
    %v4635 = vcombine.high %v4613, %v4613
    %v4636 = vcombine.high %v4620, %v4620
    %v4637 = vcombine.high %v4627, %v4627
    %v4638 = vcombine.high %v4634, %v4634
    %v4639 = vlaneseq
    %v4640 = vshrl.u32 %v4639, 7
    %v4641 = vsub.s32 0, %v4640
    %v4642 = vrot.slane %v4613, %v4641
    %v4643 = vlaneseq
    %v4644 = vshrl.u32 %v4643, 7
    %v4645 = vsub.s32 0, %v4644
    %v4646 = vrot.slane %v4627, %v4645
    %v4647 = vlaneseq
    %v4648 = vshrl.u32 %v4647, 7
    %v4649 = vsub.s32 0, %v4648
    %v4650 = vrot.slane %v4635, %v4649
    %v4651 = vlaneseq
    %v4652 = vshrl.u32 %v4651, 7
    %v4653 = vsub.s32 0, %v4652
    %v4654 = vrot.slane %v4637, %v4653
    %v4655 = vlaneseq
    %v4656 = vshrl.u32 %v4655, 7
    %v4657 = vsub.s32 0, %v4656
    %v4658 = vrot.slane %v4620, %v4657
    %v4659 = vlaneseq
    %v4660 = vshrl.u32 %v4659, 7
    %v4661 = vsub.s32 0, %v4660
    %v4662 = vrot.slane %v4634, %v4661
    %v4663 = vlaneseq
    %v4664 = vshrl.u32 %v4663, 7
    %v4665 = vsub.s32 0, %v4664
    %v4666 = vrot.slane %v4636, %v4665
    %v4667 = vlaneseq
    %v4668 = vshrl.u32 %v4667, 7
    %v4669 = vsub.s32 0, %v4668
    %v4670 = vrot.slane %v4638, %v4669
    %v4679 = vmul.f32 %v4642, %v1754
    %v4680 = vmul.f32 %v4646, %v1754
    %v4681 = vmul.f32 %v4650, %v1754
    %v4682 = vmul.f32 %v4654, %v1754
    %v4683 = vmul.f32 %v4658, %v1754
    %v4684 = vmul.f32 %v4662, %v1754
    %v4685 = vmul.f32 %v4666, %v1754
    %v4686 = vmul.f32 %v4670, %v1754
    %4695 = vrot.lane.b32.xlu0 %v4679, 96
    %v4696 = vpop.permute.xlu0 %4695
    %4697 = vrot.lane.b32.xlu0 %v4680, 96
    %v4698 = vpop.permute.xlu0 %4697
    %4699 = vrot.lane.b32.xlu0 %v4681, 96
    %v4700 = vpop.permute.xlu0 %4699
    %4701 = vrot.lane.b32.xlu0 %v4682, 96
    %v4702 = vpop.permute.xlu0 %4701
    %4703 = vrot.lane.b32.xlu0 %v4683, 96
    %v4704 = vpop.permute.xlu0 %4703
    %4705 = vrot.lane.b32.xlu0 %v4684, 96
    %v4706 = vpop.permute.xlu0 %4705
    %4707 = vrot.lane.b32.xlu0 %v4685, 96
    %v4708 = vpop.permute.xlu0 %4707
    %4709 = vrot.lane.b32.xlu0 %v4686, 96
    %v4710 = vpop.permute.xlu0 %4709
    %v4719 = vadd.f32 %v4679, %v4696
    %v4720 = vadd.f32 %v4680, %v4698
    %v4721 = vadd.f32 %v4681, %v4700
    %v4722 = vadd.f32 %v4682, %v4702
    %v4723 = vadd.f32 %v4683, %v4704
    %v4724 = vadd.f32 %v4684, %v4706
    %v4725 = vadd.f32 %v4685, %v4708
    %v4726 = vadd.f32 %v4686, %v4710
    %v4727 = vand.u32 2147483647, %v4719
    %v4728 = vand.u32 2147483647, %v4720
    %v4729 = vand.u32 2147483647, %v4721
    %v4730 = vand.u32 2147483647, %v4722
    %v4731 = vand.u32 2147483647, %v4723
    %v4732 = vand.u32 2147483647, %v4724
    %v4733 = vand.u32 2147483647, %v4725
    %v4734 = vand.u32 2147483647, %v4726
    %v4735 = vmax.f32 %v4727, 1e-24
    %v4736 = vmax.f32 %v4728, 1e-24
    %v4737 = vmax.f32 %v4729, 1e-24
    %v4738 = vmax.f32 %v4730, 1e-24
    %v4739 = vmax.f32 %v4731, 1e-24
    %v4740 = vmax.f32 %v4732, 1e-24
    %v4741 = vmax.f32 %v4733, 1e-24
    %v4742 = vmax.f32 %v4734, 1e-24
    %v4743 = vrsqrt.pop %v4735
    %v4744 = vrsqrt.pop %v4736
    %v4745 = vrsqrt.pop %v4737
    %v4746 = vrsqrt.pop %v4738
    %v4747 = vrsqrt.pop %v4739
    %v4748 = vrsqrt.pop %v4740
    %v4749 = vrsqrt.pop %v4741
    %v4750 = vrsqrt.pop %v4742
    %v4751 = vmul.f32 %v4719, %v4743
    %v4752 = vmul.f32 %v4720, %v4744
    %v4753 = vmul.f32 %v4721, %v4745
    %v4754 = vmul.f32 %v4722, %v4746
    %v4755 = vmul.f32 %v4723, %v4747
    %v4756 = vmul.f32 %v4724, %v4748
    %v4757 = vmul.f32 %v4725, %v4749
    %v4758 = vmul.f32 %v4726, %v4750
    %v4759 = vmul.f32 %v4751, %v368
    %v4760 = vmul.f32 %v4752, %v368
    %v4761 = vmul.f32 %v4753, %v368
    %v4762 = vmul.f32 %v4754, %v368
    %v4763 = vmul.f32 %v4755, %v368
    %v4764 = vmul.f32 %v4756, %v368
    %v4765 = vmul.f32 %v4757, %v368
    %v4766 = vmul.f32 %v4758, %v368
    %4775 = vrot.lane.b32.xlu0 %v4759, 96
    %v4776 = vpop.permute.xlu0 %4775
    %4777 = vrot.lane.b32.xlu0 %v4760, 96
    %v4778 = vpop.permute.xlu0 %4777
    %4779 = vrot.lane.b32.xlu0 %v4761, 96
    %v4780 = vpop.permute.xlu0 %4779
    %4781 = vrot.lane.b32.xlu0 %v4762, 96
    %v4782 = vpop.permute.xlu0 %4781
    %4783 = vrot.lane.b32.xlu0 %v4763, 96
    %v4784 = vpop.permute.xlu0 %4783
    %4785 = vrot.lane.b32.xlu0 %v4764, 96
    %v4786 = vpop.permute.xlu0 %4785
    %4787 = vrot.lane.b32.xlu0 %v4765, 96
    %v4788 = vpop.permute.xlu0 %4787
    %4789 = vrot.lane.b32.xlu0 %v4766, 96
    %v4790 = vpop.permute.xlu0 %4789
    %v4799 = vsel %vm25, %v4776, 0.0
    %4800 = vadd.xlane.f32.xlu0 %v4799
    %v4801 = vpop.xlane.xlu0 %4800
    %v4802 = vsel %vm25, %v4778, 0.0
    %4803 = vadd.xlane.f32.xlu0 %v4802
    %v4804 = vpop.xlane.xlu0 %4803
    %v4805 = vsel %vm25, %v4780, 0.0
    %4806 = vadd.xlane.f32.xlu0 %v4805
    %v4807 = vpop.xlane.xlu0 %4806
    %v4808 = vsel %vm25, %v4782, 0.0
    %4809 = vadd.xlane.f32.xlu0 %v4808
    %v4810 = vpop.xlane.xlu0 %4809
    %v4811 = vsel %vm25, %v4784, 0.0
    %4812 = vadd.xlane.f32.xlu0 %v4811
    %v4813 = vpop.xlane.xlu0 %4812
    %v4814 = vsel %vm25, %v4786, 0.0
    %4815 = vadd.xlane.f32.xlu0 %v4814
    %v4816 = vpop.xlane.xlu0 %4815
    %v4817 = vsel %vm25, %v4788, 0.0
    %4818 = vadd.xlane.f32.xlu0 %v4817
    %v4819 = vpop.xlane.xlu0 %4818
    %v4820 = vsel %vm25, %v4790, 0.0
    %4821 = vadd.xlane.f32.xlu0 %v4820
    %v4822 = vpop.xlane.xlu0 %4821
    %4831 = vrot.lane.b32.xlu0 %v4727, 96
    %v4832 = vpop.permute.xlu0 %4831
    %4833 = vrot.lane.b32.xlu0 %v4728, 96
    %v4834 = vpop.permute.xlu0 %4833
    %4835 = vrot.lane.b32.xlu0 %v4729, 96
    %v4836 = vpop.permute.xlu0 %4835
    %4837 = vrot.lane.b32.xlu0 %v4730, 96
    %v4838 = vpop.permute.xlu0 %4837
    %4839 = vrot.lane.b32.xlu0 %v4731, 96
    %v4840 = vpop.permute.xlu0 %4839
    %4841 = vrot.lane.b32.xlu0 %v4732, 96
    %v4842 = vpop.permute.xlu0 %4841
    %4843 = vrot.lane.b32.xlu0 %v4733, 96
    %v4844 = vpop.permute.xlu0 %4843
    %4845 = vrot.lane.b32.xlu0 %v4734, 96
    %v4846 = vpop.permute.xlu0 %4845
    %v4855 = vsel %vm25, %v4832, 0.0
    %4856 = vadd.xlane.f32.xlu0 %v4855
    %v4857 = vpop.xlane.xlu0 %4856
    %v4858 = vsel %vm25, %v4834, 0.0
    %4859 = vadd.xlane.f32.xlu0 %v4858
    %v4860 = vpop.xlane.xlu0 %4859
    %v4861 = vsel %vm25, %v4836, 0.0
    %4862 = vadd.xlane.f32.xlu0 %v4861
    %v4863 = vpop.xlane.xlu0 %4862
    %v4864 = vsel %vm25, %v4838, 0.0
    %4865 = vadd.xlane.f32.xlu0 %v4864
    %v4866 = vpop.xlane.xlu0 %4865
    %v4867 = vsel %vm25, %v4840, 0.0
    %4868 = vadd.xlane.f32.xlu0 %v4867
    %v4869 = vpop.xlane.xlu0 %4868
    %v4870 = vsel %vm25, %v4842, 0.0
    %4871 = vadd.xlane.f32.xlu0 %v4870
    %v4872 = vpop.xlane.xlu0 %4871
    %v4873 = vsel %vm25, %v4844, 0.0
    %4874 = vadd.xlane.f32.xlu0 %v4873
    %v4875 = vpop.xlane.xlu0 %4874
    %v4876 = vsel %vm25, %v4846, 0.0
    %4877 = vadd.xlane.f32.xlu0 %v4876
    %v4878 = vpop.xlane.xlu0 %4877
    %v4879 = vmax.f32 %v4857, 1e-24
    %v4880 = vmax.f32 %v4860, 1e-24
    %v4881 = vmax.f32 %v4863, 1e-24
    %v4882 = vmax.f32 %v4866, 1e-24
    %v4883 = vmax.f32 %v4869, 1e-24
    %v4884 = vmax.f32 %v4872, 1e-24
    %v4885 = vmax.f32 %v4875, 1e-24
    %v4886 = vmax.f32 %v4878, 1e-24
    %v4887 = vrsqrt.pop %v4879
    %v4888 = vrsqrt.pop %v4880
    %v4889 = vrsqrt.pop %v4881
    %v4890 = vrsqrt.pop %v4882
    %v4891 = vrsqrt.pop %v4883
    %v4892 = vrsqrt.pop %v4884
    %v4893 = vrsqrt.pop %v4885
    %v4894 = vrsqrt.pop %v4886
    %v4895 = vmul.f32 %v4801, %v4887
    %v4896 = vmul.f32 %v4804, %v4888
    %v4897 = vmul.f32 %v4807, %v4889
    %v4898 = vmul.f32 %v4810, %v4890
    %v4899 = vmul.f32 %v4813, %v4891
    %v4900 = vmul.f32 %v4816, %v4892
    %v4901 = vmul.f32 %v4819, %v4893
    %v4902 = vmul.f32 %v4822, %v4894
    %4903 = vrot.lane.b32.xlu0 %v4759, 88
    %v4904 = vpop.permute.xlu0 %4903
    %4905 = vrot.lane.b32.xlu0 %v4760, 88
    %v4906 = vpop.permute.xlu0 %4905
    %4907 = vrot.lane.b32.xlu0 %v4761, 88
    %v4908 = vpop.permute.xlu0 %4907
    %4909 = vrot.lane.b32.xlu0 %v4762, 88
    %v4910 = vpop.permute.xlu0 %4909
    %4911 = vrot.lane.b32.xlu0 %v4763, 88
    %v4912 = vpop.permute.xlu0 %4911
    %4913 = vrot.lane.b32.xlu0 %v4764, 88
    %v4914 = vpop.permute.xlu0 %4913
    %4915 = vrot.lane.b32.xlu0 %v4765, 88
    %v4916 = vpop.permute.xlu0 %4915
    %4917 = vrot.lane.b32.xlu0 %v4766, 88
    %v4918 = vpop.permute.xlu0 %4917
    %v4927 = vsel %vm25, %v4904, 0.0
    %4928 = vadd.xlane.f32.xlu0 %v4927
    %v4929 = vpop.xlane.xlu0 %4928
    %v4930 = vsel %vm25, %v4906, 0.0
    %4931 = vadd.xlane.f32.xlu0 %v4930
    %v4932 = vpop.xlane.xlu0 %4931
    %v4933 = vsel %vm25, %v4908, 0.0
    %4934 = vadd.xlane.f32.xlu0 %v4933
    %v4935 = vpop.xlane.xlu0 %4934
    %v4936 = vsel %vm25, %v4910, 0.0
    %4937 = vadd.xlane.f32.xlu0 %v4936
    %v4938 = vpop.xlane.xlu0 %4937
    %v4939 = vsel %vm25, %v4912, 0.0
    %4940 = vadd.xlane.f32.xlu0 %v4939
    %v4941 = vpop.xlane.xlu0 %4940
    %v4942 = vsel %vm25, %v4914, 0.0
    %4943 = vadd.xlane.f32.xlu0 %v4942
    %v4944 = vpop.xlane.xlu0 %4943
    %v4945 = vsel %vm25, %v4916, 0.0
    %4946 = vadd.xlane.f32.xlu0 %v4945
    %v4947 = vpop.xlane.xlu0 %4946
    %v4948 = vsel %vm25, %v4918, 0.0
    %4949 = vadd.xlane.f32.xlu0 %v4948
    %v4950 = vpop.xlane.xlu0 %4949
    %4951 = vrot.lane.b32.xlu0 %v4727, 88
    %v4952 = vpop.permute.xlu0 %4951
    %4953 = vrot.lane.b32.xlu0 %v4728, 88
    %v4954 = vpop.permute.xlu0 %4953
    %4955 = vrot.lane.b32.xlu0 %v4729, 88
    %v4956 = vpop.permute.xlu0 %4955
    %4957 = vrot.lane.b32.xlu0 %v4730, 88
    %v4958 = vpop.permute.xlu0 %4957
    %4959 = vrot.lane.b32.xlu0 %v4731, 88
    %v4960 = vpop.permute.xlu0 %4959
    %4961 = vrot.lane.b32.xlu0 %v4732, 88
    %v4962 = vpop.permute.xlu0 %4961
    %4963 = vrot.lane.b32.xlu0 %v4733, 88
    %v4964 = vpop.permute.xlu0 %4963
    %4965 = vrot.lane.b32.xlu0 %v4734, 88
    %v4966 = vpop.permute.xlu0 %4965
    %v4975 = vsel %vm25, %v4952, 0.0
    %4976 = vadd.xlane.f32.xlu0 %v4975
    %v4977 = vpop.xlane.xlu0 %4976
    %v4978 = vsel %vm25, %v4954, 0.0
    %4979 = vadd.xlane.f32.xlu0 %v4978
    %v4980 = vpop.xlane.xlu0 %4979
    %v4981 = vsel %vm25, %v4956, 0.0
    %4982 = vadd.xlane.f32.xlu0 %v4981
    %v4983 = vpop.xlane.xlu0 %4982
    %v4984 = vsel %vm25, %v4958, 0.0
    %4985 = vadd.xlane.f32.xlu0 %v4984
    %v4986 = vpop.xlane.xlu0 %4985
    %v4987 = vsel %vm25, %v4960, 0.0
    %4988 = vadd.xlane.f32.xlu0 %v4987
    %v4989 = vpop.xlane.xlu0 %4988
    %v4990 = vsel %vm25, %v4962, 0.0
    %4991 = vadd.xlane.f32.xlu0 %v4990
    %v4992 = vpop.xlane.xlu0 %4991
    %v4993 = vsel %vm25, %v4964, 0.0
    %4994 = vadd.xlane.f32.xlu0 %v4993
    %v4995 = vpop.xlane.xlu0 %4994
    %v4996 = vsel %vm25, %v4966, 0.0
    %4997 = vadd.xlane.f32.xlu0 %v4996
    %v4998 = vpop.xlane.xlu0 %4997
    %v4999 = vmax.f32 %v4977, 1e-24
    %v5000 = vmax.f32 %v4980, 1e-24
    %v5001 = vmax.f32 %v4983, 1e-24
    %v5002 = vmax.f32 %v4986, 1e-24
    %v5003 = vmax.f32 %v4989, 1e-24
    %v5004 = vmax.f32 %v4992, 1e-24
    %v5005 = vmax.f32 %v4995, 1e-24
    %v5006 = vmax.f32 %v4998, 1e-24
    %v5007 = vrsqrt.pop %v4999
    %v5008 = vrsqrt.pop %v5000
    %v5009 = vrsqrt.pop %v5001
    %v5010 = vrsqrt.pop %v5002
    %v5011 = vrsqrt.pop %v5003
    %v5012 = vrsqrt.pop %v5004
    %v5013 = vrsqrt.pop %v5005
    %v5014 = vrsqrt.pop %v5006
    %v5015 = vmul.f32 %v4929, %v5007
    %v5016 = vmul.f32 %v4932, %v5008
    %v5017 = vmul.f32 %v4935, %v5009
    %v5018 = vmul.f32 %v4938, %v5010
    %v5019 = vmul.f32 %v4941, %v5011
    %v5020 = vmul.f32 %v4944, %v5012
    %v5021 = vmul.f32 %v4947, %v5013
    %v5022 = vmul.f32 %v4950, %v5014
    %v5023 = vadd.f32 %v4895, %v5015
    %v5024 = vadd.f32 %v4896, %v5016
    %v5025 = vadd.f32 %v4897, %v5017
    %v5026 = vadd.f32 %v4898, %v5018
    %v5027 = vadd.f32 %v4899, %v5019
    %v5028 = vadd.f32 %v4900, %v5020
    %v5029 = vadd.f32 %v4901, %v5021
    %v5030 = vadd.f32 %v4902, %v5022
    %5031 = vrot.lane.b32.xlu0 %v4759, 80
    %v5032 = vpop.permute.xlu0 %5031
    %5033 = vrot.lane.b32.xlu0 %v4760, 80
    %v5034 = vpop.permute.xlu0 %5033
    %5035 = vrot.lane.b32.xlu0 %v4761, 80
    %v5036 = vpop.permute.xlu0 %5035
    %5037 = vrot.lane.b32.xlu0 %v4762, 80
    %v5038 = vpop.permute.xlu0 %5037
    %5039 = vrot.lane.b32.xlu0 %v4763, 80
    %v5040 = vpop.permute.xlu0 %5039
    %5041 = vrot.lane.b32.xlu0 %v4764, 80
    %v5042 = vpop.permute.xlu0 %5041
    %5043 = vrot.lane.b32.xlu0 %v4765, 80
    %v5044 = vpop.permute.xlu0 %5043
    %5045 = vrot.lane.b32.xlu0 %v4766, 80
    %v5046 = vpop.permute.xlu0 %5045
    %v5055 = vsel %vm25, %v5032, 0.0
    %5056 = vadd.xlane.f32.xlu0 %v5055
    %v5057 = vpop.xlane.xlu0 %5056
    %v5058 = vsel %vm25, %v5034, 0.0
    %5059 = vadd.xlane.f32.xlu0 %v5058
    %v5060 = vpop.xlane.xlu0 %5059
    %v5061 = vsel %vm25, %v5036, 0.0
    %5062 = vadd.xlane.f32.xlu0 %v5061
    %v5063 = vpop.xlane.xlu0 %5062
    %v5064 = vsel %vm25, %v5038, 0.0
    %5065 = vadd.xlane.f32.xlu0 %v5064
    %v5066 = vpop.xlane.xlu0 %5065
    %v5067 = vsel %vm25, %v5040, 0.0
    %5068 = vadd.xlane.f32.xlu0 %v5067
    %v5069 = vpop.xlane.xlu0 %5068
    %v5070 = vsel %vm25, %v5042, 0.0
    %5071 = vadd.xlane.f32.xlu0 %v5070
    %v5072 = vpop.xlane.xlu0 %5071
    %v5073 = vsel %vm25, %v5044, 0.0
    %5074 = vadd.xlane.f32.xlu0 %v5073
    %v5075 = vpop.xlane.xlu0 %5074
    %v5076 = vsel %vm25, %v5046, 0.0
    %5077 = vadd.xlane.f32.xlu0 %v5076
    %v5078 = vpop.xlane.xlu0 %5077
    %5079 = vrot.lane.b32.xlu0 %v4727, 80
    %v5080 = vpop.permute.xlu0 %5079
    %5081 = vrot.lane.b32.xlu0 %v4728, 80
    %v5082 = vpop.permute.xlu0 %5081
    %5083 = vrot.lane.b32.xlu0 %v4729, 80
    %v5084 = vpop.permute.xlu0 %5083
    %5085 = vrot.lane.b32.xlu0 %v4730, 80
    %v5086 = vpop.permute.xlu0 %5085
    %5087 = vrot.lane.b32.xlu0 %v4731, 80
    %v5088 = vpop.permute.xlu0 %5087
    %5089 = vrot.lane.b32.xlu0 %v4732, 80
    %v5090 = vpop.permute.xlu0 %5089
    %5091 = vrot.lane.b32.xlu0 %v4733, 80
    %v5092 = vpop.permute.xlu0 %5091
    %5093 = vrot.lane.b32.xlu0 %v4734, 80
    %v5094 = vpop.permute.xlu0 %5093
    %v5103 = vsel %vm25, %v5080, 0.0
    %5104 = vadd.xlane.f32.xlu0 %v5103
    %v5105 = vpop.xlane.xlu0 %5104
    %v5106 = vsel %vm25, %v5082, 0.0
    %5107 = vadd.xlane.f32.xlu0 %v5106
    %v5108 = vpop.xlane.xlu0 %5107
    %v5109 = vsel %vm25, %v5084, 0.0
    %5110 = vadd.xlane.f32.xlu0 %v5109
    %v5111 = vpop.xlane.xlu0 %5110
    %v5112 = vsel %vm25, %v5086, 0.0
    %5113 = vadd.xlane.f32.xlu0 %v5112
    %v5114 = vpop.xlane.xlu0 %5113
    %v5115 = vsel %vm25, %v5088, 0.0
    %5116 = vadd.xlane.f32.xlu0 %v5115
    %v5117 = vpop.xlane.xlu0 %5116
    %v5118 = vsel %vm25, %v5090, 0.0
    %5119 = vadd.xlane.f32.xlu0 %v5118
    %v5120 = vpop.xlane.xlu0 %5119
    %v5121 = vsel %vm25, %v5092, 0.0
    %5122 = vadd.xlane.f32.xlu0 %v5121
    %v5123 = vpop.xlane.xlu0 %5122
    %v5124 = vsel %vm25, %v5094, 0.0
    %5125 = vadd.xlane.f32.xlu0 %v5124
    %v5126 = vpop.xlane.xlu0 %5125
    %v5127 = vmax.f32 %v5105, 1e-24
    %v5128 = vmax.f32 %v5108, 1e-24
    %v5129 = vmax.f32 %v5111, 1e-24
    %v5130 = vmax.f32 %v5114, 1e-24
    %v5131 = vmax.f32 %v5117, 1e-24
    %v5132 = vmax.f32 %v5120, 1e-24
    %v5133 = vmax.f32 %v5123, 1e-24
    %v5134 = vmax.f32 %v5126, 1e-24
    %v5135 = vrsqrt.pop %v5127
    %v5136 = vrsqrt.pop %v5128
    %v5137 = vrsqrt.pop %v5129
    %v5138 = vrsqrt.pop %v5130
    %v5139 = vrsqrt.pop %v5131
    %v5140 = vrsqrt.pop %v5132
    %v5141 = vrsqrt.pop %v5133
    %v5142 = vrsqrt.pop %v5134
    %v5143 = vmul.f32 %v5057, %v5135
    %v5144 = vmul.f32 %v5060, %v5136
    %v5145 = vmul.f32 %v5063, %v5137
    %v5146 = vmul.f32 %v5066, %v5138
    %v5147 = vmul.f32 %v5069, %v5139
    %v5148 = vmul.f32 %v5072, %v5140
    %v5149 = vmul.f32 %v5075, %v5141
    %v5150 = vmul.f32 %v5078, %v5142
    %v5151 = vadd.f32 %v5023, %v5143
    %v5152 = vadd.f32 %v5024, %v5144
    %v5153 = vadd.f32 %v5025, %v5145
    %v5154 = vadd.f32 %v5026, %v5146
    %v5155 = vadd.f32 %v5027, %v5147
    %v5156 = vadd.f32 %v5028, %v5148
    %v5157 = vadd.f32 %v5029, %v5149
    %v5158 = vadd.f32 %v5030, %v5150
    %5159 = vrot.lane.b32.xlu0 %v4759, 72
    %v5160 = vpop.permute.xlu0 %5159
    %5161 = vrot.lane.b32.xlu0 %v4760, 72
    %v5162 = vpop.permute.xlu0 %5161
    %5163 = vrot.lane.b32.xlu0 %v4761, 72
    %v5164 = vpop.permute.xlu0 %5163
    %5165 = vrot.lane.b32.xlu0 %v4762, 72
    %v5166 = vpop.permute.xlu0 %5165
    %5167 = vrot.lane.b32.xlu0 %v4763, 72
    %v5168 = vpop.permute.xlu0 %5167
    %5169 = vrot.lane.b32.xlu0 %v4764, 72
    %v5170 = vpop.permute.xlu0 %5169
    %5171 = vrot.lane.b32.xlu0 %v4765, 72
    %v5172 = vpop.permute.xlu0 %5171
    %5173 = vrot.lane.b32.xlu0 %v4766, 72
    %v5174 = vpop.permute.xlu0 %5173
    %v5183 = vsel %vm25, %v5160, 0.0
    %5184 = vadd.xlane.f32.xlu0 %v5183
    %v5185 = vpop.xlane.xlu0 %5184
    %v5186 = vsel %vm25, %v5162, 0.0
    %5187 = vadd.xlane.f32.xlu0 %v5186
    %v5188 = vpop.xlane.xlu0 %5187
    %v5189 = vsel %vm25, %v5164, 0.0
    %5190 = vadd.xlane.f32.xlu0 %v5189
    %v5191 = vpop.xlane.xlu0 %5190
    %v5192 = vsel %vm25, %v5166, 0.0
    %5193 = vadd.xlane.f32.xlu0 %v5192
    %v5194 = vpop.xlane.xlu0 %5193
    %v5195 = vsel %vm25, %v5168, 0.0
    %5196 = vadd.xlane.f32.xlu0 %v5195
    %v5197 = vpop.xlane.xlu0 %5196
    %v5198 = vsel %vm25, %v5170, 0.0
    %5199 = vadd.xlane.f32.xlu0 %v5198
    %v5200 = vpop.xlane.xlu0 %5199
    %v5201 = vsel %vm25, %v5172, 0.0
    %5202 = vadd.xlane.f32.xlu0 %v5201
    %v5203 = vpop.xlane.xlu0 %5202
    %v5204 = vsel %vm25, %v5174, 0.0
    %5205 = vadd.xlane.f32.xlu0 %v5204
    %v5206 = vpop.xlane.xlu0 %5205
    %5207 = vrot.lane.b32.xlu0 %v4727, 72
    %v5208 = vpop.permute.xlu0 %5207
    %5209 = vrot.lane.b32.xlu0 %v4728, 72
    %v5210 = vpop.permute.xlu0 %5209
    %5211 = vrot.lane.b32.xlu0 %v4729, 72
    %v5212 = vpop.permute.xlu0 %5211
    %5213 = vrot.lane.b32.xlu0 %v4730, 72
    %v5214 = vpop.permute.xlu0 %5213
    %5215 = vrot.lane.b32.xlu0 %v4731, 72
    %v5216 = vpop.permute.xlu0 %5215
    %5217 = vrot.lane.b32.xlu0 %v4732, 72
    %v5218 = vpop.permute.xlu0 %5217
    %5219 = vrot.lane.b32.xlu0 %v4733, 72
    %v5220 = vpop.permute.xlu0 %5219
    %5221 = vrot.lane.b32.xlu0 %v4734, 72
    %v5222 = vpop.permute.xlu0 %5221
    %v5231 = vsel %vm25, %v5208, 0.0
    %5232 = vadd.xlane.f32.xlu0 %v5231
    %v5233 = vpop.xlane.xlu0 %5232
    %v5234 = vsel %vm25, %v5210, 0.0
    %5235 = vadd.xlane.f32.xlu0 %v5234
    %v5236 = vpop.xlane.xlu0 %5235
    %v5237 = vsel %vm25, %v5212, 0.0
    %5238 = vadd.xlane.f32.xlu0 %v5237
    %v5239 = vpop.xlane.xlu0 %5238
    %v5240 = vsel %vm25, %v5214, 0.0
    %5241 = vadd.xlane.f32.xlu0 %v5240
    %v5242 = vpop.xlane.xlu0 %5241
    %v5243 = vsel %vm25, %v5216, 0.0
    %5244 = vadd.xlane.f32.xlu0 %v5243
    %v5245 = vpop.xlane.xlu0 %5244
    %v5246 = vsel %vm25, %v5218, 0.0
    %5247 = vadd.xlane.f32.xlu0 %v5246
    %v5248 = vpop.xlane.xlu0 %5247
    %v5249 = vsel %vm25, %v5220, 0.0
    %5250 = vadd.xlane.f32.xlu0 %v5249
    %v5251 = vpop.xlane.xlu0 %5250
    %v5252 = vsel %vm25, %v5222, 0.0
    %5253 = vadd.xlane.f32.xlu0 %v5252
    %v5254 = vpop.xlane.xlu0 %5253
    %v5255 = vmax.f32 %v5233, 1e-24
    %v5256 = vmax.f32 %v5236, 1e-24
    %v5257 = vmax.f32 %v5239, 1e-24
    %v5258 = vmax.f32 %v5242, 1e-24
    %v5259 = vmax.f32 %v5245, 1e-24
    %v5260 = vmax.f32 %v5248, 1e-24
    %v5261 = vmax.f32 %v5251, 1e-24
    %v5262 = vmax.f32 %v5254, 1e-24
    %v5263 = vrsqrt.pop %v5255
    %v5264 = vrsqrt.pop %v5256
    %v5265 = vrsqrt.pop %v5257
    %v5266 = vrsqrt.pop %v5258
    %v5267 = vrsqrt.pop %v5259
    %v5268 = vrsqrt.pop %v5260
    %v5269 = vrsqrt.pop %v5261
    %v5270 = vrsqrt.pop %v5262
    %v5271 = vmul.f32 %v5185, %v5263
    %v5272 = vmul.f32 %v5188, %v5264
    %v5273 = vmul.f32 %v5191, %v5265
    %v5274 = vmul.f32 %v5194, %v5266
    %v5275 = vmul.f32 %v5197, %v5267
    %v5276 = vmul.f32 %v5200, %v5268
    %v5277 = vmul.f32 %v5203, %v5269
    %v5278 = vmul.f32 %v5206, %v5270
    %v5279 = vadd.f32 %v5151, %v5271
    %v5280 = vadd.f32 %v5152, %v5272
    %v5281 = vadd.f32 %v5153, %v5273
    %v5282 = vadd.f32 %v5154, %v5274
    %v5283 = vadd.f32 %v5155, %v5275
    %v5284 = vadd.f32 %v5156, %v5276
    %v5285 = vadd.f32 %v5157, %v5277
    %v5286 = vadd.f32 %v5158, %v5278
    %v5287 = vadd.f32 %v5279, %v902
    %v5288 = vadd.f32 %v5280, %v902
    %v5289 = vadd.f32 %v5281, %v902
    %v5290 = vadd.f32 %v5282, %v902
    %v5291 = vadd.f32 %v5283, %v902
    %v5292 = vadd.f32 %v5284, %v902
    %v5293 = vadd.f32 %v5285, %v902
    %v5294 = vadd.f32 %v5286, %v902
    %v5303 = vlaneseq
    %v5304 = vshrl.u32 %v5303, 7
    %v5305 = vsub.s32 %v921, %v5304
    %v5306 = vrot.slane %v5287, %v5305
    %v5307 = vlaneseq
    %v5308 = vshrl.u32 %v5307, 7
    %v5309 = vsub.s32 %v921, %v5308
    %v5310 = vrot.slane %v5288, %v5309
    %v5311 = vlaneseq
    %v5312 = vshrl.u32 %v5311, 7
    %v5313 = vsub.s32 %v921, %v5312
    %v5314 = vrot.slane %v5289, %v5313
    %v5315 = vlaneseq
    %v5316 = vshrl.u32 %v5315, 7
    %v5317 = vsub.s32 %v921, %v5316
    %v5318 = vrot.slane %v5290, %v5317
    %v5319 = vlaneseq
    %v5320 = vshrl.u32 %v5319, 7
    %v5321 = vsub.s32 %v921, %v5320
    %v5322 = vrot.slane %v5291, %v5321
    %v5323 = vlaneseq
    %v5324 = vshrl.u32 %v5323, 7
    %v5325 = vsub.s32 %v921, %v5324
    %v5326 = vrot.slane %v5292, %v5325
    %v5327 = vlaneseq
    %v5328 = vshrl.u32 %v5327, 7
    %v5329 = vsub.s32 %v921, %v5328
    %v5330 = vrot.slane %v5293, %v5329
    %v5331 = vlaneseq
    %v5332 = vshrl.u32 %v5331, 7
    %v5333 = vsub.s32 %v921, %v5332
    %v5334 = vrot.slane %v5294, %v5333
    %v5335 = vsel %vm954, %v5310, %v5306
    %v5336 = vsel %vm956, %v5314, %v5335
    %v5337 = vsel %vm958, %v5318, %v5336
    %v5338 = vsel %vm960, %v5322, %v5337
    %v5339 = vsel %vm962, %v5326, %v5338
    %v5340 = vsel %vm964, %v5330, %v5339
    %v5341 = vsel %vm966, %v5334, %v5340
    %v5343 = vsel %vm25, %v5341, -inf
    %5344 = vmax.xlane.f32.xlu0 %v5343
    %v5345 = vpop.xlane.xlu0 %5344
    %v5347 = vlaneseq
    %v5348 = vshrl.u32 %v5347, 7
    %v5349 = vsub.s32 0, %v5348
    %v5350 = vrot.slane %v5345, %v5349
    %v5351 = vlaneseq
    %v5352 = vshrl.u32 %v5351, 7
    %v5353 = vsub.s32 1, %v5352
    %v5354 = vrot.slane %v5345, %v5353
    %v5355 = vlaneseq
    %v5356 = vshrl.u32 %v5355, 7
    %v5357 = vsub.s32 2, %v5356
    %v5358 = vrot.slane %v5345, %v5357
    %v5359 = vlaneseq
    %v5360 = vshrl.u32 %v5359, 7
    %v5361 = vsub.s32 3, %v5360
    %v5362 = vrot.slane %v5345, %v5361
    %v5363 = vlaneseq
    %v5364 = vshrl.u32 %v5363, 7
    %v5365 = vsub.s32 4, %v5364
    %v5366 = vrot.slane %v5345, %v5365
    %v5367 = vlaneseq
    %v5368 = vshrl.u32 %v5367, 7
    %v5369 = vsub.s32 5, %v5368
    %v5370 = vrot.slane %v5345, %v5369
    %v5371 = vlaneseq
    %v5372 = vshrl.u32 %v5371, 7
    %v5373 = vsub.s32 6, %v5372
    %v5374 = vrot.slane %v5345, %v5373
    %v5375 = vlaneseq
    %v5376 = vshrl.u32 %v5375, 7
    %v5377 = vsub.s32 7, %v5376
    %v5378 = vrot.slane %v5345, %v5377
    %v5387 = vsub.f32 %v5287, %v5350
    %v5388 = vsub.f32 %v5288, %v5354
    %v5389 = vsub.f32 %v5289, %v5358
    %v5390 = vsub.f32 %v5290, %v5362
    %v5391 = vsub.f32 %v5291, %v5366
    %v5392 = vsub.f32 %v5292, %v5370
    %v5393 = vsub.f32 %v5293, %v5374
    %v5394 = vsub.f32 %v5294, %v5378
    %v5395 = vmul.f32 %v5387, 1.442695
    %v5396 = vpow.pop %v5395
    %v5397 = vmul.f32 %v5388, 1.442695
    %v5398 = vpow.pop %v5397
    %v5399 = vmul.f32 %v5389, 1.442695
    %v5400 = vpow.pop %v5399
    %v5401 = vmul.f32 %v5390, 1.442695
    %v5402 = vpow.pop %v5401
    %v5403 = vmul.f32 %v5391, 1.442695
    %v5404 = vpow.pop %v5403
    %v5405 = vmul.f32 %v5392, 1.442695
    %v5406 = vpow.pop %v5405
    %v5407 = vmul.f32 %v5393, 1.442695
    %v5408 = vpow.pop %v5407
    %v5409 = vmul.f32 %v5394, 1.442695
    %v5410 = vpow.pop %v5409
    %5419 = vset.pattern.permute.xlu0 0
    %5420 = vperm.xlu0 %5419, %v5396
    %v5421 = vpop.permute.xlu0 %5420
    %5422 = vset.pattern.permute.xlu0 0
    %5423 = vperm.xlu0 %5422, %v5398
    %v5424 = vpop.permute.xlu0 %5423
    %5425 = vset.pattern.permute.xlu0 0
    %5426 = vperm.xlu0 %5425, %v5400
    %v5427 = vpop.permute.xlu0 %5426
    %5428 = vset.pattern.permute.xlu0 0
    %5429 = vperm.xlu0 %5428, %v5402
    %v5430 = vpop.permute.xlu0 %5429
    %5431 = vset.pattern.permute.xlu0 0
    %5432 = vperm.xlu0 %5431, %v5404
    %v5433 = vpop.permute.xlu0 %5432
    %5434 = vset.pattern.permute.xlu0 0
    %5435 = vperm.xlu0 %5434, %v5406
    %v5436 = vpop.permute.xlu0 %5435
    %5437 = vset.pattern.permute.xlu0 0
    %5438 = vperm.xlu0 %5437, %v5408
    %v5439 = vpop.permute.xlu0 %5438
    %5440 = vset.pattern.permute.xlu0 0
    %5441 = vperm.xlu0 %5440, %v5410
    %v5442 = vpop.permute.xlu0 %5441
    %v5443 = vlaneseq
    %v5444 = vshrl.u32 %v5443, 7
    %v5445 = vsub.s32 %v921, %v5444
    %v5446 = vrot.slane %v5421, %v5445
    %v5447 = vlaneseq
    %v5448 = vshrl.u32 %v5447, 7
    %v5449 = vsub.s32 %v921, %v5448
    %v5450 = vrot.slane %v5424, %v5449
    %v5451 = vlaneseq
    %v5452 = vshrl.u32 %v5451, 7
    %v5453 = vsub.s32 %v921, %v5452
    %v5454 = vrot.slane %v5427, %v5453
    %v5455 = vlaneseq
    %v5456 = vshrl.u32 %v5455, 7
    %v5457 = vsub.s32 %v921, %v5456
    %v5458 = vrot.slane %v5430, %v5457
    %v5459 = vlaneseq
    %v5460 = vshrl.u32 %v5459, 7
    %v5461 = vsub.s32 %v921, %v5460
    %v5462 = vrot.slane %v5433, %v5461
    %v5463 = vlaneseq
    %v5464 = vshrl.u32 %v5463, 7
    %v5465 = vsub.s32 %v921, %v5464
    %v5466 = vrot.slane %v5436, %v5465
    %v5467 = vlaneseq
    %v5468 = vshrl.u32 %v5467, 7
    %v5469 = vsub.s32 %v921, %v5468
    %v5470 = vrot.slane %v5439, %v5469
    %v5471 = vlaneseq
    %v5472 = vshrl.u32 %v5471, 7
    %v5473 = vsub.s32 %v921, %v5472
    %v5474 = vrot.slane %v5442, %v5473
    %v5475 = vsel %vm954, %v5450, %v5446
    %v5476 = vsel %vm956, %v5454, %v5475
    %v5477 = vsel %vm958, %v5458, %v5476
    %v5478 = vsel %vm960, %v5462, %v5477
    %v5479 = vsel %vm962, %v5466, %v5478
    %v5480 = vsel %vm964, %v5470, %v5479
    %v5481 = vsel %vm966, %v5474, %v5480
    %v5483 = vsel %vm25, %v5481, 0.0
    %5484 = vadd.xlane.f32.xlu0 %v5483
    %v5485 = vpop.xlane.xlu0 %5484
    %v5486 = vrcp.pop %v5485
    %v5488 = vlaneseq
    %v5489 = vshrl.u32 %v5488, 7
    %v5490 = vsub.s32 0, %v5489
    %v5491 = vrot.slane %v5486, %v5490
    %v5492 = vlaneseq
    %v5493 = vshrl.u32 %v5492, 7
    %v5494 = vsub.s32 1, %v5493
    %v5495 = vrot.slane %v5486, %v5494
    %v5496 = vlaneseq
    %v5497 = vshrl.u32 %v5496, 7
    %v5498 = vsub.s32 2, %v5497
    %v5499 = vrot.slane %v5486, %v5498
    %v5500 = vlaneseq
    %v5501 = vshrl.u32 %v5500, 7
    %v5502 = vsub.s32 3, %v5501
    %v5503 = vrot.slane %v5486, %v5502
    %v5504 = vlaneseq
    %v5505 = vshrl.u32 %v5504, 7
    %v5506 = vsub.s32 4, %v5505
    %v5507 = vrot.slane %v5486, %v5506
    %v5508 = vlaneseq
    %v5509 = vshrl.u32 %v5508, 7
    %v5510 = vsub.s32 5, %v5509
    %v5511 = vrot.slane %v5486, %v5510
    %v5512 = vlaneseq
    %v5513 = vshrl.u32 %v5512, 7
    %v5514 = vsub.s32 6, %v5513
    %v5515 = vrot.slane %v5486, %v5514
    %v5516 = vlaneseq
    %v5517 = vshrl.u32 %v5516, 7
    %v5518 = vsub.s32 7, %v5517
    %v5519 = vrot.slane %v5486, %v5518
    %v5528 = vmul.f32 %v5396, %v5491
    %v5529 = vmul.f32 %v5398, %v5495
    %v5530 = vmul.f32 %v5400, %v5499
    %v5531 = vmul.f32 %v5402, %v5503
    %v5532 = vmul.f32 %v5404, %v5507
    %v5533 = vmul.f32 %v5406, %v5511
    %v5534 = vmul.f32 %v5408, %v5515
    %v5535 = vmul.f32 %v5410, %v5519
    %5544 = vset.pattern.permute.xlu0 0
    %5545 = vperm.xlu0 %5544, %v5528
    %v5546 = vpop.permute.xlu0 %5545
    %5547 = vset.pattern.permute.xlu0 0
    %5548 = vperm.xlu0 %5547, %v5529
    %v5549 = vpop.permute.xlu0 %5548
    %5550 = vset.pattern.permute.xlu0 0
    %5551 = vperm.xlu0 %5550, %v5530
    %v5552 = vpop.permute.xlu0 %5551
    %5553 = vset.pattern.permute.xlu0 0
    %5554 = vperm.xlu0 %5553, %v5531
    %v5555 = vpop.permute.xlu0 %5554
    %5556 = vset.pattern.permute.xlu0 0
    %5557 = vperm.xlu0 %5556, %v5532
    %v5558 = vpop.permute.xlu0 %5557
    %5559 = vset.pattern.permute.xlu0 0
    %5560 = vperm.xlu0 %5559, %v5533
    %v5561 = vpop.permute.xlu0 %5560
    %5562 = vset.pattern.permute.xlu0 0
    %5563 = vperm.xlu0 %5562, %v5534
    %v5564 = vpop.permute.xlu0 %5563
    %5565 = vset.pattern.permute.xlu0 0
    %5566 = vperm.xlu0 %5565, %v5535
    %v5567 = vpop.permute.xlu0 %5566
    %v5568 = vlaneseq
    %v5569 = vshrl.u32 %v5568, 7
    %v5570 = vsub.s32 %v921, %v5569
    %v5571 = vrot.slane %v5546, %v5570
    %v5572 = vlaneseq
    %v5573 = vshrl.u32 %v5572, 7
    %v5574 = vsub.s32 %v921, %v5573
    %v5575 = vrot.slane %v5549, %v5574
    %v5576 = vlaneseq
    %v5577 = vshrl.u32 %v5576, 7
    %v5578 = vsub.s32 %v921, %v5577
    %v5579 = vrot.slane %v5552, %v5578
    %v5580 = vlaneseq
    %v5581 = vshrl.u32 %v5580, 7
    %v5582 = vsub.s32 %v921, %v5581
    %v5583 = vrot.slane %v5555, %v5582
    %v5584 = vlaneseq
    %v5585 = vshrl.u32 %v5584, 7
    %v5586 = vsub.s32 %v921, %v5585
    %v5587 = vrot.slane %v5558, %v5586
    %v5588 = vlaneseq
    %v5589 = vshrl.u32 %v5588, 7
    %v5590 = vsub.s32 %v921, %v5589
    %v5591 = vrot.slane %v5561, %v5590
    %v5592 = vlaneseq
    %v5593 = vshrl.u32 %v5592, 7
    %v5594 = vsub.s32 %v921, %v5593
    %v5595 = vrot.slane %v5564, %v5594
    %v5596 = vlaneseq
    %v5597 = vshrl.u32 %v5596, 7
    %v5598 = vsub.s32 %v921, %v5597
    %v5599 = vrot.slane %v5567, %v5598
    %v5600 = vsel %vm954, %v5575, %v5571
    %v5601 = vsel %vm956, %v5579, %v5600
    %v5602 = vsel %vm958, %v5583, %v5601
    %v5603 = vsel %vm960, %v5587, %v5602
    %v5604 = vsel %vm962, %v5591, %v5603
    %v5605 = vsel %vm964, %v5595, %v5604
    %v5606 = vsel %vm966, %v5599, %v5605
    %v5607 = vsel %vm25, %v5606, 0
    %5609 = vmatprep.subr.mxu0 0.0
    %5610 = vmatpush1.msra.mxu0 %v3166
    %5611 = vmatprep.subr.mxu0 0.0
    %5612 = vmatpush1.msra.mxu0 0.0
    %5613 = vmatprep.subr.mxu0 0.0
    %5614 = vmatpush1.msra.mxu0 0.0
    %5615 = vmatprep.subr.mxu0 0.0
    %5616 = vmatpush1.msra.mxu0 0.0
    %5617 = vmatprep.subr.mxu0 0.0
    %5618 = vmatpush1.msra.mxu0 0.0
    %5619 = vmatprep.subr.mxu0 0.0
    %5620 = vmatpush1.msra.mxu0 0.0
    %5621 = vmatprep.subr.mxu0 0.0
    %5622 = vmatpush1.msra.mxu0 0.0
    %5623 = vmatprep.subr.mxu0 0.0
    %5624 = vmatpush1.msra.mxu0 0.0
    %5625 = vmatprep.subr.mxu0 0.0
    %5626 = vmatpush1.msra.mxu0 0.0
    %5627 = vmatprep.subr.mxu0 0.0
    %5628 = vmatpush1.msra.mxu0 0.0
    %5629 = vmatprep.subr.mxu0 0.0
    %5630 = vmatpush1.msra.mxu0 0.0
    %5631 = vmatprep.subr.mxu0 0.0
    %5632 = vmatpush1.msra.mxu0 0.0
    %5633 = vmatprep.subr.mxu0 0.0
    %5634 = vmatpush1.msra.mxu0 0.0
    %5635 = vmatprep.subr.mxu0 0.0
    %5636 = vmatpush1.msra.mxu0 0.0
    %5637 = vmatprep.subr.mxu0 0.0
    %5638 = vmatpush1.msra.mxu0 0.0
    %5639 = vmatprep.subr.mxu0 0.0
    %5640 = vmatpush1.msra.mxu0 0.0
    %5641 = vmatprep.subr.mxu0 0.0
    %5642 = vmatpush1.msra.mxu0 0.0
    %5643 = vmatprep.subr.mxu0 0.0
    %5644 = vmatpush1.msra.mxu0 0.0
    %5645 = vmatprep.subr.mxu0 0.0
    %5646 = vmatpush1.msra.mxu0 0.0
    %5647 = vmatprep.subr.mxu0 0.0
    %5648 = vmatpush1.msra.mxu0 0.0
    %5649 = vmatprep.subr.mxu0 0.0
    %5650 = vmatpush1.msra.mxu0 0.0
    %5651 = vmatprep.subr.mxu0 0.0
    %5652 = vmatpush1.msra.mxu0 0.0
    %5653 = vmatprep.subr.mxu0 0.0
    %5654 = vmatpush1.msra.mxu0 0.0
    %5655 = vmatprep.subr.mxu0 0.0
    %5656 = vmatpush1.msra.mxu0 0.0
    %5657 = vmatprep.subr.mxu0 0.0
    %5658 = vmatpush1.msra.mxu0 0.0
    %5659 = vmatprep.subr.mxu0 0.0
    %5660 = vmatpush1.msra.mxu0 0.0
    %5661 = vmatprep.subr.mxu0 0.0
    %5662 = vmatpush1.msra.mxu0 0.0
    %5663 = vmatprep.subr.mxu0 0.0
    %5664 = vmatpush1.msra.mxu0 0.0
    %5665 = vmatprep.subr.mxu0 0.0
    %5666 = vmatpush1.msra.mxu0 0.0
    %5667 = vmatprep.subr.mxu0 0.0
    %5668 = vmatpush1.msra.mxu0 0.0
    %5669 = vmatprep.subr.mxu0 0.0
    %5670 = vmatpush1.msra.mxu0 0.0
    %5671 = vmatprep.subr.mxu0 0.0
    %5672 = vmatpush1.msra.mxu0 0.0
    %5673 = vmatprep.mubr.f32.mxu0 0.0
    %5674 = vmatmul.mubr.f32.gmra.mrb[0].mxu0 %v5607
    %v5675 = vpop.f32.mrb[0].mxu0
    %v5676 = vadd.f32 0.0, %v5675
    %v5677 = vpop.f32.mrb[0].mxu0
    %5678 = vdwg.mxu0
    %5680 = vrot.lane.b32.xlu0 %v5676, 120
    %v5681 = vpop.permute.xlu0 %5680
    %5683 = vmatprep.subr.mxu0 0.0
    %5684 = vmatpush1.msra.mxu0 %v5681
    %5685 = vmatprep.subr.mxu0 0.0
    %5686 = vmatpush1.msra.mxu0 0.0
    %5687 = vmatprep.subr.mxu0 0.0
    %5688 = vmatpush1.msra.mxu0 0.0
    %5689 = vmatprep.subr.mxu0 0.0
    %5690 = vmatpush1.msra.mxu0 0.0
    %5691 = vmatprep.subr.mxu0 0.0
    %5692 = vmatpush1.msra.mxu0 0.0
    %5693 = vmatprep.subr.mxu0 0.0
    %5694 = vmatpush1.msra.mxu0 0.0
    %5695 = vmatprep.subr.mxu0 0.0
    %5696 = vmatpush1.msra.mxu0 0.0
    %5697 = vmatprep.subr.mxu0 0.0
    %5698 = vmatpush1.msra.mxu0 0.0
    %5699 = vmatprep.subr.mxu0 0.0
    %5700 = vmatpush1.msra.mxu0 0.0
    %5701 = vmatprep.subr.mxu0 0.0
    %5702 = vmatpush1.msra.mxu0 0.0
    %5703 = vmatprep.subr.mxu0 0.0
    %5704 = vmatpush1.msra.mxu0 0.0
    %5705 = vmatprep.subr.mxu0 0.0
    %5706 = vmatpush1.msra.mxu0 0.0
    %5707 = vmatprep.subr.mxu0 0.0
    %5708 = vmatpush1.msra.mxu0 0.0
    %5709 = vmatprep.subr.mxu0 0.0
    %5710 = vmatpush1.msra.mxu0 0.0
    %5711 = vmatprep.subr.mxu0 0.0
    %5712 = vmatpush1.msra.mxu0 0.0
    %5713 = vmatprep.subr.mxu0 0.0
    %5714 = vmatpush1.msra.mxu0 0.0
    %5715 = vmatprep.subr.mxu0 0.0
    %5716 = vmatpush1.msra.mxu0 0.0
    %5717 = vmatprep.subr.mxu0 0.0
    %5718 = vmatpush1.msra.mxu0 0.0
    %5719 = vmatprep.subr.mxu0 0.0
    %5720 = vmatpush1.msra.mxu0 0.0
    %5721 = vmatprep.subr.mxu0 0.0
    %5722 = vmatpush1.msra.mxu0 0.0
    %5723 = vmatprep.subr.mxu0 0.0
    %5724 = vmatpush1.msra.mxu0 0.0
    %5725 = vmatprep.subr.mxu0 0.0
    %5726 = vmatpush1.msra.mxu0 0.0
    %5727 = vmatprep.subr.mxu0 0.0
    %5728 = vmatpush1.msra.mxu0 0.0
    %5729 = vmatprep.subr.mxu0 0.0
    %5730 = vmatpush1.msra.mxu0 0.0
    %5731 = vmatprep.subr.mxu0 0.0
    %5732 = vmatpush1.msra.mxu0 0.0
    %5733 = vmatprep.subr.mxu0 0.0
    %5734 = vmatpush1.msra.mxu0 0.0
    %5735 = vmatprep.subr.mxu0 0.0
    %5736 = vmatpush1.msra.mxu0 0.0
    %5737 = vmatprep.subr.mxu0 0.0
    %5738 = vmatpush1.msra.mxu0 0.0
    %5739 = vmatprep.subr.mxu0 0.0
    %5740 = vmatpush1.msra.mxu0 0.0
    %5741 = vmatprep.subr.mxu0 0.0
    %5742 = vmatpush1.msra.mxu0 0.0
    %5743 = vmatprep.subr.mxu0 0.0
    %5744 = vmatpush1.msra.mxu0 0.0
    %5745 = vmatprep.subr.mxu0 0.0
    %5746 = vmatpush1.msra.mxu0 0.0
    %5747 = vmatprep.mubr.f32.mxu0 0.0
    %5748 = vmatmul.mubr.f32.gmra.mrb[0].mxu0 %v1312
    %v5749 = vpop.f32.mrb[0].mxu0
    %v5750 = vadd.f32 0.0, %v5749
    %v5751 = vpop.f32.mrb[0].mxu0
    %5752 = vdwg.mxu0
    %5753 = vmatprep.subr.mxu0 0.0
    %5754 = vmatpush1.msra.mxu0 %v5676
    %5755 = vmatprep.subr.mxu0 0.0
    %5756 = vmatpush1.msra.mxu0 0.0
    %5757 = vmatprep.subr.mxu0 0.0
    %5758 = vmatpush1.msra.mxu0 0.0
    %5759 = vmatprep.subr.mxu0 0.0
    %5760 = vmatpush1.msra.mxu0 0.0
    %5761 = vmatprep.subr.mxu0 0.0
    %5762 = vmatpush1.msra.mxu0 0.0
    %5763 = vmatprep.subr.mxu0 0.0
    %5764 = vmatpush1.msra.mxu0 0.0
    %5765 = vmatprep.subr.mxu0 0.0
    %5766 = vmatpush1.msra.mxu0 0.0
    %5767 = vmatprep.subr.mxu0 0.0
    %5768 = vmatpush1.msra.mxu0 0.0
    %5769 = vmatprep.subr.mxu0 0.0
    %5770 = vmatpush1.msra.mxu0 0.0
    %5771 = vmatprep.subr.mxu0 0.0
    %5772 = vmatpush1.msra.mxu0 0.0
    %5773 = vmatprep.subr.mxu0 0.0
    %5774 = vmatpush1.msra.mxu0 0.0
    %5775 = vmatprep.subr.mxu0 0.0
    %5776 = vmatpush1.msra.mxu0 0.0
    %5777 = vmatprep.subr.mxu0 0.0
    %5778 = vmatpush1.msra.mxu0 0.0
    %5779 = vmatprep.subr.mxu0 0.0
    %5780 = vmatpush1.msra.mxu0 0.0
    %5781 = vmatprep.subr.mxu0 0.0
    %5782 = vmatpush1.msra.mxu0 0.0
    %5783 = vmatprep.subr.mxu0 0.0
    %5784 = vmatpush1.msra.mxu0 0.0
    %5785 = vmatprep.subr.mxu0 0.0
    %5786 = vmatpush1.msra.mxu0 0.0
    %5787 = vmatprep.subr.mxu0 0.0
    %5788 = vmatpush1.msra.mxu0 0.0
    %5789 = vmatprep.subr.mxu0 0.0
    %5790 = vmatpush1.msra.mxu0 0.0
    %5791 = vmatprep.subr.mxu0 0.0
    %5792 = vmatpush1.msra.mxu0 0.0
    %5793 = vmatprep.subr.mxu0 0.0
    %5794 = vmatpush1.msra.mxu0 0.0
    %5795 = vmatprep.subr.mxu0 0.0
    %5796 = vmatpush1.msra.mxu0 0.0
    %5797 = vmatprep.subr.mxu0 0.0
    %5798 = vmatpush1.msra.mxu0 0.0
    %5799 = vmatprep.subr.mxu0 0.0
    %5800 = vmatpush1.msra.mxu0 0.0
    %5801 = vmatprep.subr.mxu0 0.0
    %5802 = vmatpush1.msra.mxu0 0.0
    %5803 = vmatprep.subr.mxu0 0.0
    %5804 = vmatpush1.msra.mxu0 0.0
    %5805 = vmatprep.subr.mxu0 0.0
    %5806 = vmatpush1.msra.mxu0 0.0
    %5807 = vmatprep.subr.mxu0 0.0
    %5808 = vmatpush1.msra.mxu0 0.0
    %5809 = vmatprep.subr.mxu0 0.0
    %5810 = vmatpush1.msra.mxu0 0.0
    %5811 = vmatprep.subr.mxu0 0.0
    %5812 = vmatpush1.msra.mxu0 0.0
    %5813 = vmatprep.subr.mxu0 0.0
    %5814 = vmatpush1.msra.mxu0 0.0
    %5815 = vmatprep.subr.mxu0 0.0
    %5816 = vmatpush1.msra.mxu0 0.0
    %5817 = vmatprep.mubr.f32.mxu0 0.0
    %5818 = vmatmul.mubr.f32.gmra.mrb[0].mxu0 %v1384
    %v5819 = vpop.f32.mrb[0].mxu0
    %v5820 = vadd.f32 %v5750, %v5819
    %v5821 = vpop.f32.mrb[0].mxu0
    %5822 = vdwg.mxu0
    %5823 = vrot.lane.b32.xlu0 %v5676, 112
    %v5824 = vpop.permute.xlu0 %5823
    %5826 = vmatprep.subr.mxu0 0.0
    %5827 = vmatpush1.msra.mxu0 %v5824
    %5828 = vmatprep.subr.mxu0 0.0
    %5829 = vmatpush1.msra.mxu0 0.0
    %5830 = vmatprep.subr.mxu0 0.0
    %5831 = vmatpush1.msra.mxu0 0.0
    %5832 = vmatprep.subr.mxu0 0.0
    %5833 = vmatpush1.msra.mxu0 0.0
    %5834 = vmatprep.subr.mxu0 0.0
    %5835 = vmatpush1.msra.mxu0 0.0
    %5836 = vmatprep.subr.mxu0 0.0
    %5837 = vmatpush1.msra.mxu0 0.0
    %5838 = vmatprep.subr.mxu0 0.0
    %5839 = vmatpush1.msra.mxu0 0.0
    %5840 = vmatprep.subr.mxu0 0.0
    %5841 = vmatpush1.msra.mxu0 0.0
    %5842 = vmatprep.subr.mxu0 0.0
    %5843 = vmatpush1.msra.mxu0 0.0
    %5844 = vmatprep.subr.mxu0 0.0
    %5845 = vmatpush1.msra.mxu0 0.0
    %5846 = vmatprep.subr.mxu0 0.0
    %5847 = vmatpush1.msra.mxu0 0.0
    %5848 = vmatprep.subr.mxu0 0.0
    %5849 = vmatpush1.msra.mxu0 0.0
    %5850 = vmatprep.subr.mxu0 0.0
    %5851 = vmatpush1.msra.mxu0 0.0
    %5852 = vmatprep.subr.mxu0 0.0
    %5853 = vmatpush1.msra.mxu0 0.0
    %5854 = vmatprep.subr.mxu0 0.0
    %5855 = vmatpush1.msra.mxu0 0.0
    %5856 = vmatprep.subr.mxu0 0.0
    %5857 = vmatpush1.msra.mxu0 0.0
    %5858 = vmatprep.subr.mxu0 0.0
    %5859 = vmatpush1.msra.mxu0 0.0
    %5860 = vmatprep.subr.mxu0 0.0
    %5861 = vmatpush1.msra.mxu0 0.0
    %5862 = vmatprep.subr.mxu0 0.0
    %5863 = vmatpush1.msra.mxu0 0.0
    %5864 = vmatprep.subr.mxu0 0.0
    %5865 = vmatpush1.msra.mxu0 0.0
    %5866 = vmatprep.subr.mxu0 0.0
    %5867 = vmatpush1.msra.mxu0 0.0
    %5868 = vmatprep.subr.mxu0 0.0
    %5869 = vmatpush1.msra.mxu0 0.0
    %5870 = vmatprep.subr.mxu0 0.0
    %5871 = vmatpush1.msra.mxu0 0.0
    %5872 = vmatprep.subr.mxu0 0.0
    %5873 = vmatpush1.msra.mxu0 0.0
    %5874 = vmatprep.subr.mxu0 0.0
    %5875 = vmatpush1.msra.mxu0 0.0
    %5876 = vmatprep.subr.mxu0 0.0
    %5877 = vmatpush1.msra.mxu0 0.0
    %5878 = vmatprep.subr.mxu0 0.0
    %5879 = vmatpush1.msra.mxu0 0.0
    %5880 = vmatprep.subr.mxu0 0.0
    %5881 = vmatpush1.msra.mxu0 0.0
    %5882 = vmatprep.subr.mxu0 0.0
    %5883 = vmatpush1.msra.mxu0 0.0
    %5884 = vmatprep.subr.mxu0 0.0
    %5885 = vmatpush1.msra.mxu0 0.0
    %5886 = vmatprep.subr.mxu0 0.0
    %5887 = vmatpush1.msra.mxu0 0.0
    %5888 = vmatprep.subr.mxu0 0.0
    %5889 = vmatpush1.msra.mxu0 0.0
    %5890 = vmatprep.mubr.f32.mxu0 0.0
    %5891 = vmatmul.mubr.f32.gmra.mrb[0].mxu0 %v1461
    %v5892 = vpop.f32.mrb[0].mxu0
    %v5893 = vadd.f32 0.0, %v5892
    %v5894 = vpop.f32.mrb[0].mxu0
    %5895 = vdwg.mxu0
    %v5896 = vadd.f32 %v5820, %v5893
    %5897 = vrot.lane.b32.xlu0 %v5676, 104
    %v5898 = vpop.permute.xlu0 %5897
    %5900 = vmatprep.subr.mxu0 0.0
    %5901 = vmatpush1.msra.mxu0 %v5898
    %5902 = vmatprep.subr.mxu0 0.0
    %5903 = vmatpush1.msra.mxu0 0.0
    %5904 = vmatprep.subr.mxu0 0.0
    %5905 = vmatpush1.msra.mxu0 0.0
    %5906 = vmatprep.subr.mxu0 0.0
    %5907 = vmatpush1.msra.mxu0 0.0
    %5908 = vmatprep.subr.mxu0 0.0
    %5909 = vmatpush1.msra.mxu0 0.0
    %5910 = vmatprep.subr.mxu0 0.0
    %5911 = vmatpush1.msra.mxu0 0.0
    %5912 = vmatprep.subr.mxu0 0.0
    %5913 = vmatpush1.msra.mxu0 0.0
    %5914 = vmatprep.subr.mxu0 0.0
    %5915 = vmatpush1.msra.mxu0 0.0
    %5916 = vmatprep.subr.mxu0 0.0
    %5917 = vmatpush1.msra.mxu0 0.0
    %5918 = vmatprep.subr.mxu0 0.0
    %5919 = vmatpush1.msra.mxu0 0.0
    %5920 = vmatprep.subr.mxu0 0.0
    %5921 = vmatpush1.msra.mxu0 0.0
    %5922 = vmatprep.subr.mxu0 0.0
    %5923 = vmatpush1.msra.mxu0 0.0
    %5924 = vmatprep.subr.mxu0 0.0
    %5925 = vmatpush1.msra.mxu0 0.0
    %5926 = vmatprep.subr.mxu0 0.0
    %5927 = vmatpush1.msra.mxu0 0.0
    %5928 = vmatprep.subr.mxu0 0.0
    %5929 = vmatpush1.msra.mxu0 0.0
    %5930 = vmatprep.subr.mxu0 0.0
    %5931 = vmatpush1.msra.mxu0 0.0
    %5932 = vmatprep.subr.mxu0 0.0
    %5933 = vmatpush1.msra.mxu0 0.0
    %5934 = vmatprep.subr.mxu0 0.0
    %5935 = vmatpush1.msra.mxu0 0.0
    %5936 = vmatprep.subr.mxu0 0.0
    %5937 = vmatpush1.msra.mxu0 0.0
    %5938 = vmatprep.subr.mxu0 0.0
    %5939 = vmatpush1.msra.mxu0 0.0
    %5940 = vmatprep.subr.mxu0 0.0
    %5941 = vmatpush1.msra.mxu0 0.0
    %5942 = vmatprep.subr.mxu0 0.0
    %5943 = vmatpush1.msra.mxu0 0.0
    %5944 = vmatprep.subr.mxu0 0.0
    %5945 = vmatpush1.msra.mxu0 0.0
    %5946 = vmatprep.subr.mxu0 0.0
    %5947 = vmatpush1.msra.mxu0 0.0
    %5948 = vmatprep.subr.mxu0 0.0
    %5949 = vmatpush1.msra.mxu0 0.0
    %5950 = vmatprep.subr.mxu0 0.0
    %5951 = vmatpush1.msra.mxu0 0.0
    %5952 = vmatprep.subr.mxu0 0.0
    %5953 = vmatpush1.msra.mxu0 0.0
    %5954 = vmatprep.subr.mxu0 0.0
    %5955 = vmatpush1.msra.mxu0 0.0
    %5956 = vmatprep.subr.mxu0 0.0
    %5957 = vmatpush1.msra.mxu0 0.0
    %5958 = vmatprep.subr.mxu0 0.0
    %5959 = vmatpush1.msra.mxu0 0.0
    %5960 = vmatprep.subr.mxu0 0.0
    %5961 = vmatpush1.msra.mxu0 0.0
    %5962 = vmatprep.subr.mxu0 0.0
    %5963 = vmatpush1.msra.mxu0 0.0
    %5964 = vmatprep.mubr.f32.mxu0 0.0
    %5965 = vmatmul.mubr.f32.gmra.mrb[0].mxu0 %v1539
    %v5966 = vpop.f32.mrb[0].mxu0
    %v5967 = vadd.f32 0.0, %v5966
    %v5968 = vpop.f32.mrb[0].mxu0
    %5969 = vdwg.mxu0
    %v5970 = vadd.f32 %v5896, %v5967
    %5971 = vxpose.xlu0.b32.start [1/16] %v5970, 128
    %5972 = vxpose.xlu0.b32.cont [2/16] 0.0, 128
    %5973 = vxpose.xlu0.b32.cont [3/16] 0.0, 128
    %5974 = vxpose.xlu0.b32.cont [4/16] 0.0, 128
    %5975 = vxpose.xlu0.b32.cont [5/16] 0.0, 128
    %5976 = vxpose.xlu0.b32.cont [6/16] 0.0, 128
    %5977 = vxpose.xlu0.b32.cont [7/16] 0.0, 128
    %5978 = vxpose.xlu0.b32.cont [8/16] 0.0, 128
    %5979 = vxpose.xlu0.b32.cont [9/16] 0.0, 128
    %5980 = vxpose.xlu0.b32.cont [10/16] 0.0, 128
    %5981 = vxpose.xlu0.b32.cont [11/16] 0.0, 128
    %5982 = vxpose.xlu0.b32.cont [12/16] 0.0, 128
    %5983 = vxpose.xlu0.b32.cont [13/16] 0.0, 128
    %5984 = vxpose.xlu0.b32.cont [14/16] 0.0, 128
    %5985 = vxpose.xlu0.b32.cont [15/16] 0.0, 128
    %5986 = vxpose.xlu0.b32.end [16/16] 0.0, 128
    %v5987 = vpop.trf.xlu0
    %v5988 = vpop.trf.xlu0
    %v5989 = vpop.trf.xlu0
    %v5990 = vpop.trf.xlu0
    %v5991 = vpop.trf.xlu0
    %v5992 = vpop.trf.xlu0
    %v5993 = vpop.trf.xlu0
    %v5994 = vpop.trf.xlu0
    %v5995 = vpop.trf.xlu0
    %v5996 = vpop.trf.xlu0
    %v5997 = vpop.trf.xlu0
    %v5998 = vpop.trf.xlu0
    %v5999 = vpop.trf.xlu0
    %v6000 = vpop.trf.xlu0
    %v6001 = vpop.trf.xlu0
    %v6002 = vpop.trf.xlu0
    %v6003 = vadd.f32 %v5987, %v1646
    %v6004 = vmul.f32 %v6003, %v1651
    %v6005 = vadd.f32 %v6004, %v1656
    %v6006 = vmax.f32 %v6005, 0.0
    %v6007 = vadd.f32 %v6006, %v3087
    %6008 = vst.msk [vmem:[#allocation2 + $0x8] sm:$0xff] %vm25, %v6007
    // Predicated region
    $region10: #{baf_forward.1} parent=1 // pred_check
      _
    $region11: #{baf_forward.1} parent=1 // pred_check_branch
      %6010 = sbr.rel (0) target = $region13
    $region12: #{baf_forward.1} parent=1 // pred_region
      %s6012 = ssub.s32 256, 256
      %6013 = vsyncadd [#allocation3], %s6012
      %s6014 = sshll.u32 [#allocation2], 4
      %s6015 = int_to_ptr.vmem [resolvable:$true] %s6014
      %6020 = dma.vmem_to_hbm [thread:$0]  %s6015, 256, %s2, [#allocation3], 128, 128, 8
    $region13: #{baf_forward.1} parent=1 // pred_fallthru
      _
    // Predicated region
    $region14: #{baf_forward.1} parent=1 // pred_check
      _
    $region15: #{baf_forward.1} parent=1 // pred_check_branch
      %6022 = sbr.rel (0) target = $region17
    $region16: #{baf_forward.1} parent=1 // pred_region
      %6023 = dma.done [#allocation3], 256
    $region17: #{baf_forward.1} parent=1 // pred_fallthru
      _
    %6024 = vsyncpa [#allocation3], 1

</llo_original>
